<compile_context>
chip_gen: v7x
topology: tpu7x:2x2x1
jax: 0.10.0
libtpu: 0.0.40
codegen_flags: <defaults>
</compile_context>

<pallas_src>
import functools

import jax
import jax.numpy as jnp
from jax import lax
from jax.experimental import pallas as pl
from jax.experimental.pallas import tpu as pltpu


def _round_up(x, m):
    return ((x + m - 1) // m) * m


def _deconv_kernel(x_ref, w_ref, b_ref, o_ref, *p_refs, N, K, Wp, Lq_pad):
    # x_ref: (N*C_in, Lin_pad)      flattened dilated+padded input (batch on rows)
    # w_ref: (K*C_out, K*C_in)      per-kh weight slabs, rows [kh*C_out : (kh+1)*C_out]
    # b_ref: (C_out, 1)             bias (broadcasts over lanes)
    # o_ref: (N*C_out, Lq_pad)      lane-dense output (junk lanes sliced on host)
    # p_refs: K scratch slabs (K*C_in, N*Lq_pad) -- one im2col slab per kernel row kh
    c_in = x_ref.shape[0] // N
    c_out = o_ref.shape[0] // N

    acc = None
    for kh in range(K):
        p_ref = p_refs[kh]
        # Build the im2col slab for kernel row kh: rows ordered (kw, ic), lanes
        # ordered (n, output-position).  Every tap is just a lane-offset slice of
        # the flattened input rows -- no window materialization, no reshapes.
        for kw in range(K):
            off = kh * Wp + kw
            for n in range(N):
                p_ref[pl.ds(kw * c_in, c_in), pl.ds(n * Lq_pad, Lq_pad)] = (
                    x_ref[pl.ds(n * c_in, c_in), pl.ds(off, Lq_pad)])
        # Partial MXU contraction for this kh group; independent scratch refs let
        # the scheduler overlap this dot with the stores of the next group.
        part = jnp.dot(w_ref[pl.ds(kh * c_out, c_out), :], p_ref[...],
                       preferred_element_type=jnp.float32)
        acc = part if acc is None else acc + part

    acc = acc + b_ref[...]
    for n in range(N):
        o_ref[pl.ds(n * c_out, c_out), :] = (
            acc[:, n * Lq_pad:(n + 1) * Lq_pad].astype(o_ref.dtype))


def conv_transpose2d(x_nchw, weight, bias, stride, padding):
    """ConvTranspose2d forward. x_nchw: (N, C_in, H, W), weight: (C_in, C_out, K, K).

    Assumes output_padding=0, dilation=1, groups=1 (nn.ConvTranspose2d defaults).
    """
    N, C_in, H, W = x_nchw.shape
    _, C_out, K, _ = weight.shape
    s, p = stride, padding
    pe = K - 1 - p
    if pe < 0:
        raise NotImplementedError("padding > kernel_size - 1 is not supported")

    OH = (H - 1) * s - 2 * p + K
    OW = (W - 1) * s - 2 * p + K
    Hp = (H - 1) * s + 1 + 2 * pe                    # dilated + padded height
    Wp = (W - 1) * s + 1 + 2 * pe                    # dilated + padded width
    Lq = OH * Wp                                     # lane-dense output row length
    Lq_pad = _round_up(Lq, 128)                      # 1023 -> 1024: unmasked stores
    # Furthest source lane any tap reads (for the last padded output lane), then
    # round the flattened input length up to a lane-tile multiple.
    need = (K - 1) * Wp + (K - 1) + Lq_pad
    Lin_pad = _round_up(max(need, Hp * Wp), 128)     # 1089 -> 1152

    # Fused zero-dilation (interior pad = s-1) + edge pad, then flatten spatial and
    # zero-pad the flat axis to Lin_pad (all reads past real data hit host zeros).
    x_pad = lax.pad(
        x_nchw, jnp.zeros((), x_nchw.dtype),
        ((0, 0, 0), (0, 0, 0), (pe, pe, s - 1), (pe, pe, s - 1)))  # (N,C_in,Hp,Wp)
    x_flat = x_pad.reshape(N, C_in, Hp * Wp)
    x_flat = jnp.pad(x_flat, ((0, 0), (0, 0), (0, Lin_pad - Hp * Wp)))
    x2 = x_flat.reshape(N * C_in, Lin_pad)           # batch on rows, free reshape

    # w2[kh*C_out + oc, kw*C_in + ic] = W[ic, oc, K-1-kh, K-1-kw]
    w2 = (jnp.flip(weight, axis=(2, 3))
             .transpose(2, 1, 3, 0)                  # (kh, oc, kw, ic)
             .reshape(K * C_out, K * C_in))
    b2 = bias.reshape(C_out, 1)

    kernel = functools.partial(_deconv_kernel, N=N, K=K, Wp=Wp, Lq_pad=Lq_pad)

    out_flat = pl.pallas_call(
        kernel,
        out_shape=jax.ShapeDtypeStruct((N * C_out, Lq_pad), x_nchw.dtype),
        grid_spec=pltpu.PrefetchScalarGridSpec(
            num_scalar_prefetch=0,
            grid=(1,),                               # single step: both batches inside
            in_specs=[
                pl.BlockSpec((N * C_in, Lin_pad), lambda i: (0, 0)),
                pl.BlockSpec((K * C_out, K * C_in), lambda i: (0, 0)),
                pl.BlockSpec((C_out, 1), lambda i: (0, 0)),
            ],
            out_specs=pl.BlockSpec((N * C_out, Lq_pad), lambda i: (0, 0)),
            scratch_shapes=[pltpu.VMEM((K * C_in, N * Lq_pad), jnp.float32)
                            for _ in range(K)],
        ),
        compiler_params=pltpu.CompilerParams(
            dimension_semantics=("arbitrary",)),
    )(x2, w2, b2)

    # Output is already NCHW-flat: drop padded lanes, then the (Wp-OW) junk columns.
    out = out_flat.reshape(N, C_out, Lq_pad)[:, :, :Lq]
    return out.reshape(N, C_out, OH, Wp)[:, :, :, :OW]


def _reference_conv_transpose2d(x_nchw, weight, bias, stride, padding):
    # Pure-XLA reference for validation.
    C_in, C_out, K, _ = weight.shape
    w_conv = jnp.flip(weight, axis=(2, 3)).transpose(1, 0, 2, 3)  # (C_out, C_in, K, K)
    pe = K - 1 - padding
    out = lax.conv_general_dilated(
        x_nchw, w_conv,
        window_strides=(1, 1),
        padding=[(pe, pe), (pe, pe)],
        lhs_dilation=(stride, stride),
        dimension_numbers=("NCHW", "OIHW", "NCHW"),
    )
    return out + bias.reshape(1, C_out, 1, 1)


if __name__ == "__main__":
    # Module config: DeconvolutionLayer(in_channels=4, out_channels=8,
    #                                   kernel_size=3, stride=2, padding=1)
    N, C_in, H, W = 2, 4, 16, 16
    C_out, K, stride, padding = 8, 3, 2, 1

    key = jax.random.PRNGKey(0)
    kx, kw, kb = jax.random.split(key, 3)

    x = jax.random.normal(kx, (N, C_in, H, W), dtype=jnp.float32)
    # Deterministic synthetic parameters (ConvTranspose2d weight shape is
    # (in_channels, out_channels, K, K); bias shape (out_channels,)).
    bound = 1.0 / float((C_in * K * K) ** 0.5)
    weight = jax.random.uniform(kw, (C_in, C_out, K, K), jnp.float32, -bound, bound)
    bias = jax.random.uniform(kb, (C_out,), jnp.float32, -bound, bound)

    out = conv_transpose2d(x, weight, bias, stride, padding)
    out = jax.block_until_ready(out)

    OH = (H - 1) * stride - 2 * padding + K
    assert out.shape == (N, C_out, OH, OH), out.shape

    ref = _reference_conv_transpose2d(x, weight, bias, stride, padding)
    assert jnp.allclose(out, ref, atol=1e-4, rtol=1e-4), \
        float(jnp.max(jnp.abs(out - ref)))

    print("KERNEL_OK")
</pallas_src>

<mosaic_0001>
module attributes {stable_mosaic.version = 11 : i64} {
  func.func @_deconv_kernel(%arg0: i32, %arg1: memref<8x1152xf32, #tpu.memory_space<vmem>>, %arg2: memref<24x12xf32, #tpu.memory_space<vmem>>, %arg3: memref<8x1xf32, #tpu.memory_space<vmem>>, %arg4: memref<16x1024xf32, #tpu.memory_space<vmem>>, %arg5: memref<12x2048xf32, #tpu.memory_space<vmem>>, %arg6: memref<12x2048xf32, #tpu.memory_space<vmem>>, %arg7: memref<12x2048xf32, #tpu.memory_space<vmem>>) attributes {dimension_semantics = [#tpu.dimension_semantics<arbitrary>], iteration_bounds = array<i64: 1>, scalar_prefetch = 0 : i64, scratch_operands = 3 : i64, tpu.core_type = #tpu.core_type<tc>, window_params = [{pipeline_mode = #tpu.pipeline_mode<synchronous>, transform_indices = @transform_0, window_bounds = array<i64: 8, 1152>}, {pipeline_mode = #tpu.pipeline_mode<synchronous>, transform_indices = @transform_1, window_bounds = array<i64: 24, 12>}, {pipeline_mode = #tpu.pipeline_mode<synchronous>, transform_indices = @transform_2, window_bounds = array<i64: 8, 1>}, {pipeline_mode = #tpu.pipeline_mode<synchronous>, transform_indices = @transform_3, window_bounds = array<i64: 16, 1024>}]} {
    %c0 = arith.constant 0 : index
    %c0_0 = arith.constant 0 : index
    %0 = vector.load %arg1[%c0, %c0_0] : memref<8x1152xf32, #tpu.memory_space<vmem>>, vector<4x1024xf32>
    %c0_1 = arith.constant 0 : index
    %c0_2 = arith.constant 0 : index
    %1 = vector.load %arg5[%c0_1, %c0_2] : memref<12x2048xf32, #tpu.memory_space<vmem>>, vector<4x1024xf32>
    tpu.vector_store %arg5[%c0_1, %c0_2], %0 {strides = array<i32>} : memref<12x2048xf32, #tpu.memory_space<vmem>>, vector<4x1024xf32>,
    %c4 = arith.constant 4 : index
    %c0_3 = arith.constant 0 : index
    %2 = vector.load %arg1[%c4, %c0_3] : memref<8x1152xf32, #tpu.memory_space<vmem>>, vector<4x1024xf32>
    %c0_4 = arith.constant 0 : index
    %c1024 = arith.constant 1024 : index
    %3 = vector.load %arg5[%c0_4, %c1024] : memref<12x2048xf32, #tpu.memory_space<vmem>>, vector<4x1024xf32>
    tpu.vector_store %arg5[%c0_4, %c1024], %2 {strides = array<i32>} : memref<12x2048xf32, #tpu.memory_space<vmem>>, vector<4x1024xf32>,
    %c0_5 = arith.constant 0 : index
    %c1 = arith.constant 1 : index
    %4 = vector.load %arg1[%c0_5, %c1] : memref<8x1152xf32, #tpu.memory_space<vmem>>, vector<4x1024xf32>
    %c4_6 = arith.constant 4 : index
    %c0_7 = arith.constant 0 : index
    %5 = vector.load %arg5[%c4_6, %c0_7] : memref<12x2048xf32, #tpu.memory_space<vmem>>, vector<4x1024xf32>
    tpu.vector_store %arg5[%c4_6, %c0_7], %4 {strides = array<i32>} : memref<12x2048xf32, #tpu.memory_space<vmem>>, vector<4x1024xf32>,
    %c4_8 = arith.constant 4 : index
    %c1_9 = arith.constant 1 : index
    %6 = vector.load %arg1[%c4_8, %c1_9] : memref<8x1152xf32, #tpu.memory_space<vmem>>, vector<4x1024xf32>
    %c4_10 = arith.constant 4 : index
    %c1024_11 = arith.constant 1024 : index
    %7 = vector.load %arg5[%c4_10, %c1024_11] : memref<12x2048xf32, #tpu.memory_space<vmem>>, vector<4x1024xf32>
    tpu.vector_store %arg5[%c4_10, %c1024_11], %6 {strides = array<i32>} : memref<12x2048xf32, #tpu.memory_space<vmem>>, vector<4x1024xf32>,
    %c0_12 = arith.constant 0 : index
    %c2 = arith.constant 2 : index
    %8 = vector.load %arg1[%c0_12, %c2] : memref<8x1152xf32, #tpu.memory_space<vmem>>, vector<4x1024xf32>
    %c8 = arith.constant 8 : index
    %c0_13 = arith.constant 0 : index
    %9 = vector.load %arg5[%c8, %c0_13] : memref<12x2048xf32, #tpu.memory_space<vmem>>, vector<4x1024xf32>
    tpu.vector_store %arg5[%c8, %c0_13], %8 {strides = array<i32>} : memref<12x2048xf32, #tpu.memory_space<vmem>>, vector<4x1024xf32>,
    %c4_14 = arith.constant 4 : index
    %c2_15 = arith.constant 2 : index
    %10 = vector.load %arg1[%c4_14, %c2_15] : memref<8x1152xf32, #tpu.memory_space<vmem>>, vector<4x1024xf32>
    %c8_16 = arith.constant 8 : index
    %c1024_17 = arith.constant 1024 : index
    %11 = vector.load %arg5[%c8_16, %c1024_17] : memref<12x2048xf32, #tpu.memory_space<vmem>>, vector<4x1024xf32>
    tpu.vector_store %arg5[%c8_16, %c1024_17], %10 {strides = array<i32>} : memref<12x2048xf32, #tpu.memory_space<vmem>>, vector<4x1024xf32>,
    %c0_18 = arith.constant 0 : index
    %c0_19 = arith.constant 0 : index
    %12 = vector.load %arg2[%c0_18, %c0_19] : memref<24x12xf32, #tpu.memory_space<vmem>>, vector<8x12xf32>
    %c0_20 = arith.constant 0 : index
    %c0_21 = arith.constant 0 : index
    %13 = vector.load %arg5[%c0_20, %c0_21] : memref<12x2048xf32, #tpu.memory_space<vmem>>, vector<12x2048xf32>
    %cst = arith.constant dense<0.000000e+00> : vector<8x2048xf32>
    %14 = tpu.matmul %12, %13, %cst {dimension_numbers = #tpu.dot_dimension_numbers<[1], [0], [0], [1], [0, 0, 1, 1], [], []>} : vector<8x12xf32>, vector<12x2048xf32>, vector<8x2048xf32> -> vector<8x2048xf32>
    %c0_22 = arith.constant 0 : index
    %c33 = arith.constant 33 : index
    %15 = vector.load %arg1[%c0_22, %c33] : memref<8x1152xf32, #tpu.memory_space<vmem>>, vector<4x1024xf32>
    %c0_23 = arith.constant 0 : index
    %c0_24 = arith.constant 0 : index
    %16 = vector.load %arg6[%c0_23, %c0_24] : memref<12x2048xf32, #tpu.memory_space<vmem>>, vector<4x1024xf32>
    tpu.vector_store %arg6[%c0_23, %c0_24], %15 {strides = array<i32>} : memref<12x2048xf32, #tpu.memory_space<vmem>>, vector<4x1024xf32>,
    %c4_25 = arith.constant 4 : index
    %c33_26 = arith.constant 33 : index
    %17 = vector.load %arg1[%c4_25, %c33_26] : memref<8x1152xf32, #tpu.memory_space<vmem>>, vector<4x1024xf32>
    %c0_27 = arith.constant 0 : index
    %c1024_28 = arith.constant 1024 : index
    %18 = vector.load %arg6[%c0_27, %c1024_28] : memref<12x2048xf32, #tpu.memory_space<vmem>>, vector<4x1024xf32>
    tpu.vector_store %arg6[%c0_27, %c1024_28], %17 {strides = array<i32>} : memref<12x2048xf32, #tpu.memory_space<vmem>>, vector<4x1024xf32>,
    %c0_29 = arith.constant 0 : index
    %c34 = arith.constant 34 : index
    %19 = vector.load %arg1[%c0_29, %c34] : memref<8x1152xf32, #tpu.memory_space<vmem>>, vector<4x1024xf32>
    %c4_30 = arith.constant 4 : index
    %c0_31 = arith.constant 0 : index
    %20 = vector.load %arg6[%c4_30, %c0_31] : memref<12x2048xf32, #tpu.memory_space<vmem>>, vector<4x1024xf32>
    tpu.vector_store %arg6[%c4_30, %c0_31], %19 {strides = array<i32>} : memref<12x2048xf32, #tpu.memory_space<vmem>>, vector<4x1024xf32>,
    %c4_32 = arith.constant 4 : index
    %c34_33 = arith.constant 34 : index
    %21 = vector.load %arg1[%c4_32, %c34_33] : memref<8x1152xf32, #tpu.memory_space<vmem>>, vector<4x1024xf32>
    %c4_34 = arith.constant 4 : index
    %c1024_35 = arith.constant 1024 : index
    %22 = vector.load %arg6[%c4_34, %c1024_35] : memref<12x2048xf32, #tpu.memory_space<vmem>>, vector<4x1024xf32>
    tpu.vector_store %arg6[%c4_34, %c1024_35], %21 {strides = array<i32>} : memref<12x2048xf32, #tpu.memory_space<vmem>>, vector<4x1024xf32>,
    %c0_36 = arith.constant 0 : index
    %c35 = arith.constant 35 : index
    %23 = vector.load %arg1[%c0_36, %c35] : memref<8x1152xf32, #tpu.memory_space<vmem>>, vector<4x1024xf32>
    %c8_37 = arith.constant 8 : index
    %c0_38 = arith.constant 0 : index
    %24 = vector.load %arg6[%c8_37, %c0_38] : memref<12x2048xf32, #tpu.memory_space<vmem>>, vector<4x1024xf32>
    tpu.vector_store %arg6[%c8_37, %c0_38], %23 {strides = array<i32>} : memref<12x2048xf32, #tpu.memory_space<vmem>>, vector<4x1024xf32>,
    %c4_39 = arith.constant 4 : index
    %c35_40 = arith.constant 35 : index
    %25 = vector.load %arg1[%c4_39, %c35_40] : memref<8x1152xf32, #tpu.memory_space<vmem>>, vector<4x1024xf32>
    %c8_41 = arith.constant 8 : index
    %c1024_42 = arith.constant 1024 : index
    %26 = vector.load %arg6[%c8_41, %c1024_42] : memref<12x2048xf32, #tpu.memory_space<vmem>>, vector<4x1024xf32>
    tpu.vector_store %arg6[%c8_41, %c1024_42], %25 {strides = array<i32>} : memref<12x2048xf32, #tpu.memory_space<vmem>>, vector<4x1024xf32>,
    %c8_43 = arith.constant 8 : index
    %c0_44 = arith.constant 0 : index
    %27 = vector.load %arg2[%c8_43, %c0_44] : memref<24x12xf32, #tpu.memory_space<vmem>>, vector<8x12xf32>
    %c0_45 = arith.constant 0 : index
    %c0_46 = arith.constant 0 : index
    %28 = vector.load %arg6[%c0_45, %c0_46] : memref<12x2048xf32, #tpu.memory_space<vmem>>, vector<12x2048xf32>
    %cst_47 = arith.constant dense<0.000000e+00> : vector<8x2048xf32>
    %29 = tpu.matmul %27, %28, %cst_47 {dimension_numbers = #tpu.dot_dimension_numbers<[1], [0], [0], [1], [0, 0, 1, 1], [], []>} : vector<8x12xf32>, vector<12x2048xf32>, vector<8x2048xf32> -> vector<8x2048xf32>
    %30 = arith.addf %14, %29 : vector<8x2048xf32>
    %c0_48 = arith.constant 0 : index
    %c66 = arith.constant 66 : index
    %31 = vector.load %arg1[%c0_48, %c66] : memref<8x1152xf32, #tpu.memory_space<vmem>>, vector<4x1024xf32>
    %c0_49 = arith.constant 0 : index
    %c0_50 = arith.constant 0 : index
    %32 = vector.load %arg7[%c0_49, %c0_50] : memref<12x2048xf32, #tpu.memory_space<vmem>>, vector<4x1024xf32>
    tpu.vector_store %arg7[%c0_49, %c0_50], %31 {strides = array<i32>} : memref<12x2048xf32, #tpu.memory_space<vmem>>, vector<4x1024xf32>,
    %c4_51 = arith.constant 4 : index
    %c66_52 = arith.constant 66 : index
    %33 = vector.load %arg1[%c4_51, %c66_52] : memref<8x1152xf32, #tpu.memory_space<vmem>>, vector<4x1024xf32>
    %c0_53 = arith.constant 0 : index
    %c1024_54 = arith.constant 1024 : index
    %34 = vector.load %arg7[%c0_53, %c1024_54] : memref<12x2048xf32, #tpu.memory_space<vmem>>, vector<4x1024xf32>
    tpu.vector_store %arg7[%c0_53, %c1024_54], %33 {strides = array<i32>} : memref<12x2048xf32, #tpu.memory_space<vmem>>, vector<4x1024xf32>,
    %c0_55 = arith.constant 0 : index
    %c67 = arith.constant 67 : index
    %35 = vector.load %arg1[%c0_55, %c67] : memref<8x1152xf32, #tpu.memory_space<vmem>>, vector<4x1024xf32>
    %c4_56 = arith.constant 4 : index
    %c0_57 = arith.constant 0 : index
    %36 = vector.load %arg7[%c4_56, %c0_57] : memref<12x2048xf32, #tpu.memory_space<vmem>>, vector<4x1024xf32>
    tpu.vector_store %arg7[%c4_56, %c0_57], %35 {strides = array<i32>} : memref<12x2048xf32, #tpu.memory_space<vmem>>, vector<4x1024xf32>,
    %c4_58 = arith.constant 4 : index
    %c67_59 = arith.constant 67 : index
    %37 = vector.load %arg1[%c4_58, %c67_59] : memref<8x1152xf32, #tpu.memory_space<vmem>>, vector<4x1024xf32>
    %c4_60 = arith.constant 4 : index
    %c1024_61 = arith.constant 1024 : index
    %38 = vector.load %arg7[%c4_60, %c1024_61] : memref<12x2048xf32, #tpu.memory_space<vmem>>, vector<4x1024xf32>
    tpu.vector_store %arg7[%c4_60, %c1024_61], %37 {strides = array<i32>} : memref<12x2048xf32, #tpu.memory_space<vmem>>, vector<4x1024xf32>,
    %c0_62 = arith.constant 0 : index
    %c68 = arith.constant 68 : index
    %39 = vector.load %arg1[%c0_62, %c68] : memref<8x1152xf32, #tpu.memory_space<vmem>>, vector<4x1024xf32>
    %c8_63 = arith.constant 8 : index
    %c0_64 = arith.constant 0 : index
    %40 = vector.load %arg7[%c8_63, %c0_64] : memref<12x2048xf32, #tpu.memory_space<vmem>>, vector<4x1024xf32>
    tpu.vector_store %arg7[%c8_63, %c0_64], %39 {strides = array<i32>} : memref<12x2048xf32, #tpu.memory_space<vmem>>, vector<4x1024xf32>,
    %c4_65 = arith.constant 4 : index
    %c68_66 = arith.constant 68 : index
    %41 = vector.load %arg1[%c4_65, %c68_66] : memref<8x1152xf32, #tpu.memory_space<vmem>>, vector<4x1024xf32>
    %c8_67 = arith.constant 8 : index
    %c1024_68 = arith.constant 1024 : index
    %42 = vector.load %arg7[%c8_67, %c1024_68] : memref<12x2048xf32, #tpu.memory_space<vmem>>, vector<4x1024xf32>
    tpu.vector_store %arg7[%c8_67, %c1024_68], %41 {strides = array<i32>} : memref<12x2048xf32, #tpu.memory_space<vmem>>, vector<4x1024xf32>,
    %c16 = arith.constant 16 : index
    %c0_69 = arith.constant 0 : index
    %43 = vector.load %arg2[%c16, %c0_69] : memref<24x12xf32, #tpu.memory_space<vmem>>, vector<8x12xf32>
    %c0_70 = arith.constant 0 : index
    %c0_71 = arith.constant 0 : index
    %44 = vector.load %arg7[%c0_70, %c0_71] : memref<12x2048xf32, #tpu.memory_space<vmem>>, vector<12x2048xf32>
    %cst_72 = arith.constant dense<0.000000e+00> : vector<8x2048xf32>
    %45 = tpu.matmul %43, %44, %cst_72 {dimension_numbers = #tpu.dot_dimension_numbers<[1], [0], [0], [1], [0, 0, 1, 1], [], []>} : vector<8x12xf32>, vector<12x2048xf32>, vector<8x2048xf32> -> vector<8x2048xf32>
    %46 = arith.addf %30, %45 : vector<8x2048xf32>
    %c0_73 = arith.constant 0 : index
    %c0_74 = arith.constant 0 : index
    %47 = vector.load %arg3[%c0_73, %c0_74] : memref<8x1xf32, #tpu.memory_space<vmem>>, vector<8x1xf32>
    %48 = vector.broadcast %47 : vector<8x1xf32> to vector<8x2048xf32>
    %49 = arith.addf %46, %48 : vector<8x2048xf32>
    %50 = vector.extract_strided_slice %49 {offsets = [0, 0], sizes = [8, 1024], strides = [1, 1]} : vector<8x2048xf32> to vector<8x1024xf32>
    %c0_75 = arith.constant 0 : index
    %c0_76 = arith.constant 0 : index
    %51 = vector.load %arg4[%c0_75, %c0_76] : memref<16x1024xf32, #tpu.memory_space<vmem>>, vector<8x1024xf32>
    tpu.vector_store %arg4[%c0_75, %c0_76], %50 {strides = array<i32>} : memref<16x1024xf32, #tpu.memory_space<vmem>>, vector<8x1024xf32>,
    %52 = vector.extract_strided_slice %49 {offsets = [0, 1024], sizes = [8, 1024], strides = [1, 1]} : vector<8x2048xf32> to vector<8x1024xf32>
    %c8_77 = arith.constant 8 : index
    %c0_78 = arith.constant 0 : index
    %53 = vector.load %arg4[%c8_77, %c0_78] : memref<16x1024xf32, #tpu.memory_space<vmem>>, vector<8x1024xf32>
    tpu.vector_store %arg4[%c8_77, %c0_78], %52 {strides = array<i32>} : memref<16x1024xf32, #tpu.memory_space<vmem>>, vector<8x1024xf32>,
    return
  }
  func.func @transform_0(%arg0: i32) -> (i32, i32) {
    %c0_i32 = arith.constant 0 : i32
    %c0_i32_0 = arith.constant 0 : i32
    %c0_i32_1 = arith.constant 0 : i32
    return %c0_i32, %c0_i32_0 : i32, i32
  }
  func.func @transform_1(%arg0: i32) -> (i32, i32) {
    %c0_i32 = arith.constant 0 : i32
    %c0_i32_0 = arith.constant 0 : i32
    %c0_i32_1 = arith.constant 0 : i32
    return %c0_i32, %c0_i32_0 : i32, i32
  }
  func.func @transform_2(%arg0: i32) -> (i32, i32) {
    %c0_i32 = arith.constant 0 : i32
    %c0_i32_0 = arith.constant 0 : i32
    %c0_i32_1 = arith.constant 0 : i32
    return %c0_i32, %c0_i32_0 : i32, i32
  }
  func.func @transform_3(%arg0: i32) -> (i32, i32) {
    %c0_i32 = arith.constant 0 : i32
    %c0_i32_0 = arith.constant 0 : i32
    %c0_i32_1 = arith.constant 0 : i32
    return %c0_i32, %c0_i32_0 : i32, i32
  }
}

</mosaic_0001>

<llo_original>
// kernel: tpu_custom_call.1
$region0: #{tpu_custom_call.1}
  #allocation0 [shape = 'u32[]', space=smem, size = 0x4, offset = 0x4, fixed_abs, tag = 'smem constant byte address 0x4 - core index']
  #allocation1 [shape = 'u32[144,128]{1,0:T(1,128)}', space=vmem, size = 0x12000, scoped, tag = 'internal scratch']
  #allocation2 [shape = 'f32[12,2048]{1,0:T(8,128)}', space=vmem, size = 0x20000, scoped, tag = 'scratch operand']
  #allocation3 [shape = 'f32[12,2048]{1,0:T(8,128)}', space=vmem, size = 0x20000, scoped, tag = 'scratch operand']
  #allocation4 [shape = 'f32[12,2048]{1,0:T(8,128)}', space=vmem, size = 0x20000, scoped, tag = 'scratch operand']
  %s0 = inlined_call_operand.hbm [shape: f32[8,1152], index: 0, kind: input, shape index: {}]
  %s1 = inlined_call_operand.vmem [shape: f32[24,12], index: 1, kind: input, shape index: {}]
  %s2 = inlined_call_operand.vmem [shape: f32[8,1], index: 2, kind: input, shape index: {}]
  %s3 = inlined_call_operand.hbm [shape: f32[16,1024], index: 3, kind: output, shape index: {}]
  %s4 = sld [smem:[#allocation0]]
  $region26: #{tpu_custom_call.1} parent=0
    _
  %s6 = ssub.s32 1, %s4
  %s7 = scalar_select 0, %s6, %s4
  $region1: #{tpu_custom_call.1} parent=0
    #allocation5 [shape = 'u8[36864]{0}', space=vmem, size = 0x9000, scoped, tag = 'input window, operand 0, single buffered']
    #allocation6 [shape = 's32[1]{0}', space=sflag, size = 0x4, scoped, tag = 'scoped memory for tpu_custom_call.1']
    #allocation7 [shape = 's32[1]{0}', space=sflag, size = 0x4, scoped, tag = 'scoped memory for tpu_custom_call.1']
    #allocation8 [shape = 'u8[65536]{0}', space=vmem, size = 0x10000, scoped, tag = 'output window, operand 0, single buffered']
    %8 = vsyncpa [#allocation6], 0
    %9 = vsyncpa [#allocation7], 0
    // Predicated region
    $region2: #{tpu_custom_call.1} parent=1 // pred_check
      _
    $region3: #{tpu_custom_call.1} parent=1 // pred_check_branch
      %11 = sbr.rel (0) target = $region5
    $region4: #{tpu_custom_call.1} parent=1 // pred_region
      %s13 = ssub.s32 1152, 1152
      %14 = vsyncadd [#allocation6], %s13
      %s16 = sshll.u32 [#allocation5], 4
      %s17 = int_to_ptr.vmem [resolvable:$true] %s16
      %19 = dma.hbm_to_vmem [thread:$0]  %s0, 1152, %s17, [#allocation6]
    $region5: #{tpu_custom_call.1} parent=1 // pred_fallthru
      _
    // Predicated region
    $region6: #{tpu_custom_call.1} parent=1 // pred_check
      _
    $region7: #{tpu_custom_call.1} parent=1 // pred_check_branch
      %21 = sbr.rel (0) target = $region9
    $region8: #{tpu_custom_call.1} parent=1 // pred_region
      _
    $region9: #{tpu_custom_call.1} parent=1 // pred_fallthru
      _
    // Predicated region
    $region10: #{tpu_custom_call.1} parent=1 // pred_check
      _
    $region11: #{tpu_custom_call.1} parent=1 // pred_check_branch
      %23 = sbr.rel (0) target = $region13
    $region12: #{tpu_custom_call.1} parent=1 // pred_region
      _
    $region13: #{tpu_custom_call.1} parent=1 // pred_fallthru
      _
    // Predicated region
    $region14: #{tpu_custom_call.1} parent=1 // pred_check
      _
    $region15: #{tpu_custom_call.1} parent=1 // pred_check_branch
      %25 = sbr.rel (0) target = $region17
    $region16: #{tpu_custom_call.1} parent=1 // pred_region
      %26 = dma.done [#allocation6], 1152
    $region17: #{tpu_custom_call.1} parent=1 // pred_fallthru
      _
    %v27 = vld [vmem:[#allocation5] sm:$0xf]
    %v28 = vld [vmem:[#allocation5 + $0x8] sm:$0xf]
    %v29 = vld [vmem:[#allocation5 + $0x10] sm:$0xf]
    %v30 = vld [vmem:[#allocation5 + $0x18] sm:$0xf]
    %v31 = vld [vmem:[#allocation5 + $0x20] sm:$0xf]
    %v32 = vld [vmem:[#allocation5 + $0x28] sm:$0xf]
    %v33 = vld [vmem:[#allocation5 + $0x30] sm:$0xf]
    %v34 = vld [vmem:[#allocation5 + $0x38] sm:$0xf]
    %35 = vst [vmem:[#allocation2] sm:$0xf] %v27
    %36 = vst [vmem:[#allocation2 + $0x8] sm:$0xf] %v28
    %37 = vst [vmem:[#allocation2 + $0x10] sm:$0xf] %v29
    %38 = vst [vmem:[#allocation2 + $0x18] sm:$0xf] %v30
    %39 = vst [vmem:[#allocation2 + $0x20] sm:$0xf] %v31
    %40 = vst [vmem:[#allocation2 + $0x28] sm:$0xf] %v32
    %41 = vst [vmem:[#allocation2 + $0x30] sm:$0xf] %v33
    %42 = vst [vmem:[#allocation2 + $0x38] sm:$0xf] %v34
    %v43 = vld [vmem:[#allocation5] sm:$0xf0]
    %v44 = vld [vmem:[#allocation5 + $0x8] sm:$0xf0]
    %v45 = vld [vmem:[#allocation5 + $0x10] sm:$0xf0]
    %v46 = vld [vmem:[#allocation5 + $0x18] sm:$0xf0]
    %v47 = vld [vmem:[#allocation5 + $0x20] sm:$0xf0]
    %v48 = vld [vmem:[#allocation5 + $0x28] sm:$0xf0]
    %v49 = vld [vmem:[#allocation5 + $0x30] sm:$0xf0]
    %v50 = vld [vmem:[#allocation5 + $0x38] sm:$0xf0]
    %v59 = vrot.slane %v43, 4
    %v60 = vrot.slane %v44, 4
    %v61 = vrot.slane %v45, 4
    %v62 = vrot.slane %v46, 4
    %v63 = vrot.slane %v47, 4
    %v64 = vrot.slane %v48, 4
    %v65 = vrot.slane %v49, 4
    %v66 = vrot.slane %v50, 4
    %75 = vst [vmem:[#allocation2 + $0x40] sm:$0xf] %v59
    %76 = vst [vmem:[#allocation2 + $0x48] sm:$0xf] %v60
    %77 = vst [vmem:[#allocation2 + $0x50] sm:$0xf] %v61
    %78 = vst [vmem:[#allocation2 + $0x58] sm:$0xf] %v62
    %79 = vst [vmem:[#allocation2 + $0x60] sm:$0xf] %v63
    %80 = vst [vmem:[#allocation2 + $0x68] sm:$0xf] %v64
    %81 = vst [vmem:[#allocation2 + $0x70] sm:$0xf] %v65
    %82 = vst [vmem:[#allocation2 + $0x78] sm:$0xf] %v66
    %v83 = vld [vmem:[#allocation5] sm:$0xf]
    %v84 = vld [vmem:[#allocation5 + $0x8] sm:$0xf]
    %v85 = vld [vmem:[#allocation5 + $0x10] sm:$0xf]
    %v86 = vld [vmem:[#allocation5 + $0x18] sm:$0xf]
    %v87 = vld [vmem:[#allocation5 + $0x20] sm:$0xf]
    %v88 = vld [vmem:[#allocation5 + $0x28] sm:$0xf]
    %v89 = vld [vmem:[#allocation5 + $0x30] sm:$0xf]
    %v90 = vld [vmem:[#allocation5 + $0x38] sm:$0xf]
    %v91 = vld [vmem:[#allocation5 + $0x40] sm:$0xf]
    %v101 = vrot.slane %v83, 4
    %v102 = vrot.slane %v84, 4
    %v103 = vrot.slane %v85, 4
    %v104 = vrot.slane %v86, 4
    %v105 = vrot.slane %v87, 4
    %v106 = vrot.slane %v88, 4
    %v107 = vrot.slane %v89, 4
    %v108 = vrot.slane %v90, 4
    %v109 = vrot.slane %v91, 4
    %110 = vrot.lane.b32.xlu0 %v101, 127
    %v111 = vpop.permute.xlu0 %110
    %112 = vrot.lane.b32.xlu0 %v102, 127
    %v113 = vpop.permute.xlu0 %112
    %114 = vrot.lane.b32.xlu0 %v103, 127
    %v115 = vpop.permute.xlu0 %114
    %116 = vrot.lane.b32.xlu0 %v104, 127
    %v117 = vpop.permute.xlu0 %116
    %118 = vrot.lane.b32.xlu0 %v105, 127
    %v119 = vpop.permute.xlu0 %118
    %120 = vrot.lane.b32.xlu0 %v106, 127
    %v121 = vpop.permute.xlu0 %120
    %122 = vrot.lane.b32.xlu0 %v107, 127
    %v123 = vpop.permute.xlu0 %122
    %124 = vrot.lane.b32.xlu0 %v108, 127
    %v125 = vpop.permute.xlu0 %124
    %126 = vrot.lane.b32.xlu0 %v109, 127
    %v127 = vpop.permute.xlu0 %126
    %vm128 = vcmask 1039360
    %v129 = vsel %vm128, %v111, %v113
    %v130 = vsel %vm128, %v113, %v115
    %v131 = vsel %vm128, %v115, %v117
    %v132 = vsel %vm128, %v117, %v119
    %v133 = vsel %vm128, %v119, %v121
    %v134 = vsel %vm128, %v121, %v123
    %v135 = vsel %vm128, %v123, %v125
    %v136 = vsel %vm128, %v125, %v127
    %145 = vst [vmem:[#allocation2] sm:$0xf0] %v129
    %146 = vst [vmem:[#allocation2 + $0x8] sm:$0xf0] %v130
    %147 = vst [vmem:[#allocation2 + $0x10] sm:$0xf0] %v131
    %148 = vst [vmem:[#allocation2 + $0x18] sm:$0xf0] %v132
    %149 = vst [vmem:[#allocation2 + $0x20] sm:$0xf0] %v133
    %150 = vst [vmem:[#allocation2 + $0x28] sm:$0xf0] %v134
    %151 = vst [vmem:[#allocation2 + $0x30] sm:$0xf0] %v135
    %152 = vst [vmem:[#allocation2 + $0x38] sm:$0xf0] %v136
    %v153 = vld [vmem:[#allocation5] sm:$0xf0]
    %v154 = vld [vmem:[#allocation5 + $0x8] sm:$0xf0]
    %v155 = vld [vmem:[#allocation5 + $0x10] sm:$0xf0]
    %v156 = vld [vmem:[#allocation5 + $0x18] sm:$0xf0]
    %v157 = vld [vmem:[#allocation5 + $0x20] sm:$0xf0]
    %v158 = vld [vmem:[#allocation5 + $0x28] sm:$0xf0]
    %v159 = vld [vmem:[#allocation5 + $0x30] sm:$0xf0]
    %v160 = vld [vmem:[#allocation5 + $0x38] sm:$0xf0]
    %v161 = vld [vmem:[#allocation5 + $0x40] sm:$0xf0]
    %171 = vrot.lane.b32.xlu0 %v153, 127
    %v172 = vpop.permute.xlu0 %171
    %173 = vrot.lane.b32.xlu0 %v154, 127
    %v174 = vpop.permute.xlu0 %173
    %175 = vrot.lane.b32.xlu0 %v155, 127
    %v176 = vpop.permute.xlu0 %175
    %177 = vrot.lane.b32.xlu0 %v156, 127
    %v178 = vpop.permute.xlu0 %177
    %179 = vrot.lane.b32.xlu0 %v157, 127
    %v180 = vpop.permute.xlu0 %179
    %181 = vrot.lane.b32.xlu0 %v158, 127
    %v182 = vpop.permute.xlu0 %181
    %183 = vrot.lane.b32.xlu0 %v159, 127
    %v184 = vpop.permute.xlu0 %183
    %185 = vrot.lane.b32.xlu0 %v160, 127
    %v186 = vpop.permute.xlu0 %185
    %187 = vrot.lane.b32.xlu0 %v161, 127
    %v188 = vpop.permute.xlu0 %187
    %v189 = vsel %vm128, %v172, %v174
    %v190 = vsel %vm128, %v174, %v176
    %v191 = vsel %vm128, %v176, %v178
    %v192 = vsel %vm128, %v178, %v180
    %v193 = vsel %vm128, %v180, %v182
    %v194 = vsel %vm128, %v182, %v184
    %v195 = vsel %vm128, %v184, %v186
    %v196 = vsel %vm128, %v186, %v188
    %205 = vst [vmem:[#allocation2 + $0x40] sm:$0xf0] %v189
    %206 = vst [vmem:[#allocation2 + $0x48] sm:$0xf0] %v190
    %207 = vst [vmem:[#allocation2 + $0x50] sm:$0xf0] %v191
    %208 = vst [vmem:[#allocation2 + $0x58] sm:$0xf0] %v192
    %209 = vst [vmem:[#allocation2 + $0x60] sm:$0xf0] %v193
    %210 = vst [vmem:[#allocation2 + $0x68] sm:$0xf0] %v194
    %211 = vst [vmem:[#allocation2 + $0x70] sm:$0xf0] %v195
    %212 = vst [vmem:[#allocation2 + $0x78] sm:$0xf0] %v196
    %v213 = vld [vmem:[#allocation5] sm:$0xf]
    %v214 = vld [vmem:[#allocation5 + $0x8] sm:$0xf]
    %v215 = vld [vmem:[#allocation5 + $0x10] sm:$0xf]
    %v216 = vld [vmem:[#allocation5 + $0x18] sm:$0xf]
    %v217 = vld [vmem:[#allocation5 + $0x20] sm:$0xf]
    %v218 = vld [vmem:[#allocation5 + $0x28] sm:$0xf]
    %v219 = vld [vmem:[#allocation5 + $0x30] sm:$0xf]
    %v220 = vld [vmem:[#allocation5 + $0x38] sm:$0xf]
    %v221 = vld [vmem:[#allocation5 + $0x40] sm:$0xf]
    %231 = vrot.lane.b32.xlu0 %v213, 126
    %v232 = vpop.permute.xlu0 %231
    %233 = vrot.lane.b32.xlu0 %v214, 126
    %v234 = vpop.permute.xlu0 %233
    %235 = vrot.lane.b32.xlu0 %v215, 126
    %v236 = vpop.permute.xlu0 %235
    %237 = vrot.lane.b32.xlu0 %v216, 126
    %v238 = vpop.permute.xlu0 %237
    %239 = vrot.lane.b32.xlu0 %v217, 126
    %v240 = vpop.permute.xlu0 %239
    %241 = vrot.lane.b32.xlu0 %v218, 126
    %v242 = vpop.permute.xlu0 %241
    %243 = vrot.lane.b32.xlu0 %v219, 126
    %v244 = vpop.permute.xlu0 %243
    %245 = vrot.lane.b32.xlu0 %v220, 126
    %v246 = vpop.permute.xlu0 %245
    %247 = vrot.lane.b32.xlu0 %v221, 126
    %v248 = vpop.permute.xlu0 %247
    %vm249 = vcmask 1031168
    %v250 = vsel %vm249, %v232, %v234
    %v251 = vsel %vm249, %v234, %v236
    %v252 = vsel %vm249, %v236, %v238
    %v253 = vsel %vm249, %v238, %v240
    %v254 = vsel %vm249, %v240, %v242
    %v255 = vsel %vm249, %v242, %v244
    %v256 = vsel %vm249, %v244, %v246
    %v257 = vsel %vm249, %v246, %v248
    %266 = vst [vmem:[#allocation2 + $0x80] sm:$0xf] %v250
    %267 = vst [vmem:[#allocation2 + $0x88] sm:$0xf] %v251
    %268 = vst [vmem:[#allocation2 + $0x90] sm:$0xf] %v252
    %269 = vst [vmem:[#allocation2 + $0x98] sm:$0xf] %v253
    %270 = vst [vmem:[#allocation2 + $0xa0] sm:$0xf] %v254
    %271 = vst [vmem:[#allocation2 + $0xa8] sm:$0xf] %v255
    %272 = vst [vmem:[#allocation2 + $0xb0] sm:$0xf] %v256
    %273 = vst [vmem:[#allocation2 + $0xb8] sm:$0xf] %v257
    %v274 = vld [vmem:[#allocation5] sm:$0xf0]
    %v275 = vld [vmem:[#allocation5 + $0x8] sm:$0xf0]
    %v276 = vld [vmem:[#allocation5 + $0x10] sm:$0xf0]
    %v277 = vld [vmem:[#allocation5 + $0x18] sm:$0xf0]
    %v278 = vld [vmem:[#allocation5 + $0x20] sm:$0xf0]
    %v279 = vld [vmem:[#allocation5 + $0x28] sm:$0xf0]
    %v280 = vld [vmem:[#allocation5 + $0x30] sm:$0xf0]
    %v281 = vld [vmem:[#allocation5 + $0x38] sm:$0xf0]
    %v282 = vld [vmem:[#allocation5 + $0x40] sm:$0xf0]
    %v292 = vrot.slane %v274, 4
    %v293 = vrot.slane %v275, 4
    %v294 = vrot.slane %v276, 4
    %v295 = vrot.slane %v277, 4
    %v296 = vrot.slane %v278, 4
    %v297 = vrot.slane %v279, 4
    %v298 = vrot.slane %v280, 4
    %v299 = vrot.slane %v281, 4
    %v300 = vrot.slane %v282, 4
    %301 = vrot.lane.b32.xlu0 %v292, 126
    %v302 = vpop.permute.xlu0 %301
    %303 = vrot.lane.b32.xlu0 %v293, 126
    %v304 = vpop.permute.xlu0 %303
    %305 = vrot.lane.b32.xlu0 %v294, 126
    %v306 = vpop.permute.xlu0 %305
    %307 = vrot.lane.b32.xlu0 %v295, 126
    %v308 = vpop.permute.xlu0 %307
    %309 = vrot.lane.b32.xlu0 %v296, 126
    %v310 = vpop.permute.xlu0 %309
    %311 = vrot.lane.b32.xlu0 %v297, 126
    %v312 = vpop.permute.xlu0 %311
    %313 = vrot.lane.b32.xlu0 %v298, 126
    %v314 = vpop.permute.xlu0 %313
    %315 = vrot.lane.b32.xlu0 %v299, 126
    %v316 = vpop.permute.xlu0 %315
    %317 = vrot.lane.b32.xlu0 %v300, 126
    %v318 = vpop.permute.xlu0 %317
    %v319 = vsel %vm249, %v302, %v304
    %v320 = vsel %vm249, %v304, %v306
    %v321 = vsel %vm249, %v306, %v308
    %v322 = vsel %vm249, %v308, %v310
    %v323 = vsel %vm249, %v310, %v312
    %v324 = vsel %vm249, %v312, %v314
    %v325 = vsel %vm249, %v314, %v316
    %v326 = vsel %vm249, %v316, %v318
    %335 = vst [vmem:[#allocation2 + $0xc0] sm:$0xf] %v319
    %336 = vst [vmem:[#allocation2 + $0xc8] sm:$0xf] %v320
    %337 = vst [vmem:[#allocation2 + $0xd0] sm:$0xf] %v321
    %338 = vst [vmem:[#allocation2 + $0xd8] sm:$0xf] %v322
    %339 = vst [vmem:[#allocation2 + $0xe0] sm:$0xf] %v323
    %340 = vst [vmem:[#allocation2 + $0xe8] sm:$0xf] %v324
    %341 = vst [vmem:[#allocation2 + $0xf0] sm:$0xf] %v325
    %342 = vst [vmem:[#allocation2 + $0xf8] sm:$0xf] %v326
    %v343 = vld [vmem:[%s1] sm:$0xff]
    %v344 = vld [vmem:[#allocation2] sm:$0xff]
    %v345 = vld [vmem:[#allocation2 + $0x8] sm:$0xff]
    %v346 = vld [vmem:[#allocation2 + $0x10] sm:$0xff]
    %v347 = vld [vmem:[#allocation2 + $0x18] sm:$0xff]
    %v348 = vld [vmem:[#allocation2 + $0x20] sm:$0xff]
    %v349 = vld [vmem:[#allocation2 + $0x28] sm:$0xff]
    %v350 = vld [vmem:[#allocation2 + $0x30] sm:$0xff]
    %v351 = vld [vmem:[#allocation2 + $0x38] sm:$0xff]
    %v352 = vld [vmem:[#allocation2 + $0x40] sm:$0xff]
    %v353 = vld [vmem:[#allocation2 + $0x48] sm:$0xff]
    %v354 = vld [vmem:[#allocation2 + $0x50] sm:$0xff]
    %v355 = vld [vmem:[#allocation2 + $0x58] sm:$0xff]
    %v356 = vld [vmem:[#allocation2 + $0x60] sm:$0xff]
    %v357 = vld [vmem:[#allocation2 + $0x68] sm:$0xff]
    %v358 = vld [vmem:[#allocation2 + $0x70] sm:$0xff]
    %v359 = vld [vmem:[#allocation2 + $0x78] sm:$0xff]
    %v360 = vld [vmem:[#allocation2 + $0x80] sm:$0xf]
    %v361 = vld [vmem:[#allocation2 + $0x88] sm:$0xf]
    %v362 = vld [vmem:[#allocation2 + $0x90] sm:$0xf]
    %v363 = vld [vmem:[#allocation2 + $0x98] sm:$0xf]
    %v364 = vld [vmem:[#allocation2 + $0xa0] sm:$0xf]
    %v365 = vld [vmem:[#allocation2 + $0xa8] sm:$0xf]
    %v366 = vld [vmem:[#allocation2 + $0xb0] sm:$0xf]
    %v367 = vld [vmem:[#allocation2 + $0xb8] sm:$0xf]
    %v368 = vld [vmem:[#allocation2 + $0xc0] sm:$0xf]
    %v369 = vld [vmem:[#allocation2 + $0xc8] sm:$0xf]
    %v370 = vld [vmem:[#allocation2 + $0xd0] sm:$0xf]
    %v371 = vld [vmem:[#allocation2 + $0xd8] sm:$0xf]
    %v372 = vld [vmem:[#allocation2 + $0xe0] sm:$0xf]
    %v373 = vld [vmem:[#allocation2 + $0xe8] sm:$0xf]
    %v374 = vld [vmem:[#allocation2 + $0xf0] sm:$0xf]
    %v375 = vld [vmem:[#allocation2 + $0xf8] sm:$0xf]
    %v376 = vld [vmem:[#allocation5] sm:$0xf]
    %v377 = vld [vmem:[#allocation5 + $0x8] sm:$0xf]
    %v378 = vld [vmem:[#allocation5 + $0x10] sm:$0xf]
    %v379 = vld [vmem:[#allocation5 + $0x18] sm:$0xf]
    %v380 = vld [vmem:[#allocation5 + $0x20] sm:$0xf]
    %v381 = vld [vmem:[#allocation5 + $0x28] sm:$0xf]
    %v382 = vld [vmem:[#allocation5 + $0x30] sm:$0xf]
    %v383 = vld [vmem:[#allocation5 + $0x38] sm:$0xf]
    %v384 = vld [vmem:[#allocation5 + $0x40] sm:$0xf]
    %394 = vrot.lane.b32.xlu0 %v376, 95
    %v395 = vpop.permute.xlu0 %394
    %396 = vrot.lane.b32.xlu0 %v377, 95
    %v397 = vpop.permute.xlu0 %396
    %398 = vrot.lane.b32.xlu0 %v378, 95
    %v399 = vpop.permute.xlu0 %398
    %400 = vrot.lane.b32.xlu0 %v379, 95
    %v401 = vpop.permute.xlu0 %400
    %402 = vrot.lane.b32.xlu0 %v380, 95
    %v403 = vpop.permute.xlu0 %402
    %404 = vrot.lane.b32.xlu0 %v381, 95
    %v405 = vpop.permute.xlu0 %404
    %406 = vrot.lane.b32.xlu0 %v382, 95
    %v407 = vpop.permute.xlu0 %406
    %408 = vrot.lane.b32.xlu0 %v383, 95
    %v409 = vpop.permute.xlu0 %408
    %410 = vrot.lane.b32.xlu0 %v384, 95
    %v411 = vpop.permute.xlu0 %410
    %vm412 = vcmask 777216
    %v413 = vsel %vm412, %v395, %v397
    %v414 = vsel %vm412, %v397, %v399
    %v415 = vsel %vm412, %v399, %v401
    %v416 = vsel %vm412, %v401, %v403
    %v417 = vsel %vm412, %v403, %v405
    %v418 = vsel %vm412, %v405, %v407
    %v419 = vsel %vm412, %v407, %v409
    %v420 = vsel %vm412, %v409, %v411
    %429 = vst [vmem:[#allocation3] sm:$0xf] %v413
    %430 = vst [vmem:[#allocation3 + $0x8] sm:$0xf] %v414
    %431 = vst [vmem:[#allocation3 + $0x10] sm:$0xf] %v415
    %432 = vst [vmem:[#allocation3 + $0x18] sm:$0xf] %v416
    %433 = vst [vmem:[#allocation3 + $0x20] sm:$0xf] %v417
    %434 = vst [vmem:[#allocation3 + $0x28] sm:$0xf] %v418
    %435 = vst [vmem:[#allocation3 + $0x30] sm:$0xf] %v419
    %436 = vst [vmem:[#allocation3 + $0x38] sm:$0xf] %v420
    %v437 = vld [vmem:[#allocation5] sm:$0xf0]
    %v438 = vld [vmem:[#allocation5 + $0x8] sm:$0xf0]
    %v439 = vld [vmem:[#allocation5 + $0x10] sm:$0xf0]
    %v440 = vld [vmem:[#allocation5 + $0x18] sm:$0xf0]
    %v441 = vld [vmem:[#allocation5 + $0x20] sm:$0xf0]
    %v442 = vld [vmem:[#allocation5 + $0x28] sm:$0xf0]
    %v443 = vld [vmem:[#allocation5 + $0x30] sm:$0xf0]
    %v444 = vld [vmem:[#allocation5 + $0x38] sm:$0xf0]
    %v445 = vld [vmem:[#allocation5 + $0x40] sm:$0xf0]
    %v455 = vrot.slane %v437, 4
    %v456 = vrot.slane %v438, 4
    %v457 = vrot.slane %v439, 4
    %v458 = vrot.slane %v440, 4
    %v459 = vrot.slane %v441, 4
    %v460 = vrot.slane %v442, 4
    %v461 = vrot.slane %v443, 4
    %v462 = vrot.slane %v444, 4
    %v463 = vrot.slane %v445, 4
    %464 = vrot.lane.b32.xlu0 %v455, 95
    %v465 = vpop.permute.xlu0 %464
    %466 = vrot.lane.b32.xlu0 %v456, 95
    %v467 = vpop.permute.xlu0 %466
    %468 = vrot.lane.b32.xlu0 %v457, 95
    %v469 = vpop.permute.xlu0 %468
    %470 = vrot.lane.b32.xlu0 %v458, 95
    %v471 = vpop.permute.xlu0 %470
    %472 = vrot.lane.b32.xlu0 %v459, 95
    %v473 = vpop.permute.xlu0 %472
    %474 = vrot.lane.b32.xlu0 %v460, 95
    %v475 = vpop.permute.xlu0 %474
    %476 = vrot.lane.b32.xlu0 %v461, 95
    %v477 = vpop.permute.xlu0 %476
    %478 = vrot.lane.b32.xlu0 %v462, 95
    %v479 = vpop.permute.xlu0 %478
    %480 = vrot.lane.b32.xlu0 %v463, 95
    %v481 = vpop.permute.xlu0 %480
    %v482 = vsel %vm412, %v465, %v467
    %v483 = vsel %vm412, %v467, %v469
    %v484 = vsel %vm412, %v469, %v471
    %v485 = vsel %vm412, %v471, %v473
    %v486 = vsel %vm412, %v473, %v475
    %v487 = vsel %vm412, %v475, %v477
    %v488 = vsel %vm412, %v477, %v479
    %v489 = vsel %vm412, %v479, %v481
    %498 = vst [vmem:[#allocation3 + $0x40] sm:$0xf] %v482
    %499 = vst [vmem:[#allocation3 + $0x48] sm:$0xf] %v483
    %500 = vst [vmem:[#allocation3 + $0x50] sm:$0xf] %v484
    %501 = vst [vmem:[#allocation3 + $0x58] sm:$0xf] %v485
    %502 = vst [vmem:[#allocation3 + $0x60] sm:$0xf] %v486
    %503 = vst [vmem:[#allocation3 + $0x68] sm:$0xf] %v487
    %504 = vst [vmem:[#allocation3 + $0x70] sm:$0xf] %v488
    %505 = vst [vmem:[#allocation3 + $0x78] sm:$0xf] %v489
    %v506 = vld [vmem:[#allocation5] sm:$0xf]
    %v507 = vld [vmem:[#allocation5 + $0x8] sm:$0xf]
    %v508 = vld [vmem:[#allocation5 + $0x10] sm:$0xf]
    %v509 = vld [vmem:[#allocation5 + $0x18] sm:$0xf]
    %v510 = vld [vmem:[#allocation5 + $0x20] sm:$0xf]
    %v511 = vld [vmem:[#allocation5 + $0x28] sm:$0xf]
    %v512 = vld [vmem:[#allocation5 + $0x30] sm:$0xf]
    %v513 = vld [vmem:[#allocation5 + $0x38] sm:$0xf]
    %v514 = vld [vmem:[#allocation5 + $0x40] sm:$0xf]
    %v524 = vrot.slane %v506, 4
    %v525 = vrot.slane %v507, 4
    %v526 = vrot.slane %v508, 4
    %v527 = vrot.slane %v509, 4
    %v528 = vrot.slane %v510, 4
    %v529 = vrot.slane %v511, 4
    %v530 = vrot.slane %v512, 4
    %v531 = vrot.slane %v513, 4
    %v532 = vrot.slane %v514, 4
    %533 = vrot.lane.b32.xlu0 %v524, 94
    %v534 = vpop.permute.xlu0 %533
    %535 = vrot.lane.b32.xlu0 %v525, 94
    %v536 = vpop.permute.xlu0 %535
    %537 = vrot.lane.b32.xlu0 %v526, 94
    %v538 = vpop.permute.xlu0 %537
    %539 = vrot.lane.b32.xlu0 %v527, 94
    %v540 = vpop.permute.xlu0 %539
    %541 = vrot.lane.b32.xlu0 %v528, 94
    %v542 = vpop.permute.xlu0 %541
    %543 = vrot.lane.b32.xlu0 %v529, 94
    %v544 = vpop.permute.xlu0 %543
    %545 = vrot.lane.b32.xlu0 %v530, 94
    %v546 = vpop.permute.xlu0 %545
    %547 = vrot.lane.b32.xlu0 %v531, 94
    %v548 = vpop.permute.xlu0 %547
    %549 = vrot.lane.b32.xlu0 %v532, 94
    %v550 = vpop.permute.xlu0 %549
    %vm551 = vcmask 769024
    %v552 = vsel %vm551, %v534, %v536
    %v553 = vsel %vm551, %v536, %v538
    %v554 = vsel %vm551, %v538, %v540
    %v555 = vsel %vm551, %v540, %v542
    %v556 = vsel %vm551, %v542, %v544
    %v557 = vsel %vm551, %v544, %v546
    %v558 = vsel %vm551, %v546, %v548
    %v559 = vsel %vm551, %v548, %v550
    %568 = vst [vmem:[#allocation3] sm:$0xf0] %v552
    %569 = vst [vmem:[#allocation3 + $0x8] sm:$0xf0] %v553
    %570 = vst [vmem:[#allocation3 + $0x10] sm:$0xf0] %v554
    %571 = vst [vmem:[#allocation3 + $0x18] sm:$0xf0] %v555
    %572 = vst [vmem:[#allocation3 + $0x20] sm:$0xf0] %v556
    %573 = vst [vmem:[#allocation3 + $0x28] sm:$0xf0] %v557
    %574 = vst [vmem:[#allocation3 + $0x30] sm:$0xf0] %v558
    %575 = vst [vmem:[#allocation3 + $0x38] sm:$0xf0] %v559
    %v576 = vld [vmem:[#allocation5] sm:$0xf0]
    %v577 = vld [vmem:[#allocation5 + $0x8] sm:$0xf0]
    %v578 = vld [vmem:[#allocation5 + $0x10] sm:$0xf0]
    %v579 = vld [vmem:[#allocation5 + $0x18] sm:$0xf0]
    %v580 = vld [vmem:[#allocation5 + $0x20] sm:$0xf0]
    %v581 = vld [vmem:[#allocation5 + $0x28] sm:$0xf0]
    %v582 = vld [vmem:[#allocation5 + $0x30] sm:$0xf0]
    %v583 = vld [vmem:[#allocation5 + $0x38] sm:$0xf0]
    %v584 = vld [vmem:[#allocation5 + $0x40] sm:$0xf0]
    %594 = vrot.lane.b32.xlu0 %v576, 94
    %v595 = vpop.permute.xlu0 %594
    %596 = vrot.lane.b32.xlu0 %v577, 94
    %v597 = vpop.permute.xlu0 %596
    %598 = vrot.lane.b32.xlu0 %v578, 94
    %v599 = vpop.permute.xlu0 %598
    %600 = vrot.lane.b32.xlu0 %v579, 94
    %v601 = vpop.permute.xlu0 %600
    %602 = vrot.lane.b32.xlu0 %v580, 94
    %v603 = vpop.permute.xlu0 %602
    %604 = vrot.lane.b32.xlu0 %v581, 94
    %v605 = vpop.permute.xlu0 %604
    %606 = vrot.lane.b32.xlu0 %v582, 94
    %v607 = vpop.permute.xlu0 %606
    %608 = vrot.lane.b32.xlu0 %v583, 94
    %v609 = vpop.permute.xlu0 %608
    %610 = vrot.lane.b32.xlu0 %v584, 94
    %v611 = vpop.permute.xlu0 %610
    %v612 = vsel %vm551, %v595, %v597
    %v613 = vsel %vm551, %v597, %v599
    %v614 = vsel %vm551, %v599, %v601
    %v615 = vsel %vm551, %v601, %v603
    %v616 = vsel %vm551, %v603, %v605
    %v617 = vsel %vm551, %v605, %v607
    %v618 = vsel %vm551, %v607, %v609
    %v619 = vsel %vm551, %v609, %v611
    %628 = vst [vmem:[#allocation3 + $0x40] sm:$0xf0] %v612
    %629 = vst [vmem:[#allocation3 + $0x48] sm:$0xf0] %v613
    %630 = vst [vmem:[#allocation3 + $0x50] sm:$0xf0] %v614
    %631 = vst [vmem:[#allocation3 + $0x58] sm:$0xf0] %v615
    %632 = vst [vmem:[#allocation3 + $0x60] sm:$0xf0] %v616
    %633 = vst [vmem:[#allocation3 + $0x68] sm:$0xf0] %v617
    %634 = vst [vmem:[#allocation3 + $0x70] sm:$0xf0] %v618
    %635 = vst [vmem:[#allocation3 + $0x78] sm:$0xf0] %v619
    %v636 = vld [vmem:[#allocation5] sm:$0xf]
    %v637 = vld [vmem:[#allocation5 + $0x8] sm:$0xf]
    %v638 = vld [vmem:[#allocation5 + $0x10] sm:$0xf]
    %v639 = vld [vmem:[#allocation5 + $0x18] sm:$0xf]
    %v640 = vld [vmem:[#allocation5 + $0x20] sm:$0xf]
    %v641 = vld [vmem:[#allocation5 + $0x28] sm:$0xf]
    %v642 = vld [vmem:[#allocation5 + $0x30] sm:$0xf]
    %v643 = vld [vmem:[#allocation5 + $0x38] sm:$0xf]
    %v644 = vld [vmem:[#allocation5 + $0x40] sm:$0xf]
    %654 = vrot.lane.b32.xlu0 %v636, 93
    %v655 = vpop.permute.xlu0 %654
    %656 = vrot.lane.b32.xlu0 %v637, 93
    %v657 = vpop.permute.xlu0 %656
    %658 = vrot.lane.b32.xlu0 %v638, 93
    %v659 = vpop.permute.xlu0 %658
    %660 = vrot.lane.b32.xlu0 %v639, 93
    %v661 = vpop.permute.xlu0 %660
    %662 = vrot.lane.b32.xlu0 %v640, 93
    %v663 = vpop.permute.xlu0 %662
    %664 = vrot.lane.b32.xlu0 %v641, 93
    %v665 = vpop.permute.xlu0 %664
    %666 = vrot.lane.b32.xlu0 %v642, 93
    %v667 = vpop.permute.xlu0 %666
    %668 = vrot.lane.b32.xlu0 %v643, 93
    %v669 = vpop.permute.xlu0 %668
    %670 = vrot.lane.b32.xlu0 %v644, 93
    %v671 = vpop.permute.xlu0 %670
    %vm672 = vcmask 760832
    %v673 = vsel %vm672, %v655, %v657
    %v674 = vsel %vm672, %v657, %v659
    %v675 = vsel %vm672, %v659, %v661
    %v676 = vsel %vm672, %v661, %v663
    %v677 = vsel %vm672, %v663, %v665
    %v678 = vsel %vm672, %v665, %v667
    %v679 = vsel %vm672, %v667, %v669
    %v680 = vsel %vm672, %v669, %v671
    %689 = vst [vmem:[#allocation3 + $0x80] sm:$0xf] %v673
    %690 = vst [vmem:[#allocation3 + $0x88] sm:$0xf] %v674
    %691 = vst [vmem:[#allocation3 + $0x90] sm:$0xf] %v675
    %692 = vst [vmem:[#allocation3 + $0x98] sm:$0xf] %v676
    %693 = vst [vmem:[#allocation3 + $0xa0] sm:$0xf] %v677
    %694 = vst [vmem:[#allocation3 + $0xa8] sm:$0xf] %v678
    %695 = vst [vmem:[#allocation3 + $0xb0] sm:$0xf] %v679
    %696 = vst [vmem:[#allocation3 + $0xb8] sm:$0xf] %v680
    %v697 = vld [vmem:[#allocation5] sm:$0xf0]
    %v698 = vld [vmem:[#allocation5 + $0x8] sm:$0xf0]
    %v699 = vld [vmem:[#allocation5 + $0x10] sm:$0xf0]
    %v700 = vld [vmem:[#allocation5 + $0x18] sm:$0xf0]
    %v701 = vld [vmem:[#allocation5 + $0x20] sm:$0xf0]
    %v702 = vld [vmem:[#allocation5 + $0x28] sm:$0xf0]
    %v703 = vld [vmem:[#allocation5 + $0x30] sm:$0xf0]
    %v704 = vld [vmem:[#allocation5 + $0x38] sm:$0xf0]
    %v705 = vld [vmem:[#allocation5 + $0x40] sm:$0xf0]
    %v715 = vrot.slane %v697, 4
    %v716 = vrot.slane %v698, 4
    %v717 = vrot.slane %v699, 4
    %v718 = vrot.slane %v700, 4
    %v719 = vrot.slane %v701, 4
    %v720 = vrot.slane %v702, 4
    %v721 = vrot.slane %v703, 4
    %v722 = vrot.slane %v704, 4
    %v723 = vrot.slane %v705, 4
    %724 = vrot.lane.b32.xlu0 %v715, 93
    %v725 = vpop.permute.xlu0 %724
    %726 = vrot.lane.b32.xlu0 %v716, 93
    %v727 = vpop.permute.xlu0 %726
    %728 = vrot.lane.b32.xlu0 %v717, 93
    %v729 = vpop.permute.xlu0 %728
    %730 = vrot.lane.b32.xlu0 %v718, 93
    %v731 = vpop.permute.xlu0 %730
    %732 = vrot.lane.b32.xlu0 %v719, 93
    %v733 = vpop.permute.xlu0 %732
    %734 = vrot.lane.b32.xlu0 %v720, 93
    %v735 = vpop.permute.xlu0 %734
    %736 = vrot.lane.b32.xlu0 %v721, 93
    %v737 = vpop.permute.xlu0 %736
    %738 = vrot.lane.b32.xlu0 %v722, 93
    %v739 = vpop.permute.xlu0 %738
    %740 = vrot.lane.b32.xlu0 %v723, 93
    %v741 = vpop.permute.xlu0 %740
    %v742 = vsel %vm672, %v725, %v727
    %v743 = vsel %vm672, %v727, %v729
    %v744 = vsel %vm672, %v729, %v731
    %v745 = vsel %vm672, %v731, %v733
    %v746 = vsel %vm672, %v733, %v735
    %v747 = vsel %vm672, %v735, %v737
    %v748 = vsel %vm672, %v737, %v739
    %v749 = vsel %vm672, %v739, %v741
    %758 = vst [vmem:[#allocation3 + $0xc0] sm:$0xf] %v742
    %759 = vst [vmem:[#allocation3 + $0xc8] sm:$0xf] %v743
    %760 = vst [vmem:[#allocation3 + $0xd0] sm:$0xf] %v744
    %761 = vst [vmem:[#allocation3 + $0xd8] sm:$0xf] %v745
    %762 = vst [vmem:[#allocation3 + $0xe0] sm:$0xf] %v746
    %763 = vst [vmem:[#allocation3 + $0xe8] sm:$0xf] %v747
    %764 = vst [vmem:[#allocation3 + $0xf0] sm:$0xf] %v748
    %765 = vst [vmem:[#allocation3 + $0xf8] sm:$0xf] %v749
    %v766 = vld [vmem:[%s1 + $0x8] sm:$0xff]
    %v767 = vld [vmem:[#allocation3] sm:$0xff]
    %v768 = vld [vmem:[#allocation3 + $0x8] sm:$0xff]
    %v769 = vld [vmem:[#allocation3 + $0x10] sm:$0xff]
    %v770 = vld [vmem:[#allocation3 + $0x18] sm:$0xff]
    %v771 = vld [vmem:[#allocation3 + $0x20] sm:$0xff]
    %v772 = vld [vmem:[#allocation3 + $0x28] sm:$0xff]
    %v773 = vld [vmem:[#allocation3 + $0x30] sm:$0xff]
    %v774 = vld [vmem:[#allocation3 + $0x38] sm:$0xff]
    %v775 = vld [vmem:[#allocation3 + $0x40] sm:$0xff]
    %v776 = vld [vmem:[#allocation3 + $0x48] sm:$0xff]
    %v777 = vld [vmem:[#allocation3 + $0x50] sm:$0xff]
    %v778 = vld [vmem:[#allocation3 + $0x58] sm:$0xff]
    %v779 = vld [vmem:[#allocation3 + $0x60] sm:$0xff]
    %v780 = vld [vmem:[#allocation3 + $0x68] sm:$0xff]
    %v781 = vld [vmem:[#allocation3 + $0x70] sm:$0xff]
    %v782 = vld [vmem:[#allocation3 + $0x78] sm:$0xff]
    %v783 = vld [vmem:[#allocation3 + $0x80] sm:$0xf]
    %v784 = vld [vmem:[#allocation3 + $0x88] sm:$0xf]
    %v785 = vld [vmem:[#allocation3 + $0x90] sm:$0xf]
    %v786 = vld [vmem:[#allocation3 + $0x98] sm:$0xf]
    %v787 = vld [vmem:[#allocation3 + $0xa0] sm:$0xf]
    %v788 = vld [vmem:[#allocation3 + $0xa8] sm:$0xf]
    %v789 = vld [vmem:[#allocation3 + $0xb0] sm:$0xf]
    %v790 = vld [vmem:[#allocation3 + $0xb8] sm:$0xf]
    %v791 = vld [vmem:[#allocation3 + $0xc0] sm:$0xf]
    %v792 = vld [vmem:[#allocation3 + $0xc8] sm:$0xf]
    %v793 = vld [vmem:[#allocation3 + $0xd0] sm:$0xf]
    %v794 = vld [vmem:[#allocation3 + $0xd8] sm:$0xf]
    %v795 = vld [vmem:[#allocation3 + $0xe0] sm:$0xf]
    %v796 = vld [vmem:[#allocation3 + $0xe8] sm:$0xf]
    %v797 = vld [vmem:[#allocation3 + $0xf0] sm:$0xf]
    %v798 = vld [vmem:[#allocation3 + $0xf8] sm:$0xf]
    %vm799 = vcmask 97280
    %v801 = vsel %vm799, %v766, 0
    %vm803 = vcmask 1043456
    %v805 = vsel %vm803, %v783, 0
    %v808 = vsel %vm803, %v784, 0
    %v811 = vsel %vm803, %v785, 0
    %v814 = vsel %vm803, %v786, 0
    %v817 = vsel %vm803, %v787, 0
    %v820 = vsel %vm803, %v788, 0
    %v823 = vsel %vm803, %v789, 0
    %v826 = vsel %vm803, %v790, 0
    %v829 = vsel %vm803, %v791, 0
    %v832 = vsel %vm803, %v792, 0
    %v835 = vsel %vm803, %v793, 0
    %v838 = vsel %vm803, %v794, 0
    %v841 = vsel %vm803, %v795, 0
    %v844 = vsel %vm803, %v796, 0
    %v847 = vsel %vm803, %v797, 0
    %v850 = vsel %vm803, %v798, 0
    %852 = vmatprep.subr.mxu0 %v768
    %853 = vmatpush1.msra.mxu0 %v767
    %854 = vmatprep.subr.mxu0 %v808
    %855 = vmatpush1.msra.mxu0 %v805
    %856 = vmatprep.subr.mxu0 0.0
    %857 = vmatpush1.msra.mxu0 0.0
    %858 = vmatprep.subr.mxu0 0.0
    %859 = vmatpush1.msra.mxu0 0.0
    %860 = vmatprep.subr.mxu0 0.0
    %861 = vmatpush1.msra.mxu0 0.0
    %862 = vmatprep.subr.mxu0 0.0
    %863 = vmatpush1.msra.mxu0 0.0
    %864 = vmatprep.subr.mxu0 0.0
    %865 = vmatpush1.msra.mxu0 0.0
    %866 = vmatprep.subr.mxu0 0.0
    %867 = vmatpush1.msra.mxu0 0.0
    %868 = vmatprep.subr.mxu0 0.0
    %869 = vmatpush1.msra.mxu0 0.0
    %870 = vmatprep.subr.mxu0 0.0
    %871 = vmatpush1.msra.mxu0 0.0
    %872 = vmatprep.subr.mxu0 0.0
    %873 = vmatpush1.msra.mxu0 0.0
    %874 = vmatprep.subr.mxu0 0.0
    %875 = vmatpush1.msra.mxu0 0.0
    %876 = vmatprep.subr.mxu0 0.0
    %877 = vmatpush1.msra.mxu0 0.0
    %878 = vmatprep.subr.mxu0 0.0
    %879 = vmatpush1.msra.mxu0 0.0
    %880 = vmatprep.subr.mxu0 0.0
    %881 = vmatpush1.msra.mxu0 0.0
    %882 = vmatprep.subr.mxu0 0.0
    %883 = vmatpush1.msra.mxu0 0.0
    %884 = vmatprep.subr.mxu0 0.0
    %885 = vmatpush1.msra.mxu0 0.0
    %886 = vmatprep.subr.mxu0 0.0
    %887 = vmatpush1.msra.mxu0 0.0
    %888 = vmatprep.subr.mxu0 0.0
    %889 = vmatpush1.msra.mxu0 0.0
    %890 = vmatprep.subr.mxu0 0.0
    %891 = vmatpush1.msra.mxu0 0.0
    %892 = vmatprep.subr.mxu0 0.0
    %893 = vmatpush1.msra.mxu0 0.0
    %894 = vmatprep.subr.mxu0 0.0
    %895 = vmatpush1.msra.mxu0 0.0
    %896 = vmatprep.subr.mxu0 0.0
    %897 = vmatpush1.msra.mxu0 0.0
    %898 = vmatprep.subr.mxu0 0.0
    %899 = vmatpush1.msra.mxu0 0.0
    %900 = vmatprep.subr.mxu0 0.0
    %901 = vmatpush1.msra.mxu0 0.0
    %902 = vmatprep.subr.mxu0 0.0
    %903 = vmatpush1.msra.mxu0 0.0
    %904 = vmatprep.subr.mxu0 0.0
    %905 = vmatpush1.msra.mxu0 0.0
    %906 = vmatprep.subr.mxu0 0.0
    %907 = vmatpush1.msra.mxu0 0.0
    %908 = vmatprep.subr.mxu0 0.0
    %909 = vmatpush1.msra.mxu0 0.0
    %910 = vmatprep.subr.mxu0 0.0
    %911 = vmatpush1.msra.mxu0 0.0
    %912 = vmatprep.subr.mxu0 0.0
    %913 = vmatpush1.msra.mxu0 0.0
    %914 = vmatprep.subr.mxu0 0.0
    %915 = vmatpush1.msra.mxu0 0.0
    %916 = vmatprep.mubr.f32.mxu0 0.0
    %917 = vmatmul.mubr.f32.gmra.mrb[0].mxu0 %v801
    %v918 = vpop.f32.mrb[0].mxu0
    %v919 = vadd.f32 0.0, %v918
    %v920 = vpop.f32.mrb[0].mxu0
    %v921 = vadd.f32 0.0, %v920
    %922 = vdwg.mxu0
    %923 = vmatprep.subr.mxu0 %v770
    %924 = vmatpush1.msra.mxu0 %v769
    %925 = vmatprep.subr.mxu0 %v814
    %926 = vmatpush1.msra.mxu0 %v811
    %927 = vmatprep.subr.mxu0 0.0
    %928 = vmatpush1.msra.mxu0 0.0
    %929 = vmatprep.subr.mxu0 0.0
    %930 = vmatpush1.msra.mxu0 0.0
    %931 = vmatprep.subr.mxu0 0.0
    %932 = vmatpush1.msra.mxu0 0.0
    %933 = vmatprep.subr.mxu0 0.0
    %934 = vmatpush1.msra.mxu0 0.0
    %935 = vmatprep.subr.mxu0 0.0
    %936 = vmatpush1.msra.mxu0 0.0
    %937 = vmatprep.subr.mxu0 0.0
    %938 = vmatpush1.msra.mxu0 0.0
    %939 = vmatprep.subr.mxu0 0.0
    %940 = vmatpush1.msra.mxu0 0.0
    %941 = vmatprep.subr.mxu0 0.0
    %942 = vmatpush1.msra.mxu0 0.0
    %943 = vmatprep.subr.mxu0 0.0
    %944 = vmatpush1.msra.mxu0 0.0
    %945 = vmatprep.subr.mxu0 0.0
    %946 = vmatpush1.msra.mxu0 0.0
    %947 = vmatprep.subr.mxu0 0.0
    %948 = vmatpush1.msra.mxu0 0.0
    %949 = vmatprep.subr.mxu0 0.0
    %950 = vmatpush1.msra.mxu0 0.0
    %951 = vmatprep.subr.mxu0 0.0
    %952 = vmatpush1.msra.mxu0 0.0
    %953 = vmatprep.subr.mxu0 0.0
    %954 = vmatpush1.msra.mxu0 0.0
    %955 = vmatprep.subr.mxu0 0.0
    %956 = vmatpush1.msra.mxu0 0.0
    %957 = vmatprep.subr.mxu0 0.0
    %958 = vmatpush1.msra.mxu0 0.0
    %959 = vmatprep.subr.mxu0 0.0
    %960 = vmatpush1.msra.mxu0 0.0
    %961 = vmatprep.subr.mxu0 0.0
    %962 = vmatpush1.msra.mxu0 0.0
    %963 = vmatprep.subr.mxu0 0.0
    %964 = vmatpush1.msra.mxu0 0.0
    %965 = vmatprep.subr.mxu0 0.0
    %966 = vmatpush1.msra.mxu0 0.0
    %967 = vmatprep.subr.mxu0 0.0
    %968 = vmatpush1.msra.mxu0 0.0
    %969 = vmatprep.subr.mxu0 0.0
    %970 = vmatpush1.msra.mxu0 0.0
    %971 = vmatprep.subr.mxu0 0.0
    %972 = vmatpush1.msra.mxu0 0.0
    %973 = vmatprep.subr.mxu0 0.0
    %974 = vmatpush1.msra.mxu0 0.0
    %975 = vmatprep.subr.mxu0 0.0
    %976 = vmatpush1.msra.mxu0 0.0
    %977 = vmatprep.subr.mxu0 0.0
    %978 = vmatpush1.msra.mxu0 0.0
    %979 = vmatprep.subr.mxu0 0.0
    %980 = vmatpush1.msra.mxu0 0.0
    %981 = vmatprep.subr.mxu0 0.0
    %982 = vmatpush1.msra.mxu0 0.0
    %983 = vmatprep.subr.mxu0 0.0
    %984 = vmatpush1.msra.mxu0 0.0
    %985 = vmatprep.subr.mxu0 0.0
    %986 = vmatpush1.msra.mxu0 0.0
    %987 = vmatprep.mubr.f32.mxu0 0.0
    %988 = vmatmul.mubr.f32.gmra.mrb[0].mxu0 %v801
    %v989 = vpop.f32.mrb[0].mxu0
    %v990 = vadd.f32 0.0, %v989
    %v991 = vpop.f32.mrb[0].mxu0
    %v992 = vadd.f32 0.0, %v991
    %993 = vdwg.mxu0
    %994 = vmatprep.subr.mxu0 %v772
    %995 = vmatpush1.msra.mxu0 %v771
    %996 = vmatprep.subr.mxu0 %v820
    %997 = vmatpush1.msra.mxu0 %v817
    %998 = vmatprep.subr.mxu0 0.0
    %999 = vmatpush1.msra.mxu0 0.0
    %1000 = vmatprep.subr.mxu0 0.0
    %1001 = vmatpush1.msra.mxu0 0.0
    %1002 = vmatprep.subr.mxu0 0.0
    %1003 = vmatpush1.msra.mxu0 0.0
    %1004 = vmatprep.subr.mxu0 0.0
    %1005 = vmatpush1.msra.mxu0 0.0
    %1006 = vmatprep.subr.mxu0 0.0
    %1007 = vmatpush1.msra.mxu0 0.0
    %1008 = vmatprep.subr.mxu0 0.0
    %1009 = vmatpush1.msra.mxu0 0.0
    %1010 = vmatprep.subr.mxu0 0.0
    %1011 = vmatpush1.msra.mxu0 0.0
    %1012 = vmatprep.subr.mxu0 0.0
    %1013 = vmatpush1.msra.mxu0 0.0
    %1014 = vmatprep.subr.mxu0 0.0
    %1015 = vmatpush1.msra.mxu0 0.0
    %1016 = vmatprep.subr.mxu0 0.0
    %1017 = vmatpush1.msra.mxu0 0.0
    %1018 = vmatprep.subr.mxu0 0.0
    %1019 = vmatpush1.msra.mxu0 0.0
    %1020 = vmatprep.subr.mxu0 0.0
    %1021 = vmatpush1.msra.mxu0 0.0
    %1022 = vmatprep.subr.mxu0 0.0
    %1023 = vmatpush1.msra.mxu0 0.0
    %1024 = vmatprep.subr.mxu0 0.0
    %1025 = vmatpush1.msra.mxu0 0.0
    %1026 = vmatprep.subr.mxu0 0.0
    %1027 = vmatpush1.msra.mxu0 0.0
    %1028 = vmatprep.subr.mxu0 0.0
    %1029 = vmatpush1.msra.mxu0 0.0
    %1030 = vmatprep.subr.mxu0 0.0
    %1031 = vmatpush1.msra.mxu0 0.0
    %1032 = vmatprep.subr.mxu0 0.0
    %1033 = vmatpush1.msra.mxu0 0.0
    %1034 = vmatprep.subr.mxu0 0.0
    %1035 = vmatpush1.msra.mxu0 0.0
    %1036 = vmatprep.subr.mxu0 0.0
    %1037 = vmatpush1.msra.mxu0 0.0
    %1038 = vmatprep.subr.mxu0 0.0
    %1039 = vmatpush1.msra.mxu0 0.0
    %1040 = vmatprep.subr.mxu0 0.0
    %1041 = vmatpush1.msra.mxu0 0.0
    %1042 = vmatprep.subr.mxu0 0.0
    %1043 = vmatpush1.msra.mxu0 0.0
    %1044 = vmatprep.subr.mxu0 0.0
    %1045 = vmatpush1.msra.mxu0 0.0
    %1046 = vmatprep.subr.mxu0 0.0
    %1047 = vmatpush1.msra.mxu0 0.0
    %1048 = vmatprep.subr.mxu0 0.0
    %1049 = vmatpush1.msra.mxu0 0.0
    %1050 = vmatprep.subr.mxu0 0.0
    %1051 = vmatpush1.msra.mxu0 0.0
    %1052 = vmatprep.subr.mxu0 0.0
    %1053 = vmatpush1.msra.mxu0 0.0
    %1054 = vmatprep.subr.mxu0 0.0
    %1055 = vmatpush1.msra.mxu0 0.0
    %1056 = vmatprep.subr.mxu0 0.0
    %1057 = vmatpush1.msra.mxu0 0.0
    %1058 = vmatprep.mubr.f32.mxu0 0.0
    %1059 = vmatmul.mubr.f32.gmra.mrb[0].mxu0 %v801
    %v1060 = vpop.f32.mrb[0].mxu0
    %v1061 = vadd.f32 0.0, %v1060
    %v1062 = vpop.f32.mrb[0].mxu0
    %v1063 = vadd.f32 0.0, %v1062
    %1064 = vdwg.mxu0
    %1065 = vmatprep.subr.mxu0 %v774
    %1066 = vmatpush1.msra.mxu0 %v773
    %1067 = vmatprep.subr.mxu0 %v826
    %1068 = vmatpush1.msra.mxu0 %v823
    %1069 = vmatprep.subr.mxu0 0.0
    %1070 = vmatpush1.msra.mxu0 0.0
    %1071 = vmatprep.subr.mxu0 0.0
    %1072 = vmatpush1.msra.mxu0 0.0
    %1073 = vmatprep.subr.mxu0 0.0
    %1074 = vmatpush1.msra.mxu0 0.0
    %1075 = vmatprep.subr.mxu0 0.0
    %1076 = vmatpush1.msra.mxu0 0.0
    %1077 = vmatprep.subr.mxu0 0.0
    %1078 = vmatpush1.msra.mxu0 0.0
    %1079 = vmatprep.subr.mxu0 0.0
    %1080 = vmatpush1.msra.mxu0 0.0
    %1081 = vmatprep.subr.mxu0 0.0
    %1082 = vmatpush1.msra.mxu0 0.0
    %1083 = vmatprep.subr.mxu0 0.0
    %1084 = vmatpush1.msra.mxu0 0.0
    %1085 = vmatprep.subr.mxu0 0.0
    %1086 = vmatpush1.msra.mxu0 0.0
    %1087 = vmatprep.subr.mxu0 0.0
    %1088 = vmatpush1.msra.mxu0 0.0
    %1089 = vmatprep.subr.mxu0 0.0
    %1090 = vmatpush1.msra.mxu0 0.0
    %1091 = vmatprep.subr.mxu0 0.0
    %1092 = vmatpush1.msra.mxu0 0.0
    %1093 = vmatprep.subr.mxu0 0.0
    %1094 = vmatpush1.msra.mxu0 0.0
    %1095 = vmatprep.subr.mxu0 0.0
    %1096 = vmatpush1.msra.mxu0 0.0
    %1097 = vmatprep.subr.mxu0 0.0
    %1098 = vmatpush1.msra.mxu0 0.0
    %1099 = vmatprep.subr.mxu0 0.0
    %1100 = vmatpush1.msra.mxu0 0.0
    %1101 = vmatprep.subr.mxu0 0.0
    %1102 = vmatpush1.msra.mxu0 0.0
    %1103 = vmatprep.subr.mxu0 0.0
    %1104 = vmatpush1.msra.mxu0 0.0
    %1105 = vmatprep.subr.mxu0 0.0
    %1106 = vmatpush1.msra.mxu0 0.0
    %1107 = vmatprep.subr.mxu0 0.0
    %1108 = vmatpush1.msra.mxu0 0.0
    %1109 = vmatprep.subr.mxu0 0.0
    %1110 = vmatpush1.msra.mxu0 0.0
    %1111 = vmatprep.subr.mxu0 0.0
    %1112 = vmatpush1.msra.mxu0 0.0
    %1113 = vmatprep.subr.mxu0 0.0
    %1114 = vmatpush1.msra.mxu0 0.0
    %1115 = vmatprep.subr.mxu0 0.0
    %1116 = vmatpush1.msra.mxu0 0.0
    %1117 = vmatprep.subr.mxu0 0.0
    %1118 = vmatpush1.msra.mxu0 0.0
    %1119 = vmatprep.subr.mxu0 0.0
    %1120 = vmatpush1.msra.mxu0 0.0
    %1121 = vmatprep.subr.mxu0 0.0
    %1122 = vmatpush1.msra.mxu0 0.0
    %1123 = vmatprep.subr.mxu0 0.0
    %1124 = vmatpush1.msra.mxu0 0.0
    %1125 = vmatprep.subr.mxu0 0.0
    %1126 = vmatpush1.msra.mxu0 0.0
    %1127 = vmatprep.subr.mxu0 0.0
    %1128 = vmatpush1.msra.mxu0 0.0
    %1129 = vmatprep.mubr.f32.mxu0 0.0
    %1130 = vmatmul.mubr.f32.gmra.mrb[0].mxu0 %v801
    %v1131 = vpop.f32.mrb[0].mxu0
    %v1132 = vadd.f32 0.0, %v1131
    %v1133 = vpop.f32.mrb[0].mxu0
    %v1134 = vadd.f32 0.0, %v1133
    %1135 = vdwg.mxu0
    %1136 = vmatprep.subr.mxu0 %v776
    %1137 = vmatpush1.msra.mxu0 %v775
    %1138 = vmatprep.subr.mxu0 %v832
    %1139 = vmatpush1.msra.mxu0 %v829
    %1140 = vmatprep.subr.mxu0 0.0
    %1141 = vmatpush1.msra.mxu0 0.0
    %1142 = vmatprep.subr.mxu0 0.0
    %1143 = vmatpush1.msra.mxu0 0.0
    %1144 = vmatprep.subr.mxu0 0.0
    %1145 = vmatpush1.msra.mxu0 0.0
    %1146 = vmatprep.subr.mxu0 0.0
    %1147 = vmatpush1.msra.mxu0 0.0
    %1148 = vmatprep.subr.mxu0 0.0
    %1149 = vmatpush1.msra.mxu0 0.0
    %1150 = vmatprep.subr.mxu0 0.0
    %1151 = vmatpush1.msra.mxu0 0.0
    %1152 = vmatprep.subr.mxu0 0.0
    %1153 = vmatpush1.msra.mxu0 0.0
    %1154 = vmatprep.subr.mxu0 0.0
    %1155 = vmatpush1.msra.mxu0 0.0
    %1156 = vmatprep.subr.mxu0 0.0
    %1157 = vmatpush1.msra.mxu0 0.0
    %1158 = vmatprep.subr.mxu0 0.0
    %1159 = vmatpush1.msra.mxu0 0.0
    %1160 = vmatprep.subr.mxu0 0.0
    %1161 = vmatpush1.msra.mxu0 0.0
    %1162 = vmatprep.subr.mxu0 0.0
    %1163 = vmatpush1.msra.mxu0 0.0
    %1164 = vmatprep.subr.mxu0 0.0
    %1165 = vmatpush1.msra.mxu0 0.0
    %1166 = vmatprep.subr.mxu0 0.0
    %1167 = vmatpush1.msra.mxu0 0.0
    %1168 = vmatprep.subr.mxu0 0.0
    %1169 = vmatpush1.msra.mxu0 0.0
    %1170 = vmatprep.subr.mxu0 0.0
    %1171 = vmatpush1.msra.mxu0 0.0
    %1172 = vmatprep.subr.mxu0 0.0
    %1173 = vmatpush1.msra.mxu0 0.0
    %1174 = vmatprep.subr.mxu0 0.0
    %1175 = vmatpush1.msra.mxu0 0.0
    %1176 = vmatprep.subr.mxu0 0.0
    %1177 = vmatpush1.msra.mxu0 0.0
    %1178 = vmatprep.subr.mxu0 0.0
    %1179 = vmatpush1.msra.mxu0 0.0
    %1180 = vmatprep.subr.mxu0 0.0
    %1181 = vmatpush1.msra.mxu0 0.0
    %1182 = vmatprep.subr.mxu0 0.0
    %1183 = vmatpush1.msra.mxu0 0.0
    %1184 = vmatprep.subr.mxu0 0.0
    %1185 = vmatpush1.msra.mxu0 0.0
    %1186 = vmatprep.subr.mxu0 0.0
    %1187 = vmatpush1.msra.mxu0 0.0
    %1188 = vmatprep.subr.mxu0 0.0
    %1189 = vmatpush1.msra.mxu0 0.0
    %1190 = vmatprep.subr.mxu0 0.0
    %1191 = vmatpush1.msra.mxu0 0.0
    %1192 = vmatprep.subr.mxu0 0.0
    %1193 = vmatpush1.msra.mxu0 0.0
    %1194 = vmatprep.subr.mxu0 0.0
    %1195 = vmatpush1.msra.mxu0 0.0
    %1196 = vmatprep.subr.mxu0 0.0
    %1197 = vmatpush1.msra.mxu0 0.0
    %1198 = vmatprep.subr.mxu0 0.0
    %1199 = vmatpush1.msra.mxu0 0.0
    %1200 = vmatprep.mubr.f32.mxu0 0.0
    %1201 = vmatmul.mubr.f32.gmra.mrb[0].mxu0 %v801
    %v1202 = vpop.f32.mrb[0].mxu0
    %v1203 = vadd.f32 0.0, %v1202
    %v1204 = vpop.f32.mrb[0].mxu0
    %v1205 = vadd.f32 0.0, %v1204
    %1206 = vdwg.mxu0
    %1207 = vmatprep.subr.mxu0 %v778
    %1208 = vmatpush1.msra.mxu0 %v777
    %1209 = vmatprep.subr.mxu0 %v838
    %1210 = vmatpush1.msra.mxu0 %v835
    %1211 = vmatprep.subr.mxu0 0.0
    %1212 = vmatpush1.msra.mxu0 0.0
    %1213 = vmatprep.subr.mxu0 0.0
    %1214 = vmatpush1.msra.mxu0 0.0
    %1215 = vmatprep.subr.mxu0 0.0
    %1216 = vmatpush1.msra.mxu0 0.0
    %1217 = vmatprep.subr.mxu0 0.0
    %1218 = vmatpush1.msra.mxu0 0.0
    %1219 = vmatprep.subr.mxu0 0.0
    %1220 = vmatpush1.msra.mxu0 0.0
    %1221 = vmatprep.subr.mxu0 0.0
    %1222 = vmatpush1.msra.mxu0 0.0
    %1223 = vmatprep.subr.mxu0 0.0
    %1224 = vmatpush1.msra.mxu0 0.0
    %1225 = vmatprep.subr.mxu0 0.0
    %1226 = vmatpush1.msra.mxu0 0.0
    %1227 = vmatprep.subr.mxu0 0.0
    %1228 = vmatpush1.msra.mxu0 0.0
    %1229 = vmatprep.subr.mxu0 0.0
    %1230 = vmatpush1.msra.mxu0 0.0
    %1231 = vmatprep.subr.mxu0 0.0
    %1232 = vmatpush1.msra.mxu0 0.0
    %1233 = vmatprep.subr.mxu0 0.0
    %1234 = vmatpush1.msra.mxu0 0.0
    %1235 = vmatprep.subr.mxu0 0.0
    %1236 = vmatpush1.msra.mxu0 0.0
    %1237 = vmatprep.subr.mxu0 0.0
    %1238 = vmatpush1.msra.mxu0 0.0
    %1239 = vmatprep.subr.mxu0 0.0
    %1240 = vmatpush1.msra.mxu0 0.0
    %1241 = vmatprep.subr.mxu0 0.0
    %1242 = vmatpush1.msra.mxu0 0.0
    %1243 = vmatprep.subr.mxu0 0.0
    %1244 = vmatpush1.msra.mxu0 0.0
    %1245 = vmatprep.subr.mxu0 0.0
    %1246 = vmatpush1.msra.mxu0 0.0
    %1247 = vmatprep.subr.mxu0 0.0
    %1248 = vmatpush1.msra.mxu0 0.0
    %1249 = vmatprep.subr.mxu0 0.0
    %1250 = vmatpush1.msra.mxu0 0.0
    %1251 = vmatprep.subr.mxu0 0.0
    %1252 = vmatpush1.msra.mxu0 0.0
    %1253 = vmatprep.subr.mxu0 0.0
    %1254 = vmatpush1.msra.mxu0 0.0
    %1255 = vmatprep.subr.mxu0 0.0
    %1256 = vmatpush1.msra.mxu0 0.0
    %1257 = vmatprep.subr.mxu0 0.0
    %1258 = vmatpush1.msra.mxu0 0.0
    %1259 = vmatprep.subr.mxu0 0.0
    %1260 = vmatpush1.msra.mxu0 0.0
    %1261 = vmatprep.subr.mxu0 0.0
    %1262 = vmatpush1.msra.mxu0 0.0
    %1263 = vmatprep.subr.mxu0 0.0
    %1264 = vmatpush1.msra.mxu0 0.0
    %1265 = vmatprep.subr.mxu0 0.0
    %1266 = vmatpush1.msra.mxu0 0.0
    %1267 = vmatprep.subr.mxu0 0.0
    %1268 = vmatpush1.msra.mxu0 0.0
    %1269 = vmatprep.subr.mxu0 0.0
    %1270 = vmatpush1.msra.mxu0 0.0
    %1271 = vmatprep.mubr.f32.mxu0 0.0
    %1272 = vmatmul.mubr.f32.gmra.mrb[0].mxu0 %v801
    %v1273 = vpop.f32.mrb[0].mxu0
    %v1274 = vadd.f32 0.0, %v1273
    %v1275 = vpop.f32.mrb[0].mxu0
    %v1276 = vadd.f32 0.0, %v1275
    %1277 = vdwg.mxu0
    %1278 = vmatprep.subr.mxu0 %v780
    %1279 = vmatpush1.msra.mxu0 %v779
    %1280 = vmatprep.subr.mxu0 %v844
    %1281 = vmatpush1.msra.mxu0 %v841
    %1282 = vmatprep.subr.mxu0 0.0
    %1283 = vmatpush1.msra.mxu0 0.0
    %1284 = vmatprep.subr.mxu0 0.0
    %1285 = vmatpush1.msra.mxu0 0.0
    %1286 = vmatprep.subr.mxu0 0.0
    %1287 = vmatpush1.msra.mxu0 0.0
    %1288 = vmatprep.subr.mxu0 0.0
    %1289 = vmatpush1.msra.mxu0 0.0
    %1290 = vmatprep.subr.mxu0 0.0
    %1291 = vmatpush1.msra.mxu0 0.0
    %1292 = vmatprep.subr.mxu0 0.0
    %1293 = vmatpush1.msra.mxu0 0.0
    %1294 = vmatprep.subr.mxu0 0.0
    %1295 = vmatpush1.msra.mxu0 0.0
    %1296 = vmatprep.subr.mxu0 0.0
    %1297 = vmatpush1.msra.mxu0 0.0
    %1298 = vmatprep.subr.mxu0 0.0
    %1299 = vmatpush1.msra.mxu0 0.0
    %1300 = vmatprep.subr.mxu0 0.0
    %1301 = vmatpush1.msra.mxu0 0.0
    %1302 = vmatprep.subr.mxu0 0.0
    %1303 = vmatpush1.msra.mxu0 0.0
    %1304 = vmatprep.subr.mxu0 0.0
    %1305 = vmatpush1.msra.mxu0 0.0
    %1306 = vmatprep.subr.mxu0 0.0
    %1307 = vmatpush1.msra.mxu0 0.0
    %1308 = vmatprep.subr.mxu0 0.0
    %1309 = vmatpush1.msra.mxu0 0.0
    %1310 = vmatprep.subr.mxu0 0.0
    %1311 = vmatpush1.msra.mxu0 0.0
    %1312 = vmatprep.subr.mxu0 0.0
    %1313 = vmatpush1.msra.mxu0 0.0
    %1314 = vmatprep.subr.mxu0 0.0
    %1315 = vmatpush1.msra.mxu0 0.0
    %1316 = vmatprep.subr.mxu0 0.0
    %1317 = vmatpush1.msra.mxu0 0.0
    %1318 = vmatprep.subr.mxu0 0.0
    %1319 = vmatpush1.msra.mxu0 0.0
    %1320 = vmatprep.subr.mxu0 0.0
    %1321 = vmatpush1.msra.mxu0 0.0
    %1322 = vmatprep.subr.mxu0 0.0
    %1323 = vmatpush1.msra.mxu0 0.0
    %1324 = vmatprep.subr.mxu0 0.0
    %1325 = vmatpush1.msra.mxu0 0.0
    %1326 = vmatprep.subr.mxu0 0.0
    %1327 = vmatpush1.msra.mxu0 0.0
    %1328 = vmatprep.subr.mxu0 0.0
    %1329 = vmatpush1.msra.mxu0 0.0
    %1330 = vmatprep.subr.mxu0 0.0
    %1331 = vmatpush1.msra.mxu0 0.0
    %1332 = vmatprep.subr.mxu0 0.0
    %1333 = vmatpush1.msra.mxu0 0.0
    %1334 = vmatprep.subr.mxu0 0.0
    %1335 = vmatpush1.msra.mxu0 0.0
    %1336 = vmatprep.subr.mxu0 0.0
    %1337 = vmatpush1.msra.mxu0 0.0
    %1338 = vmatprep.subr.mxu0 0.0
    %1339 = vmatpush1.msra.mxu0 0.0
    %1340 = vmatprep.subr.mxu0 0.0
    %1341 = vmatpush1.msra.mxu0 0.0
    %1342 = vmatprep.mubr.f32.mxu0 0.0
    %1343 = vmatmul.mubr.f32.gmra.mrb[0].mxu0 %v801
    %v1344 = vpop.f32.mrb[0].mxu0
    %v1345 = vadd.f32 0.0, %v1344
    %v1346 = vpop.f32.mrb[0].mxu0
    %v1347 = vadd.f32 0.0, %v1346
    %1348 = vdwg.mxu0
    %1349 = vmatprep.subr.mxu0 %v782
    %1350 = vmatpush1.msra.mxu0 %v781
    %1351 = vmatprep.subr.mxu0 %v850
    %1352 = vmatpush1.msra.mxu0 %v847
    %1353 = vmatprep.subr.mxu0 0.0
    %1354 = vmatpush1.msra.mxu0 0.0
    %1355 = vmatprep.subr.mxu0 0.0
    %1356 = vmatpush1.msra.mxu0 0.0
    %1357 = vmatprep.subr.mxu0 0.0
    %1358 = vmatpush1.msra.mxu0 0.0
    %1359 = vmatprep.subr.mxu0 0.0
    %1360 = vmatpush1.msra.mxu0 0.0
    %1361 = vmatprep.subr.mxu0 0.0
    %1362 = vmatpush1.msra.mxu0 0.0
    %1363 = vmatprep.subr.mxu0 0.0
    %1364 = vmatpush1.msra.mxu0 0.0
    %1365 = vmatprep.subr.mxu0 0.0
    %1366 = vmatpush1.msra.mxu0 0.0
    %1367 = vmatprep.subr.mxu0 0.0
    %1368 = vmatpush1.msra.mxu0 0.0
    %1369 = vmatprep.subr.mxu0 0.0
    %1370 = vmatpush1.msra.mxu0 0.0
    %1371 = vmatprep.subr.mxu0 0.0
    %1372 = vmatpush1.msra.mxu0 0.0
    %1373 = vmatprep.subr.mxu0 0.0
    %1374 = vmatpush1.msra.mxu0 0.0
    %1375 = vmatprep.subr.mxu0 0.0
    %1376 = vmatpush1.msra.mxu0 0.0
    %1377 = vmatprep.subr.mxu0 0.0
    %1378 = vmatpush1.msra.mxu0 0.0
    %1379 = vmatprep.subr.mxu0 0.0
    %1380 = vmatpush1.msra.mxu0 0.0
    %1381 = vmatprep.subr.mxu0 0.0
    %1382 = vmatpush1.msra.mxu0 0.0
    %1383 = vmatprep.subr.mxu0 0.0
    %1384 = vmatpush1.msra.mxu0 0.0
    %1385 = vmatprep.subr.mxu0 0.0
    %1386 = vmatpush1.msra.mxu0 0.0
    %1387 = vmatprep.subr.mxu0 0.0
    %1388 = vmatpush1.msra.mxu0 0.0
    %1389 = vmatprep.subr.mxu0 0.0
    %1390 = vmatpush1.msra.mxu0 0.0
    %1391 = vmatprep.subr.mxu0 0.0
    %1392 = vmatpush1.msra.mxu0 0.0
    %1393 = vmatprep.subr.mxu0 0.0
    %1394 = vmatpush1.msra.mxu0 0.0
    %1395 = vmatprep.subr.mxu0 0.0
    %1396 = vmatpush1.msra.mxu0 0.0
    %1397 = vmatprep.subr.mxu0 0.0
    %1398 = vmatpush1.msra.mxu0 0.0
    %1399 = vmatprep.subr.mxu0 0.0
    %1400 = vmatpush1.msra.mxu0 0.0
    %1401 = vmatprep.subr.mxu0 0.0
    %1402 = vmatpush1.msra.mxu0 0.0
    %1403 = vmatprep.subr.mxu0 0.0
    %1404 = vmatpush1.msra.mxu0 0.0
    %1405 = vmatprep.subr.mxu0 0.0
    %1406 = vmatpush1.msra.mxu0 0.0
    %1407 = vmatprep.subr.mxu0 0.0
    %1408 = vmatpush1.msra.mxu0 0.0
    %1409 = vmatprep.subr.mxu0 0.0
    %1410 = vmatpush1.msra.mxu0 0.0
    %1411 = vmatprep.subr.mxu0 0.0
    %1412 = vmatpush1.msra.mxu0 0.0
    %1413 = vmatprep.mubr.f32.mxu0 0.0
    %1414 = vmatmul.mubr.f32.gmra.mrb[0].mxu0 %v801
    %v1415 = vpop.f32.mrb[0].mxu0
    %v1416 = vadd.f32 0.0, %v1415
    %v1417 = vpop.f32.mrb[0].mxu0
    %v1418 = vadd.f32 0.0, %v1417
    %1419 = vdwg.mxu0
    %v1421 = vsel %vm799, %v343, 0
    %v1424 = vsel %vm803, %v360, 0
    %v1427 = vsel %vm803, %v361, 0
    %v1430 = vsel %vm803, %v362, 0
    %v1433 = vsel %vm803, %v363, 0
    %v1436 = vsel %vm803, %v364, 0
    %v1439 = vsel %vm803, %v365, 0
    %v1442 = vsel %vm803, %v366, 0
    %v1445 = vsel %vm803, %v367, 0
    %v1448 = vsel %vm803, %v368, 0
    %v1451 = vsel %vm803, %v369, 0
    %v1454 = vsel %vm803, %v370, 0
    %v1457 = vsel %vm803, %v371, 0
    %v1460 = vsel %vm803, %v372, 0
    %v1463 = vsel %vm803, %v373, 0
    %v1466 = vsel %vm803, %v374, 0
    %v1469 = vsel %vm803, %v375, 0
    %1471 = vmatprep.subr.mxu0 %v345
    %1472 = vmatpush1.msra.mxu0 %v344
    %1473 = vmatprep.subr.mxu0 %v1427
    %1474 = vmatpush1.msra.mxu0 %v1424
    %1475 = vmatprep.subr.mxu0 0.0
    %1476 = vmatpush1.msra.mxu0 0.0
    %1477 = vmatprep.subr.mxu0 0.0
    %1478 = vmatpush1.msra.mxu0 0.0
    %1479 = vmatprep.subr.mxu0 0.0
    %1480 = vmatpush1.msra.mxu0 0.0
    %1481 = vmatprep.subr.mxu0 0.0
    %1482 = vmatpush1.msra.mxu0 0.0
    %1483 = vmatprep.subr.mxu0 0.0
    %1484 = vmatpush1.msra.mxu0 0.0
    %1485 = vmatprep.subr.mxu0 0.0
    %1486 = vmatpush1.msra.mxu0 0.0
    %1487 = vmatprep.subr.mxu0 0.0
    %1488 = vmatpush1.msra.mxu0 0.0
    %1489 = vmatprep.subr.mxu0 0.0
    %1490 = vmatpush1.msra.mxu0 0.0
    %1491 = vmatprep.subr.mxu0 0.0
    %1492 = vmatpush1.msra.mxu0 0.0
    %1493 = vmatprep.subr.mxu0 0.0
    %1494 = vmatpush1.msra.mxu0 0.0
    %1495 = vmatprep.subr.mxu0 0.0
    %1496 = vmatpush1.msra.mxu0 0.0
    %1497 = vmatprep.subr.mxu0 0.0
    %1498 = vmatpush1.msra.mxu0 0.0
    %1499 = vmatprep.subr.mxu0 0.0
    %1500 = vmatpush1.msra.mxu0 0.0
    %1501 = vmatprep.subr.mxu0 0.0
    %1502 = vmatpush1.msra.mxu0 0.0
    %1503 = vmatprep.subr.mxu0 0.0
    %1504 = vmatpush1.msra.mxu0 0.0
    %1505 = vmatprep.subr.mxu0 0.0
    %1506 = vmatpush1.msra.mxu0 0.0
    %1507 = vmatprep.subr.mxu0 0.0
    %1508 = vmatpush1.msra.mxu0 0.0
    %1509 = vmatprep.subr.mxu0 0.0
    %1510 = vmatpush1.msra.mxu0 0.0
    %1511 = vmatprep.subr.mxu0 0.0
    %1512 = vmatpush1.msra.mxu0 0.0
    %1513 = vmatprep.subr.mxu0 0.0
    %1514 = vmatpush1.msra.mxu0 0.0
    %1515 = vmatprep.subr.mxu0 0.0
    %1516 = vmatpush1.msra.mxu0 0.0
    %1517 = vmatprep.subr.mxu0 0.0
    %1518 = vmatpush1.msra.mxu0 0.0
    %1519 = vmatprep.subr.mxu0 0.0
    %1520 = vmatpush1.msra.mxu0 0.0
    %1521 = vmatprep.subr.mxu0 0.0
    %1522 = vmatpush1.msra.mxu0 0.0
    %1523 = vmatprep.subr.mxu0 0.0
    %1524 = vmatpush1.msra.mxu0 0.0
    %1525 = vmatprep.subr.mxu0 0.0
    %1526 = vmatpush1.msra.mxu0 0.0
    %1527 = vmatprep.subr.mxu0 0.0
    %1528 = vmatpush1.msra.mxu0 0.0
    %1529 = vmatprep.subr.mxu0 0.0
    %1530 = vmatpush1.msra.mxu0 0.0
    %1531 = vmatprep.subr.mxu0 0.0
    %1532 = vmatpush1.msra.mxu0 0.0
    %1533 = vmatprep.subr.mxu0 0.0
    %1534 = vmatpush1.msra.mxu0 0.0
    %1535 = vmatprep.mubr.f32.mxu0 0.0
    %1536 = vmatmul.mubr.f32.gmra.mrb[0].mxu0 %v1421
    %v1537 = vpop.f32.mrb[0].mxu0
    %v1538 = vadd.f32 %v919, %v1537
    %v1539 = vpop.f32.mrb[0].mxu0
    %v1540 = vadd.f32 %v921, %v1539
    %1541 = vdwg.mxu0
    %1542 = vmatprep.subr.mxu0 %v347
    %1543 = vmatpush1.msra.mxu0 %v346
    %1544 = vmatprep.subr.mxu0 %v1433
    %1545 = vmatpush1.msra.mxu0 %v1430
    %1546 = vmatprep.subr.mxu0 0.0
    %1547 = vmatpush1.msra.mxu0 0.0
    %1548 = vmatprep.subr.mxu0 0.0
    %1549 = vmatpush1.msra.mxu0 0.0
    %1550 = vmatprep.subr.mxu0 0.0
    %1551 = vmatpush1.msra.mxu0 0.0
    %1552 = vmatprep.subr.mxu0 0.0
    %1553 = vmatpush1.msra.mxu0 0.0
    %1554 = vmatprep.subr.mxu0 0.0
    %1555 = vmatpush1.msra.mxu0 0.0
    %1556 = vmatprep.subr.mxu0 0.0
    %1557 = vmatpush1.msra.mxu0 0.0
    %1558 = vmatprep.subr.mxu0 0.0
    %1559 = vmatpush1.msra.mxu0 0.0
    %1560 = vmatprep.subr.mxu0 0.0
    %1561 = vmatpush1.msra.mxu0 0.0
    %1562 = vmatprep.subr.mxu0 0.0
    %1563 = vmatpush1.msra.mxu0 0.0
    %1564 = vmatprep.subr.mxu0 0.0
    %1565 = vmatpush1.msra.mxu0 0.0
    %1566 = vmatprep.subr.mxu0 0.0
    %1567 = vmatpush1.msra.mxu0 0.0
    %1568 = vmatprep.subr.mxu0 0.0
    %1569 = vmatpush1.msra.mxu0 0.0
    %1570 = vmatprep.subr.mxu0 0.0
    %1571 = vmatpush1.msra.mxu0 0.0
    %1572 = vmatprep.subr.mxu0 0.0
    %1573 = vmatpush1.msra.mxu0 0.0
    %1574 = vmatprep.subr.mxu0 0.0
    %1575 = vmatpush1.msra.mxu0 0.0
    %1576 = vmatprep.subr.mxu0 0.0
    %1577 = vmatpush1.msra.mxu0 0.0
    %1578 = vmatprep.subr.mxu0 0.0
    %1579 = vmatpush1.msra.mxu0 0.0
    %1580 = vmatprep.subr.mxu0 0.0
    %1581 = vmatpush1.msra.mxu0 0.0
    %1582 = vmatprep.subr.mxu0 0.0
    %1583 = vmatpush1.msra.mxu0 0.0
    %1584 = vmatprep.subr.mxu0 0.0
    %1585 = vmatpush1.msra.mxu0 0.0
    %1586 = vmatprep.subr.mxu0 0.0
    %1587 = vmatpush1.msra.mxu0 0.0
    %1588 = vmatprep.subr.mxu0 0.0
    %1589 = vmatpush1.msra.mxu0 0.0
    %1590 = vmatprep.subr.mxu0 0.0
    %1591 = vmatpush1.msra.mxu0 0.0
    %1592 = vmatprep.subr.mxu0 0.0
    %1593 = vmatpush1.msra.mxu0 0.0
    %1594 = vmatprep.subr.mxu0 0.0
    %1595 = vmatpush1.msra.mxu0 0.0
    %1596 = vmatprep.subr.mxu0 0.0
    %1597 = vmatpush1.msra.mxu0 0.0
    %1598 = vmatprep.subr.mxu0 0.0
    %1599 = vmatpush1.msra.mxu0 0.0
    %1600 = vmatprep.subr.mxu0 0.0
    %1601 = vmatpush1.msra.mxu0 0.0
    %1602 = vmatprep.subr.mxu0 0.0
    %1603 = vmatpush1.msra.mxu0 0.0
    %1604 = vmatprep.subr.mxu0 0.0
    %1605 = vmatpush1.msra.mxu0 0.0
    %1606 = vmatprep.mubr.f32.mxu0 0.0
    %1607 = vmatmul.mubr.f32.gmra.mrb[0].mxu0 %v1421
    %v1608 = vpop.f32.mrb[0].mxu0
    %v1609 = vadd.f32 %v990, %v1608
    %v1610 = vpop.f32.mrb[0].mxu0
    %v1611 = vadd.f32 %v992, %v1610
    %1612 = vdwg.mxu0
    %1613 = vmatprep.subr.mxu0 %v349
    %1614 = vmatpush1.msra.mxu0 %v348
    %1615 = vmatprep.subr.mxu0 %v1439
    %1616 = vmatpush1.msra.mxu0 %v1436
    %1617 = vmatprep.subr.mxu0 0.0
    %1618 = vmatpush1.msra.mxu0 0.0
    %1619 = vmatprep.subr.mxu0 0.0
    %1620 = vmatpush1.msra.mxu0 0.0
    %1621 = vmatprep.subr.mxu0 0.0
    %1622 = vmatpush1.msra.mxu0 0.0
    %1623 = vmatprep.subr.mxu0 0.0
    %1624 = vmatpush1.msra.mxu0 0.0
    %1625 = vmatprep.subr.mxu0 0.0
    %1626 = vmatpush1.msra.mxu0 0.0
    %1627 = vmatprep.subr.mxu0 0.0
    %1628 = vmatpush1.msra.mxu0 0.0
    %1629 = vmatprep.subr.mxu0 0.0
    %1630 = vmatpush1.msra.mxu0 0.0
    %1631 = vmatprep.subr.mxu0 0.0
    %1632 = vmatpush1.msra.mxu0 0.0
    %1633 = vmatprep.subr.mxu0 0.0
    %1634 = vmatpush1.msra.mxu0 0.0
    %1635 = vmatprep.subr.mxu0 0.0
    %1636 = vmatpush1.msra.mxu0 0.0
    %1637 = vmatprep.subr.mxu0 0.0
    %1638 = vmatpush1.msra.mxu0 0.0
    %1639 = vmatprep.subr.mxu0 0.0
    %1640 = vmatpush1.msra.mxu0 0.0
    %1641 = vmatprep.subr.mxu0 0.0
    %1642 = vmatpush1.msra.mxu0 0.0
    %1643 = vmatprep.subr.mxu0 0.0
    %1644 = vmatpush1.msra.mxu0 0.0
    %1645 = vmatprep.subr.mxu0 0.0
    %1646 = vmatpush1.msra.mxu0 0.0
    %1647 = vmatprep.subr.mxu0 0.0
    %1648 = vmatpush1.msra.mxu0 0.0
    %1649 = vmatprep.subr.mxu0 0.0
    %1650 = vmatpush1.msra.mxu0 0.0
    %1651 = vmatprep.subr.mxu0 0.0
    %1652 = vmatpush1.msra.mxu0 0.0
    %1653 = vmatprep.subr.mxu0 0.0
    %1654 = vmatpush1.msra.mxu0 0.0
    %1655 = vmatprep.subr.mxu0 0.0
    %1656 = vmatpush1.msra.mxu0 0.0
    %1657 = vmatprep.subr.mxu0 0.0
    %1658 = vmatpush1.msra.mxu0 0.0
    %1659 = vmatprep.subr.mxu0 0.0
    %1660 = vmatpush1.msra.mxu0 0.0
    %1661 = vmatprep.subr.mxu0 0.0
    %1662 = vmatpush1.msra.mxu0 0.0
    %1663 = vmatprep.subr.mxu0 0.0
    %1664 = vmatpush1.msra.mxu0 0.0
    %1665 = vmatprep.subr.mxu0 0.0
    %1666 = vmatpush1.msra.mxu0 0.0
    %1667 = vmatprep.subr.mxu0 0.0
    %1668 = vmatpush1.msra.mxu0 0.0
    %1669 = vmatprep.subr.mxu0 0.0
    %1670 = vmatpush1.msra.mxu0 0.0
    %1671 = vmatprep.subr.mxu0 0.0
    %1672 = vmatpush1.msra.mxu0 0.0
    %1673 = vmatprep.subr.mxu0 0.0
    %1674 = vmatpush1.msra.mxu0 0.0
    %1675 = vmatprep.subr.mxu0 0.0
    %1676 = vmatpush1.msra.mxu0 0.0
    %1677 = vmatprep.mubr.f32.mxu0 0.0
    %1678 = vmatmul.mubr.f32.gmra.mrb[0].mxu0 %v1421
    %v1679 = vpop.f32.mrb[0].mxu0
    %v1680 = vadd.f32 %v1061, %v1679
    %v1681 = vpop.f32.mrb[0].mxu0
    %v1682 = vadd.f32 %v1063, %v1681
    %1683 = vdwg.mxu0
    %1684 = vmatprep.subr.mxu0 %v351
    %1685 = vmatpush1.msra.mxu0 %v350
    %1686 = vmatprep.subr.mxu0 %v1445
    %1687 = vmatpush1.msra.mxu0 %v1442
    %1688 = vmatprep.subr.mxu0 0.0
    %1689 = vmatpush1.msra.mxu0 0.0
    %1690 = vmatprep.subr.mxu0 0.0
    %1691 = vmatpush1.msra.mxu0 0.0
    %1692 = vmatprep.subr.mxu0 0.0
    %1693 = vmatpush1.msra.mxu0 0.0
    %1694 = vmatprep.subr.mxu0 0.0
    %1695 = vmatpush1.msra.mxu0 0.0
    %1696 = vmatprep.subr.mxu0 0.0
    %1697 = vmatpush1.msra.mxu0 0.0
    %1698 = vmatprep.subr.mxu0 0.0
    %1699 = vmatpush1.msra.mxu0 0.0
    %1700 = vmatprep.subr.mxu0 0.0
    %1701 = vmatpush1.msra.mxu0 0.0
    %1702 = vmatprep.subr.mxu0 0.0
    %1703 = vmatpush1.msra.mxu0 0.0
    %1704 = vmatprep.subr.mxu0 0.0
    %1705 = vmatpush1.msra.mxu0 0.0
    %1706 = vmatprep.subr.mxu0 0.0
    %1707 = vmatpush1.msra.mxu0 0.0
    %1708 = vmatprep.subr.mxu0 0.0
    %1709 = vmatpush1.msra.mxu0 0.0
    %1710 = vmatprep.subr.mxu0 0.0
    %1711 = vmatpush1.msra.mxu0 0.0
    %1712 = vmatprep.subr.mxu0 0.0
    %1713 = vmatpush1.msra.mxu0 0.0
    %1714 = vmatprep.subr.mxu0 0.0
    %1715 = vmatpush1.msra.mxu0 0.0
    %1716 = vmatprep.subr.mxu0 0.0
    %1717 = vmatpush1.msra.mxu0 0.0
    %1718 = vmatprep.subr.mxu0 0.0
    %1719 = vmatpush1.msra.mxu0 0.0
    %1720 = vmatprep.subr.mxu0 0.0
    %1721 = vmatpush1.msra.mxu0 0.0
    %1722 = vmatprep.subr.mxu0 0.0
    %1723 = vmatpush1.msra.mxu0 0.0
    %1724 = vmatprep.subr.mxu0 0.0
    %1725 = vmatpush1.msra.mxu0 0.0
    %1726 = vmatprep.subr.mxu0 0.0
    %1727 = vmatpush1.msra.mxu0 0.0
    %1728 = vmatprep.subr.mxu0 0.0
    %1729 = vmatpush1.msra.mxu0 0.0
    %1730 = vmatprep.subr.mxu0 0.0
    %1731 = vmatpush1.msra.mxu0 0.0
    %1732 = vmatprep.subr.mxu0 0.0
    %1733 = vmatpush1.msra.mxu0 0.0
    %1734 = vmatprep.subr.mxu0 0.0
    %1735 = vmatpush1.msra.mxu0 0.0
    %1736 = vmatprep.subr.mxu0 0.0
    %1737 = vmatpush1.msra.mxu0 0.0
    %1738 = vmatprep.subr.mxu0 0.0
    %1739 = vmatpush1.msra.mxu0 0.0
    %1740 = vmatprep.subr.mxu0 0.0
    %1741 = vmatpush1.msra.mxu0 0.0
    %1742 = vmatprep.subr.mxu0 0.0
    %1743 = vmatpush1.msra.mxu0 0.0
    %1744 = vmatprep.subr.mxu0 0.0
    %1745 = vmatpush1.msra.mxu0 0.0
    %1746 = vmatprep.subr.mxu0 0.0
    %1747 = vmatpush1.msra.mxu0 0.0
    %1748 = vmatprep.mubr.f32.mxu0 0.0
    %1749 = vmatmul.mubr.f32.gmra.mrb[0].mxu0 %v1421
    %v1750 = vpop.f32.mrb[0].mxu0
    %v1751 = vadd.f32 %v1132, %v1750
    %v1752 = vpop.f32.mrb[0].mxu0
    %v1753 = vadd.f32 %v1134, %v1752
    %1754 = vdwg.mxu0
    %1755 = vmatprep.subr.mxu0 %v353
    %1756 = vmatpush1.msra.mxu0 %v352
    %1757 = vmatprep.subr.mxu0 %v1451
    %1758 = vmatpush1.msra.mxu0 %v1448
    %1759 = vmatprep.subr.mxu0 0.0
    %1760 = vmatpush1.msra.mxu0 0.0
    %1761 = vmatprep.subr.mxu0 0.0
    %1762 = vmatpush1.msra.mxu0 0.0
    %1763 = vmatprep.subr.mxu0 0.0
    %1764 = vmatpush1.msra.mxu0 0.0
    %1765 = vmatprep.subr.mxu0 0.0
    %1766 = vmatpush1.msra.mxu0 0.0
    %1767 = vmatprep.subr.mxu0 0.0
    %1768 = vmatpush1.msra.mxu0 0.0
    %1769 = vmatprep.subr.mxu0 0.0
    %1770 = vmatpush1.msra.mxu0 0.0
    %1771 = vmatprep.subr.mxu0 0.0
    %1772 = vmatpush1.msra.mxu0 0.0
    %1773 = vmatprep.subr.mxu0 0.0
    %1774 = vmatpush1.msra.mxu0 0.0
    %1775 = vmatprep.subr.mxu0 0.0
    %1776 = vmatpush1.msra.mxu0 0.0
    %1777 = vmatprep.subr.mxu0 0.0
    %1778 = vmatpush1.msra.mxu0 0.0
    %1779 = vmatprep.subr.mxu0 0.0
    %1780 = vmatpush1.msra.mxu0 0.0
    %1781 = vmatprep.subr.mxu0 0.0
    %1782 = vmatpush1.msra.mxu0 0.0
    %1783 = vmatprep.subr.mxu0 0.0
    %1784 = vmatpush1.msra.mxu0 0.0
    %1785 = vmatprep.subr.mxu0 0.0
    %1786 = vmatpush1.msra.mxu0 0.0
    %1787 = vmatprep.subr.mxu0 0.0
    %1788 = vmatpush1.msra.mxu0 0.0
    %1789 = vmatprep.subr.mxu0 0.0
    %1790 = vmatpush1.msra.mxu0 0.0
    %1791 = vmatprep.subr.mxu0 0.0
    %1792 = vmatpush1.msra.mxu0 0.0
    %1793 = vmatprep.subr.mxu0 0.0
    %1794 = vmatpush1.msra.mxu0 0.0
    %1795 = vmatprep.subr.mxu0 0.0
    %1796 = vmatpush1.msra.mxu0 0.0
    %1797 = vmatprep.subr.mxu0 0.0
    %1798 = vmatpush1.msra.mxu0 0.0
    %1799 = vmatprep.subr.mxu0 0.0
    %1800 = vmatpush1.msra.mxu0 0.0
    %1801 = vmatprep.subr.mxu0 0.0
    %1802 = vmatpush1.msra.mxu0 0.0
    %1803 = vmatprep.subr.mxu0 0.0
    %1804 = vmatpush1.msra.mxu0 0.0
    %1805 = vmatprep.subr.mxu0 0.0
    %1806 = vmatpush1.msra.mxu0 0.0
    %1807 = vmatprep.subr.mxu0 0.0
    %1808 = vmatpush1.msra.mxu0 0.0
    %1809 = vmatprep.subr.mxu0 0.0
    %1810 = vmatpush1.msra.mxu0 0.0
    %1811 = vmatprep.subr.mxu0 0.0
    %1812 = vmatpush1.msra.mxu0 0.0
    %1813 = vmatprep.subr.mxu0 0.0
    %1814 = vmatpush1.msra.mxu0 0.0
    %1815 = vmatprep.subr.mxu0 0.0
    %1816 = vmatpush1.msra.mxu0 0.0
    %1817 = vmatprep.subr.mxu0 0.0
    %1818 = vmatpush1.msra.mxu0 0.0
    %1819 = vmatprep.mubr.f32.mxu0 0.0
    %1820 = vmatmul.mubr.f32.gmra.mrb[0].mxu0 %v1421
    %v1821 = vpop.f32.mrb[0].mxu0
    %v1822 = vadd.f32 %v1203, %v1821
    %v1823 = vpop.f32.mrb[0].mxu0
    %v1824 = vadd.f32 %v1205, %v1823
    %1825 = vdwg.mxu0
    %1826 = vmatprep.subr.mxu0 %v355
    %1827 = vmatpush1.msra.mxu0 %v354
    %1828 = vmatprep.subr.mxu0 %v1457
    %1829 = vmatpush1.msra.mxu0 %v1454
    %1830 = vmatprep.subr.mxu0 0.0
    %1831 = vmatpush1.msra.mxu0 0.0
    %1832 = vmatprep.subr.mxu0 0.0
    %1833 = vmatpush1.msra.mxu0 0.0
    %1834 = vmatprep.subr.mxu0 0.0
    %1835 = vmatpush1.msra.mxu0 0.0
    %1836 = vmatprep.subr.mxu0 0.0
    %1837 = vmatpush1.msra.mxu0 0.0
    %1838 = vmatprep.subr.mxu0 0.0
    %1839 = vmatpush1.msra.mxu0 0.0
    %1840 = vmatprep.subr.mxu0 0.0
    %1841 = vmatpush1.msra.mxu0 0.0
    %1842 = vmatprep.subr.mxu0 0.0
    %1843 = vmatpush1.msra.mxu0 0.0
    %1844 = vmatprep.subr.mxu0 0.0
    %1845 = vmatpush1.msra.mxu0 0.0
    %1846 = vmatprep.subr.mxu0 0.0
    %1847 = vmatpush1.msra.mxu0 0.0
    %1848 = vmatprep.subr.mxu0 0.0
    %1849 = vmatpush1.msra.mxu0 0.0
    %1850 = vmatprep.subr.mxu0 0.0
    %1851 = vmatpush1.msra.mxu0 0.0
    %1852 = vmatprep.subr.mxu0 0.0
    %1853 = vmatpush1.msra.mxu0 0.0
    %1854 = vmatprep.subr.mxu0 0.0
    %1855 = vmatpush1.msra.mxu0 0.0
    %1856 = vmatprep.subr.mxu0 0.0
    %1857 = vmatpush1.msra.mxu0 0.0
    %1858 = vmatprep.subr.mxu0 0.0
    %1859 = vmatpush1.msra.mxu0 0.0
    %1860 = vmatprep.subr.mxu0 0.0
    %1861 = vmatpush1.msra.mxu0 0.0
    %1862 = vmatprep.subr.mxu0 0.0
    %1863 = vmatpush1.msra.mxu0 0.0
    %1864 = vmatprep.subr.mxu0 0.0
    %1865 = vmatpush1.msra.mxu0 0.0
    %1866 = vmatprep.subr.mxu0 0.0
    %1867 = vmatpush1.msra.mxu0 0.0
    %1868 = vmatprep.subr.mxu0 0.0
    %1869 = vmatpush1.msra.mxu0 0.0
    %1870 = vmatprep.subr.mxu0 0.0
    %1871 = vmatpush1.msra.mxu0 0.0
    %1872 = vmatprep.subr.mxu0 0.0
    %1873 = vmatpush1.msra.mxu0 0.0
    %1874 = vmatprep.subr.mxu0 0.0
    %1875 = vmatpush1.msra.mxu0 0.0
    %1876 = vmatprep.subr.mxu0 0.0
    %1877 = vmatpush1.msra.mxu0 0.0
    %1878 = vmatprep.subr.mxu0 0.0
    %1879 = vmatpush1.msra.mxu0 0.0
    %1880 = vmatprep.subr.mxu0 0.0
    %1881 = vmatpush1.msra.mxu0 0.0
    %1882 = vmatprep.subr.mxu0 0.0
    %1883 = vmatpush1.msra.mxu0 0.0
    %1884 = vmatprep.subr.mxu0 0.0
    %1885 = vmatpush1.msra.mxu0 0.0
    %1886 = vmatprep.subr.mxu0 0.0
    %1887 = vmatpush1.msra.mxu0 0.0
    %1888 = vmatprep.subr.mxu0 0.0
    %1889 = vmatpush1.msra.mxu0 0.0
    %1890 = vmatprep.mubr.f32.mxu0 0.0
    %1891 = vmatmul.mubr.f32.gmra.mrb[0].mxu0 %v1421
    %v1892 = vpop.f32.mrb[0].mxu0
    %v1893 = vadd.f32 %v1274, %v1892
    %v1894 = vpop.f32.mrb[0].mxu0
    %v1895 = vadd.f32 %v1276, %v1894
    %1896 = vdwg.mxu0
    %1897 = vmatprep.subr.mxu0 %v357
    %1898 = vmatpush1.msra.mxu0 %v356
    %1899 = vmatprep.subr.mxu0 %v1463
    %1900 = vmatpush1.msra.mxu0 %v1460
    %1901 = vmatprep.subr.mxu0 0.0
    %1902 = vmatpush1.msra.mxu0 0.0
    %1903 = vmatprep.subr.mxu0 0.0
    %1904 = vmatpush1.msra.mxu0 0.0
    %1905 = vmatprep.subr.mxu0 0.0
    %1906 = vmatpush1.msra.mxu0 0.0
    %1907 = vmatprep.subr.mxu0 0.0
    %1908 = vmatpush1.msra.mxu0 0.0
    %1909 = vmatprep.subr.mxu0 0.0
    %1910 = vmatpush1.msra.mxu0 0.0
    %1911 = vmatprep.subr.mxu0 0.0
    %1912 = vmatpush1.msra.mxu0 0.0
    %1913 = vmatprep.subr.mxu0 0.0
    %1914 = vmatpush1.msra.mxu0 0.0
    %1915 = vmatprep.subr.mxu0 0.0
    %1916 = vmatpush1.msra.mxu0 0.0
    %1917 = vmatprep.subr.mxu0 0.0
    %1918 = vmatpush1.msra.mxu0 0.0
    %1919 = vmatprep.subr.mxu0 0.0
    %1920 = vmatpush1.msra.mxu0 0.0
    %1921 = vmatprep.subr.mxu0 0.0
    %1922 = vmatpush1.msra.mxu0 0.0
    %1923 = vmatprep.subr.mxu0 0.0
    %1924 = vmatpush1.msra.mxu0 0.0
    %1925 = vmatprep.subr.mxu0 0.0
    %1926 = vmatpush1.msra.mxu0 0.0
    %1927 = vmatprep.subr.mxu0 0.0
    %1928 = vmatpush1.msra.mxu0 0.0
    %1929 = vmatprep.subr.mxu0 0.0
    %1930 = vmatpush1.msra.mxu0 0.0
    %1931 = vmatprep.subr.mxu0 0.0
    %1932 = vmatpush1.msra.mxu0 0.0
    %1933 = vmatprep.subr.mxu0 0.0
    %1934 = vmatpush1.msra.mxu0 0.0
    %1935 = vmatprep.subr.mxu0 0.0
    %1936 = vmatpush1.msra.mxu0 0.0
    %1937 = vmatprep.subr.mxu0 0.0
    %1938 = vmatpush1.msra.mxu0 0.0
    %1939 = vmatprep.subr.mxu0 0.0
    %1940 = vmatpush1.msra.mxu0 0.0
    %1941 = vmatprep.subr.mxu0 0.0
    %1942 = vmatpush1.msra.mxu0 0.0
    %1943 = vmatprep.subr.mxu0 0.0
    %1944 = vmatpush1.msra.mxu0 0.0
    %1945 = vmatprep.subr.mxu0 0.0
    %1946 = vmatpush1.msra.mxu0 0.0
    %1947 = vmatprep.subr.mxu0 0.0
    %1948 = vmatpush1.msra.mxu0 0.0
    %1949 = vmatprep.subr.mxu0 0.0
    %1950 = vmatpush1.msra.mxu0 0.0
    %1951 = vmatprep.subr.mxu0 0.0
    %1952 = vmatpush1.msra.mxu0 0.0
    %1953 = vmatprep.subr.mxu0 0.0
    %1954 = vmatpush1.msra.mxu0 0.0
    %1955 = vmatprep.subr.mxu0 0.0
    %1956 = vmatpush1.msra.mxu0 0.0
    %1957 = vmatprep.subr.mxu0 0.0
    %1958 = vmatpush1.msra.mxu0 0.0
    %1959 = vmatprep.subr.mxu0 0.0
    %1960 = vmatpush1.msra.mxu0 0.0
    %1961 = vmatprep.mubr.f32.mxu0 0.0
    %1962 = vmatmul.mubr.f32.gmra.mrb[0].mxu0 %v1421
    %v1963 = vpop.f32.mrb[0].mxu0
    %v1964 = vadd.f32 %v1345, %v1963
    %v1965 = vpop.f32.mrb[0].mxu0
    %v1966 = vadd.f32 %v1347, %v1965
    %1967 = vdwg.mxu0
    %1968 = vmatprep.subr.mxu0 %v359
    %1969 = vmatpush1.msra.mxu0 %v358
    %1970 = vmatprep.subr.mxu0 %v1469
    %1971 = vmatpush1.msra.mxu0 %v1466
    %1972 = vmatprep.subr.mxu0 0.0
    %1973 = vmatpush1.msra.mxu0 0.0
    %1974 = vmatprep.subr.mxu0 0.0
    %1975 = vmatpush1.msra.mxu0 0.0
    %1976 = vmatprep.subr.mxu0 0.0
    %1977 = vmatpush1.msra.mxu0 0.0
    %1978 = vmatprep.subr.mxu0 0.0
    %1979 = vmatpush1.msra.mxu0 0.0
    %1980 = vmatprep.subr.mxu0 0.0
    %1981 = vmatpush1.msra.mxu0 0.0
    %1982 = vmatprep.subr.mxu0 0.0
    %1983 = vmatpush1.msra.mxu0 0.0
    %1984 = vmatprep.subr.mxu0 0.0
    %1985 = vmatpush1.msra.mxu0 0.0
    %1986 = vmatprep.subr.mxu0 0.0
    %1987 = vmatpush1.msra.mxu0 0.0
    %1988 = vmatprep.subr.mxu0 0.0
    %1989 = vmatpush1.msra.mxu0 0.0
    %1990 = vmatprep.subr.mxu0 0.0
    %1991 = vmatpush1.msra.mxu0 0.0
    %1992 = vmatprep.subr.mxu0 0.0
    %1993 = vmatpush1.msra.mxu0 0.0
    %1994 = vmatprep.subr.mxu0 0.0
    %1995 = vmatpush1.msra.mxu0 0.0
    %1996 = vmatprep.subr.mxu0 0.0
    %1997 = vmatpush1.msra.mxu0 0.0
    %1998 = vmatprep.subr.mxu0 0.0
    %1999 = vmatpush1.msra.mxu0 0.0
    %2000 = vmatprep.subr.mxu0 0.0
    %2001 = vmatpush1.msra.mxu0 0.0
    %2002 = vmatprep.subr.mxu0 0.0
    %2003 = vmatpush1.msra.mxu0 0.0
    %2004 = vmatprep.subr.mxu0 0.0
    %2005 = vmatpush1.msra.mxu0 0.0
    %2006 = vmatprep.subr.mxu0 0.0
    %2007 = vmatpush1.msra.mxu0 0.0
    %2008 = vmatprep.subr.mxu0 0.0
    %2009 = vmatpush1.msra.mxu0 0.0
    %2010 = vmatprep.subr.mxu0 0.0
    %2011 = vmatpush1.msra.mxu0 0.0
    %2012 = vmatprep.subr.mxu0 0.0
    %2013 = vmatpush1.msra.mxu0 0.0
    %2014 = vmatprep.subr.mxu0 0.0
    %2015 = vmatpush1.msra.mxu0 0.0
    %2016 = vmatprep.subr.mxu0 0.0
    %2017 = vmatpush1.msra.mxu0 0.0
    %2018 = vmatprep.subr.mxu0 0.0
    %2019 = vmatpush1.msra.mxu0 0.0
    %2020 = vmatprep.subr.mxu0 0.0
    %2021 = vmatpush1.msra.mxu0 0.0
    %2022 = vmatprep.subr.mxu0 0.0
    %2023 = vmatpush1.msra.mxu0 0.0
    %2024 = vmatprep.subr.mxu0 0.0
    %2025 = vmatpush1.msra.mxu0 0.0
    %2026 = vmatprep.subr.mxu0 0.0
    %2027 = vmatpush1.msra.mxu0 0.0
    %2028 = vmatprep.subr.mxu0 0.0
    %2029 = vmatpush1.msra.mxu0 0.0
    %2030 = vmatprep.subr.mxu0 0.0
    %2031 = vmatpush1.msra.mxu0 0.0
    %2032 = vmatprep.mubr.f32.mxu0 0.0
    %2033 = vmatmul.mubr.f32.gmra.mrb[0].mxu0 %v1421
    %v2034 = vpop.f32.mrb[0].mxu0
    %v2035 = vadd.f32 %v1416, %v2034
    %v2036 = vpop.f32.mrb[0].mxu0
    %v2037 = vadd.f32 %v1418, %v2036
    %2038 = vdwg.mxu0
    %v2039 = vld [vmem:[#allocation5] sm:$0xf]
    %v2040 = vld [vmem:[#allocation5 + $0x8] sm:$0xf]
    %v2041 = vld [vmem:[#allocation5 + $0x10] sm:$0xf]
    %v2042 = vld [vmem:[#allocation5 + $0x18] sm:$0xf]
    %v2043 = vld [vmem:[#allocation5 + $0x20] sm:$0xf]
    %v2044 = vld [vmem:[#allocation5 + $0x28] sm:$0xf]
    %v2045 = vld [vmem:[#allocation5 + $0x30] sm:$0xf]
    %v2046 = vld [vmem:[#allocation5 + $0x38] sm:$0xf]
    %v2047 = vld [vmem:[#allocation5 + $0x40] sm:$0xf]
    %2057 = vrot.lane.b32.xlu0 %v2039, 62
    %v2058 = vpop.permute.xlu0 %2057
    %2059 = vrot.lane.b32.xlu0 %v2040, 62
    %v2060 = vpop.permute.xlu0 %2059
    %2061 = vrot.lane.b32.xlu0 %v2041, 62
    %v2062 = vpop.permute.xlu0 %2061
    %2063 = vrot.lane.b32.xlu0 %v2042, 62
    %v2064 = vpop.permute.xlu0 %2063
    %2065 = vrot.lane.b32.xlu0 %v2043, 62
    %v2066 = vpop.permute.xlu0 %2065
    %2067 = vrot.lane.b32.xlu0 %v2044, 62
    %v2068 = vpop.permute.xlu0 %2067
    %2069 = vrot.lane.b32.xlu0 %v2045, 62
    %v2070 = vpop.permute.xlu0 %2069
    %2071 = vrot.lane.b32.xlu0 %v2046, 62
    %v2072 = vpop.permute.xlu0 %2071
    %2073 = vrot.lane.b32.xlu0 %v2047, 62
    %v2074 = vpop.permute.xlu0 %2073
    %vm2075 = vcmask 506880
    %v2076 = vsel %vm2075, %v2058, %v2060
    %v2077 = vsel %vm2075, %v2060, %v2062
    %v2078 = vsel %vm2075, %v2062, %v2064
    %v2079 = vsel %vm2075, %v2064, %v2066
    %v2080 = vsel %vm2075, %v2066, %v2068
    %v2081 = vsel %vm2075, %v2068, %v2070
    %v2082 = vsel %vm2075, %v2070, %v2072
    %v2083 = vsel %vm2075, %v2072, %v2074
    %2092 = vst [vmem:[#allocation4] sm:$0xf] %v2076
    %2093 = vst [vmem:[#allocation4 + $0x8] sm:$0xf] %v2077
    %2094 = vst [vmem:[#allocation4 + $0x10] sm:$0xf] %v2078
    %2095 = vst [vmem:[#allocation4 + $0x18] sm:$0xf] %v2079
    %2096 = vst [vmem:[#allocation4 + $0x20] sm:$0xf] %v2080
    %2097 = vst [vmem:[#allocation4 + $0x28] sm:$0xf] %v2081
    %2098 = vst [vmem:[#allocation4 + $0x30] sm:$0xf] %v2082
    %2099 = vst [vmem:[#allocation4 + $0x38] sm:$0xf] %v2083
    %v2100 = vld [vmem:[#allocation5] sm:$0xf0]
    %v2101 = vld [vmem:[#allocation5 + $0x8] sm:$0xf0]
    %v2102 = vld [vmem:[#allocation5 + $0x10] sm:$0xf0]
    %v2103 = vld [vmem:[#allocation5 + $0x18] sm:$0xf0]
    %v2104 = vld [vmem:[#allocation5 + $0x20] sm:$0xf0]
    %v2105 = vld [vmem:[#allocation5 + $0x28] sm:$0xf0]
    %v2106 = vld [vmem:[#allocation5 + $0x30] sm:$0xf0]
    %v2107 = vld [vmem:[#allocation5 + $0x38] sm:$0xf0]
    %v2108 = vld [vmem:[#allocation5 + $0x40] sm:$0xf0]
    %v2118 = vrot.slane %v2100, 4
    %v2119 = vrot.slane %v2101, 4
    %v2120 = vrot.slane %v2102, 4
    %v2121 = vrot.slane %v2103, 4
    %v2122 = vrot.slane %v2104, 4
    %v2123 = vrot.slane %v2105, 4
    %v2124 = vrot.slane %v2106, 4
    %v2125 = vrot.slane %v2107, 4
    %v2126 = vrot.slane %v2108, 4
    %2127 = vrot.lane.b32.xlu0 %v2118, 62
    %v2128 = vpop.permute.xlu0 %2127
    %2129 = vrot.lane.b32.xlu0 %v2119, 62
    %v2130 = vpop.permute.xlu0 %2129
    %2131 = vrot.lane.b32.xlu0 %v2120, 62
    %v2132 = vpop.permute.xlu0 %2131
    %2133 = vrot.lane.b32.xlu0 %v2121, 62
    %v2134 = vpop.permute.xlu0 %2133
    %2135 = vrot.lane.b32.xlu0 %v2122, 62
    %v2136 = vpop.permute.xlu0 %2135
    %2137 = vrot.lane.b32.xlu0 %v2123, 62
    %v2138 = vpop.permute.xlu0 %2137
    %2139 = vrot.lane.b32.xlu0 %v2124, 62
    %v2140 = vpop.permute.xlu0 %2139
    %2141 = vrot.lane.b32.xlu0 %v2125, 62
    %v2142 = vpop.permute.xlu0 %2141
    %2143 = vrot.lane.b32.xlu0 %v2126, 62
    %v2144 = vpop.permute.xlu0 %2143
    %v2145 = vsel %vm2075, %v2128, %v2130
    %v2146 = vsel %vm2075, %v2130, %v2132
    %v2147 = vsel %vm2075, %v2132, %v2134
    %v2148 = vsel %vm2075, %v2134, %v2136
    %v2149 = vsel %vm2075, %v2136, %v2138
    %v2150 = vsel %vm2075, %v2138, %v2140
    %v2151 = vsel %vm2075, %v2140, %v2142
    %v2152 = vsel %vm2075, %v2142, %v2144
    %2161 = vst [vmem:[#allocation4 + $0x40] sm:$0xf] %v2145
    %2162 = vst [vmem:[#allocation4 + $0x48] sm:$0xf] %v2146
    %2163 = vst [vmem:[#allocation4 + $0x50] sm:$0xf] %v2147
    %2164 = vst [vmem:[#allocation4 + $0x58] sm:$0xf] %v2148
    %2165 = vst [vmem:[#allocation4 + $0x60] sm:$0xf] %v2149
    %2166 = vst [vmem:[#allocation4 + $0x68] sm:$0xf] %v2150
    %2167 = vst [vmem:[#allocation4 + $0x70] sm:$0xf] %v2151
    %2168 = vst [vmem:[#allocation4 + $0x78] sm:$0xf] %v2152
    %v2169 = vld [vmem:[#allocation5] sm:$0xf]
    %v2170 = vld [vmem:[#allocation5 + $0x8] sm:$0xf]
    %v2171 = vld [vmem:[#allocation5 + $0x10] sm:$0xf]
    %v2172 = vld [vmem:[#allocation5 + $0x18] sm:$0xf]
    %v2173 = vld [vmem:[#allocation5 + $0x20] sm:$0xf]
    %v2174 = vld [vmem:[#allocation5 + $0x28] sm:$0xf]
    %v2175 = vld [vmem:[#allocation5 + $0x30] sm:$0xf]
    %v2176 = vld [vmem:[#allocation5 + $0x38] sm:$0xf]
    %v2177 = vld [vmem:[#allocation5 + $0x40] sm:$0xf]
    %v2187 = vrot.slane %v2169, 4
    %v2188 = vrot.slane %v2170, 4
    %v2189 = vrot.slane %v2171, 4
    %v2190 = vrot.slane %v2172, 4
    %v2191 = vrot.slane %v2173, 4
    %v2192 = vrot.slane %v2174, 4
    %v2193 = vrot.slane %v2175, 4
    %v2194 = vrot.slane %v2176, 4
    %v2195 = vrot.slane %v2177, 4
    %2196 = vrot.lane.b32.xlu0 %v2187, 61
    %v2197 = vpop.permute.xlu0 %2196
    %2198 = vrot.lane.b32.xlu0 %v2188, 61
    %v2199 = vpop.permute.xlu0 %2198
    %2200 = vrot.lane.b32.xlu0 %v2189, 61
    %v2201 = vpop.permute.xlu0 %2200
    %2202 = vrot.lane.b32.xlu0 %v2190, 61
    %v2203 = vpop.permute.xlu0 %2202
    %2204 = vrot.lane.b32.xlu0 %v2191, 61
    %v2205 = vpop.permute.xlu0 %2204
    %2206 = vrot.lane.b32.xlu0 %v2192, 61
    %v2207 = vpop.permute.xlu0 %2206
    %2208 = vrot.lane.b32.xlu0 %v2193, 61
    %v2209 = vpop.permute.xlu0 %2208
    %2210 = vrot.lane.b32.xlu0 %v2194, 61
    %v2211 = vpop.permute.xlu0 %2210
    %2212 = vrot.lane.b32.xlu0 %v2195, 61
    %v2213 = vpop.permute.xlu0 %2212
    %vm2214 = vcmask 498688
    %v2215 = vsel %vm2214, %v2197, %v2199
    %v2216 = vsel %vm2214, %v2199, %v2201
    %v2217 = vsel %vm2214, %v2201, %v2203
    %v2218 = vsel %vm2214, %v2203, %v2205
    %v2219 = vsel %vm2214, %v2205, %v2207
    %v2220 = vsel %vm2214, %v2207, %v2209
    %v2221 = vsel %vm2214, %v2209, %v2211
    %v2222 = vsel %vm2214, %v2211, %v2213
    %2231 = vst [vmem:[#allocation4] sm:$0xf0] %v2215
    %2232 = vst [vmem:[#allocation4 + $0x8] sm:$0xf0] %v2216
    %2233 = vst [vmem:[#allocation4 + $0x10] sm:$0xf0] %v2217
    %2234 = vst [vmem:[#allocation4 + $0x18] sm:$0xf0] %v2218
    %2235 = vst [vmem:[#allocation4 + $0x20] sm:$0xf0] %v2219
    %2236 = vst [vmem:[#allocation4 + $0x28] sm:$0xf0] %v2220
    %2237 = vst [vmem:[#allocation4 + $0x30] sm:$0xf0] %v2221
    %2238 = vst [vmem:[#allocation4 + $0x38] sm:$0xf0] %v2222
    %v2239 = vld [vmem:[#allocation5] sm:$0xf0]
    %v2240 = vld [vmem:[#allocation5 + $0x8] sm:$0xf0]
    %v2241 = vld [vmem:[#allocation5 + $0x10] sm:$0xf0]
    %v2242 = vld [vmem:[#allocation5 + $0x18] sm:$0xf0]
    %v2243 = vld [vmem:[#allocation5 + $0x20] sm:$0xf0]
    %v2244 = vld [vmem:[#allocation5 + $0x28] sm:$0xf0]
    %v2245 = vld [vmem:[#allocation5 + $0x30] sm:$0xf0]
    %v2246 = vld [vmem:[#allocation5 + $0x38] sm:$0xf0]
    %v2247 = vld [vmem:[#allocation5 + $0x40] sm:$0xf0]
    %2257 = vrot.lane.b32.xlu0 %v2239, 61
    %v2258 = vpop.permute.xlu0 %2257
    %2259 = vrot.lane.b32.xlu0 %v2240, 61
    %v2260 = vpop.permute.xlu0 %2259
    %2261 = vrot.lane.b32.xlu0 %v2241, 61
    %v2262 = vpop.permute.xlu0 %2261
    %2263 = vrot.lane.b32.xlu0 %v2242, 61
    %v2264 = vpop.permute.xlu0 %2263
    %2265 = vrot.lane.b32.xlu0 %v2243, 61
    %v2266 = vpop.permute.xlu0 %2265
    %2267 = vrot.lane.b32.xlu0 %v2244, 61
    %v2268 = vpop.permute.xlu0 %2267
    %2269 = vrot.lane.b32.xlu0 %v2245, 61
    %v2270 = vpop.permute.xlu0 %2269
    %2271 = vrot.lane.b32.xlu0 %v2246, 61
    %v2272 = vpop.permute.xlu0 %2271
    %2273 = vrot.lane.b32.xlu0 %v2247, 61
    %v2274 = vpop.permute.xlu0 %2273
    %v2275 = vsel %vm2214, %v2258, %v2260
    %v2276 = vsel %vm2214, %v2260, %v2262
    %v2277 = vsel %vm2214, %v2262, %v2264
    %v2278 = vsel %vm2214, %v2264, %v2266
    %v2279 = vsel %vm2214, %v2266, %v2268
    %v2280 = vsel %vm2214, %v2268, %v2270
    %v2281 = vsel %vm2214, %v2270, %v2272
    %v2282 = vsel %vm2214, %v2272, %v2274
    %2291 = vst [vmem:[#allocation4 + $0x40] sm:$0xf0] %v2275
    %2292 = vst [vmem:[#allocation4 + $0x48] sm:$0xf0] %v2276
    %2293 = vst [vmem:[#allocation4 + $0x50] sm:$0xf0] %v2277
    %2294 = vst [vmem:[#allocation4 + $0x58] sm:$0xf0] %v2278
    %2295 = vst [vmem:[#allocation4 + $0x60] sm:$0xf0] %v2279
    %2296 = vst [vmem:[#allocation4 + $0x68] sm:$0xf0] %v2280
    %2297 = vst [vmem:[#allocation4 + $0x70] sm:$0xf0] %v2281
    %2298 = vst [vmem:[#allocation4 + $0x78] sm:$0xf0] %v2282
    %v2299 = vld [vmem:[#allocation5] sm:$0xf]
    %v2300 = vld [vmem:[#allocation5 + $0x8] sm:$0xf]
    %v2301 = vld [vmem:[#allocation5 + $0x10] sm:$0xf]
    %v2302 = vld [vmem:[#allocation5 + $0x18] sm:$0xf]
    %v2303 = vld [vmem:[#allocation5 + $0x20] sm:$0xf]
    %v2304 = vld [vmem:[#allocation5 + $0x28] sm:$0xf]
    %v2305 = vld [vmem:[#allocation5 + $0x30] sm:$0xf]
    %v2306 = vld [vmem:[#allocation5 + $0x38] sm:$0xf]
    %v2307 = vld [vmem:[#allocation5 + $0x40] sm:$0xf]
    %2317 = vrot.lane.b32.xlu0 %v2299, 60
    %v2318 = vpop.permute.xlu0 %2317
    %2319 = vrot.lane.b32.xlu0 %v2300, 60
    %v2320 = vpop.permute.xlu0 %2319
    %2321 = vrot.lane.b32.xlu0 %v2301, 60
    %v2322 = vpop.permute.xlu0 %2321
    %2323 = vrot.lane.b32.xlu0 %v2302, 60
    %v2324 = vpop.permute.xlu0 %2323
    %2325 = vrot.lane.b32.xlu0 %v2303, 60
    %v2326 = vpop.permute.xlu0 %2325
    %2327 = vrot.lane.b32.xlu0 %v2304, 60
    %v2328 = vpop.permute.xlu0 %2327
    %2329 = vrot.lane.b32.xlu0 %v2305, 60
    %v2330 = vpop.permute.xlu0 %2329
    %2331 = vrot.lane.b32.xlu0 %v2306, 60
    %v2332 = vpop.permute.xlu0 %2331
    %2333 = vrot.lane.b32.xlu0 %v2307, 60
    %v2334 = vpop.permute.xlu0 %2333
    %vm2335 = vcmask 490496
    %v2336 = vsel %vm2335, %v2318, %v2320
    %v2337 = vsel %vm2335, %v2320, %v2322
    %v2338 = vsel %vm2335, %v2322, %v2324
    %v2339 = vsel %vm2335, %v2324, %v2326
    %v2340 = vsel %vm2335, %v2326, %v2328
    %v2341 = vsel %vm2335, %v2328, %v2330
    %v2342 = vsel %vm2335, %v2330, %v2332
    %v2343 = vsel %vm2335, %v2332, %v2334
    %2352 = vst [vmem:[#allocation4 + $0x80] sm:$0xf] %v2336
    %2353 = vst [vmem:[#allocation4 + $0x88] sm:$0xf] %v2337
    %2354 = vst [vmem:[#allocation4 + $0x90] sm:$0xf] %v2338
    %2355 = vst [vmem:[#allocation4 + $0x98] sm:$0xf] %v2339
    %2356 = vst [vmem:[#allocation4 + $0xa0] sm:$0xf] %v2340
    %2357 = vst [vmem:[#allocation4 + $0xa8] sm:$0xf] %v2341
    %2358 = vst [vmem:[#allocation4 + $0xb0] sm:$0xf] %v2342
    %2359 = vst [vmem:[#allocation4 + $0xb8] sm:$0xf] %v2343
    %v2360 = vld [vmem:[#allocation5] sm:$0xf0]
    %v2361 = vld [vmem:[#allocation5 + $0x8] sm:$0xf0]
    %v2362 = vld [vmem:[#allocation5 + $0x10] sm:$0xf0]
    %v2363 = vld [vmem:[#allocation5 + $0x18] sm:$0xf0]
    %v2364 = vld [vmem:[#allocation5 + $0x20] sm:$0xf0]
    %v2365 = vld [vmem:[#allocation5 + $0x28] sm:$0xf0]
    %v2366 = vld [vmem:[#allocation5 + $0x30] sm:$0xf0]
    %v2367 = vld [vmem:[#allocation5 + $0x38] sm:$0xf0]
    %v2368 = vld [vmem:[#allocation5 + $0x40] sm:$0xf0]
    %v2378 = vrot.slane %v2360, 4
    %v2379 = vrot.slane %v2361, 4
    %v2380 = vrot.slane %v2362, 4
    %v2381 = vrot.slane %v2363, 4
    %v2382 = vrot.slane %v2364, 4
    %v2383 = vrot.slane %v2365, 4
    %v2384 = vrot.slane %v2366, 4
    %v2385 = vrot.slane %v2367, 4
    %v2386 = vrot.slane %v2368, 4
    %2387 = vrot.lane.b32.xlu0 %v2378, 60
    %v2388 = vpop.permute.xlu0 %2387
    %2389 = vrot.lane.b32.xlu0 %v2379, 60
    %v2390 = vpop.permute.xlu0 %2389
    %2391 = vrot.lane.b32.xlu0 %v2380, 60
    %v2392 = vpop.permute.xlu0 %2391
    %2393 = vrot.lane.b32.xlu0 %v2381, 60
    %v2394 = vpop.permute.xlu0 %2393
    %2395 = vrot.lane.b32.xlu0 %v2382, 60
    %v2396 = vpop.permute.xlu0 %2395
    %2397 = vrot.lane.b32.xlu0 %v2383, 60
    %v2398 = vpop.permute.xlu0 %2397
    %2399 = vrot.lane.b32.xlu0 %v2384, 60
    %v2400 = vpop.permute.xlu0 %2399
    %2401 = vrot.lane.b32.xlu0 %v2385, 60
    %v2402 = vpop.permute.xlu0 %2401
    %2403 = vrot.lane.b32.xlu0 %v2386, 60
    %v2404 = vpop.permute.xlu0 %2403
    %v2405 = vsel %vm2335, %v2388, %v2390
    %v2406 = vsel %vm2335, %v2390, %v2392
    %v2407 = vsel %vm2335, %v2392, %v2394
    %v2408 = vsel %vm2335, %v2394, %v2396
    %v2409 = vsel %vm2335, %v2396, %v2398
    %v2410 = vsel %vm2335, %v2398, %v2400
    %v2411 = vsel %vm2335, %v2400, %v2402
    %v2412 = vsel %vm2335, %v2402, %v2404
    %2421 = vst [vmem:[#allocation4 + $0xc0] sm:$0xf] %v2405
    %2422 = vst [vmem:[#allocation4 + $0xc8] sm:$0xf] %v2406
    %2423 = vst [vmem:[#allocation4 + $0xd0] sm:$0xf] %v2407
    %2424 = vst [vmem:[#allocation4 + $0xd8] sm:$0xf] %v2408
    %2425 = vst [vmem:[#allocation4 + $0xe0] sm:$0xf] %v2409
    %2426 = vst [vmem:[#allocation4 + $0xe8] sm:$0xf] %v2410
    %2427 = vst [vmem:[#allocation4 + $0xf0] sm:$0xf] %v2411
    %2428 = vst [vmem:[#allocation4 + $0xf8] sm:$0xf] %v2412
    %v2429 = vld [vmem:[%s1 + $0x10] sm:$0xff]
    %v2430 = vld [vmem:[#allocation4] sm:$0xff]
    %v2431 = vld [vmem:[#allocation4 + $0x8] sm:$0xff]
    %v2432 = vld [vmem:[#allocation4 + $0x10] sm:$0xff]
    %v2433 = vld [vmem:[#allocation4 + $0x18] sm:$0xff]
    %v2434 = vld [vmem:[#allocation4 + $0x20] sm:$0xff]
    %v2435 = vld [vmem:[#allocation4 + $0x28] sm:$0xff]
    %v2436 = vld [vmem:[#allocation4 + $0x30] sm:$0xff]
    %v2437 = vld [vmem:[#allocation4 + $0x38] sm:$0xff]
    %v2438 = vld [vmem:[#allocation4 + $0x40] sm:$0xff]
    %v2439 = vld [vmem:[#allocation4 + $0x48] sm:$0xff]
    %v2440 = vld [vmem:[#allocation4 + $0x50] sm:$0xff]
    %v2441 = vld [vmem:[#allocation4 + $0x58] sm:$0xff]
    %v2442 = vld [vmem:[#allocation4 + $0x60] sm:$0xff]
    %v2443 = vld [vmem:[#allocation4 + $0x68] sm:$0xff]
    %v2444 = vld [vmem:[#allocation4 + $0x70] sm:$0xff]
    %v2445 = vld [vmem:[#allocation4 + $0x78] sm:$0xff]
    %v2446 = vld [vmem:[#allocation4 + $0x80] sm:$0xf]
    %v2447 = vld [vmem:[#allocation4 + $0x88] sm:$0xf]
    %v2448 = vld [vmem:[#allocation4 + $0x90] sm:$0xf]
    %v2449 = vld [vmem:[#allocation4 + $0x98] sm:$0xf]
    %v2450 = vld [vmem:[#allocation4 + $0xa0] sm:$0xf]
    %v2451 = vld [vmem:[#allocation4 + $0xa8] sm:$0xf]
    %v2452 = vld [vmem:[#allocation4 + $0xb0] sm:$0xf]
    %v2453 = vld [vmem:[#allocation4 + $0xb8] sm:$0xf]
    %v2454 = vld [vmem:[#allocation4 + $0xc0] sm:$0xf]
    %v2455 = vld [vmem:[#allocation4 + $0xc8] sm:$0xf]
    %v2456 = vld [vmem:[#allocation4 + $0xd0] sm:$0xf]
    %v2457 = vld [vmem:[#allocation4 + $0xd8] sm:$0xf]
    %v2458 = vld [vmem:[#allocation4 + $0xe0] sm:$0xf]
    %v2459 = vld [vmem:[#allocation4 + $0xe8] sm:$0xf]
    %v2460 = vld [vmem:[#allocation4 + $0xf0] sm:$0xf]
    %v2461 = vld [vmem:[#allocation4 + $0xf8] sm:$0xf]
    %v2463 = vsel %vm799, %v2429, 0
    %v2466 = vsel %vm803, %v2446, 0
    %v2469 = vsel %vm803, %v2447, 0
    %v2472 = vsel %vm803, %v2448, 0
    %v2475 = vsel %vm803, %v2449, 0
    %v2478 = vsel %vm803, %v2450, 0
    %v2481 = vsel %vm803, %v2451, 0
    %v2484 = vsel %vm803, %v2452, 0
    %v2487 = vsel %vm803, %v2453, 0
    %v2490 = vsel %vm803, %v2454, 0
    %v2493 = vsel %vm803, %v2455, 0
    %v2496 = vsel %vm803, %v2456, 0
    %v2499 = vsel %vm803, %v2457, 0
    %v2502 = vsel %vm803, %v2458, 0
    %v2505 = vsel %vm803, %v2459, 0
    %v2508 = vsel %vm803, %v2460, 0
    %v2511 = vsel %vm803, %v2461, 0
    %2513 = vmatprep.subr.mxu0 %v2431
    %2514 = vmatpush1.msra.mxu0 %v2430
    %2515 = vmatprep.subr.mxu0 %v2469
    %2516 = vmatpush1.msra.mxu0 %v2466
    %2517 = vmatprep.subr.mxu0 0.0
    %2518 = vmatpush1.msra.mxu0 0.0
    %2519 = vmatprep.subr.mxu0 0.0
    %2520 = vmatpush1.msra.mxu0 0.0
    %2521 = vmatprep.subr.mxu0 0.0
    %2522 = vmatpush1.msra.mxu0 0.0
    %2523 = vmatprep.subr.mxu0 0.0
    %2524 = vmatpush1.msra.mxu0 0.0
    %2525 = vmatprep.subr.mxu0 0.0
    %2526 = vmatpush1.msra.mxu0 0.0
    %2527 = vmatprep.subr.mxu0 0.0
    %2528 = vmatpush1.msra.mxu0 0.0
    %2529 = vmatprep.subr.mxu0 0.0
    %2530 = vmatpush1.msra.mxu0 0.0
    %2531 = vmatprep.subr.mxu0 0.0
    %2532 = vmatpush1.msra.mxu0 0.0
    %2533 = vmatprep.subr.mxu0 0.0
    %2534 = vmatpush1.msra.mxu0 0.0
    %2535 = vmatprep.subr.mxu0 0.0
    %2536 = vmatpush1.msra.mxu0 0.0
    %2537 = vmatprep.subr.mxu0 0.0
    %2538 = vmatpush1.msra.mxu0 0.0
    %2539 = vmatprep.subr.mxu0 0.0
    %2540 = vmatpush1.msra.mxu0 0.0
    %2541 = vmatprep.subr.mxu0 0.0
    %2542 = vmatpush1.msra.mxu0 0.0
    %2543 = vmatprep.subr.mxu0 0.0
    %2544 = vmatpush1.msra.mxu0 0.0
    %2545 = vmatprep.subr.mxu0 0.0
    %2546 = vmatpush1.msra.mxu0 0.0
    %2547 = vmatprep.subr.mxu0 0.0
    %2548 = vmatpush1.msra.mxu0 0.0
    %2549 = vmatprep.subr.mxu0 0.0
    %2550 = vmatpush1.msra.mxu0 0.0
    %2551 = vmatprep.subr.mxu0 0.0
    %2552 = vmatpush1.msra.mxu0 0.0
    %2553 = vmatprep.subr.mxu0 0.0
    %2554 = vmatpush1.msra.mxu0 0.0
    %2555 = vmatprep.subr.mxu0 0.0
    %2556 = vmatpush1.msra.mxu0 0.0
    %2557 = vmatprep.subr.mxu0 0.0
    %2558 = vmatpush1.msra.mxu0 0.0
    %2559 = vmatprep.subr.mxu0 0.0
    %2560 = vmatpush1.msra.mxu0 0.0
    %2561 = vmatprep.subr.mxu0 0.0
    %2562 = vmatpush1.msra.mxu0 0.0
    %2563 = vmatprep.subr.mxu0 0.0
    %2564 = vmatpush1.msra.mxu0 0.0
    %2565 = vmatprep.subr.mxu0 0.0
    %2566 = vmatpush1.msra.mxu0 0.0
    %2567 = vmatprep.subr.mxu0 0.0
    %2568 = vmatpush1.msra.mxu0 0.0
    %2569 = vmatprep.subr.mxu0 0.0
    %2570 = vmatpush1.msra.mxu0 0.0
    %2571 = vmatprep.subr.mxu0 0.0
    %2572 = vmatpush1.msra.mxu0 0.0
    %2573 = vmatprep.subr.mxu0 0.0
    %2574 = vmatpush1.msra.mxu0 0.0
    %2575 = vmatprep.subr.mxu0 0.0
    %2576 = vmatpush1.msra.mxu0 0.0
    %2577 = vmatprep.mubr.f32.mxu0 0.0
    %2578 = vmatmul.mubr.f32.gmra.mrb[0].mxu0 %v2463
    %v2579 = vpop.f32.mrb[0].mxu0
    %v2580 = vadd.f32 0.0, %v2579
    %v2581 = vpop.f32.mrb[0].mxu0
    %v2582 = vadd.f32 0.0, %v2581
    %2583 = vdwg.mxu0
    %2584 = vmatprep.subr.mxu0 %v2433
    %2585 = vmatpush1.msra.mxu0 %v2432
    %2586 = vmatprep.subr.mxu0 %v2475
    %2587 = vmatpush1.msra.mxu0 %v2472
    %2588 = vmatprep.subr.mxu0 0.0
    %2589 = vmatpush1.msra.mxu0 0.0
    %2590 = vmatprep.subr.mxu0 0.0
    %2591 = vmatpush1.msra.mxu0 0.0
    %2592 = vmatprep.subr.mxu0 0.0
    %2593 = vmatpush1.msra.mxu0 0.0
    %2594 = vmatprep.subr.mxu0 0.0
    %2595 = vmatpush1.msra.mxu0 0.0
    %2596 = vmatprep.subr.mxu0 0.0
    %2597 = vmatpush1.msra.mxu0 0.0
    %2598 = vmatprep.subr.mxu0 0.0
    %2599 = vmatpush1.msra.mxu0 0.0
    %2600 = vmatprep.subr.mxu0 0.0
    %2601 = vmatpush1.msra.mxu0 0.0
    %2602 = vmatprep.subr.mxu0 0.0
    %2603 = vmatpush1.msra.mxu0 0.0
    %2604 = vmatprep.subr.mxu0 0.0
    %2605 = vmatpush1.msra.mxu0 0.0
    %2606 = vmatprep.subr.mxu0 0.0
    %2607 = vmatpush1.msra.mxu0 0.0
    %2608 = vmatprep.subr.mxu0 0.0
    %2609 = vmatpush1.msra.mxu0 0.0
    %2610 = vmatprep.subr.mxu0 0.0
    %2611 = vmatpush1.msra.mxu0 0.0
    %2612 = vmatprep.subr.mxu0 0.0
    %2613 = vmatpush1.msra.mxu0 0.0
    %2614 = vmatprep.subr.mxu0 0.0
    %2615 = vmatpush1.msra.mxu0 0.0
    %2616 = vmatprep.subr.mxu0 0.0
    %2617 = vmatpush1.msra.mxu0 0.0
    %2618 = vmatprep.subr.mxu0 0.0
    %2619 = vmatpush1.msra.mxu0 0.0
    %2620 = vmatprep.subr.mxu0 0.0
    %2621 = vmatpush1.msra.mxu0 0.0
    %2622 = vmatprep.subr.mxu0 0.0
    %2623 = vmatpush1.msra.mxu0 0.0
    %2624 = vmatprep.subr.mxu0 0.0
    %2625 = vmatpush1.msra.mxu0 0.0
    %2626 = vmatprep.subr.mxu0 0.0
    %2627 = vmatpush1.msra.mxu0 0.0
    %2628 = vmatprep.subr.mxu0 0.0
    %2629 = vmatpush1.msra.mxu0 0.0
    %2630 = vmatprep.subr.mxu0 0.0
    %2631 = vmatpush1.msra.mxu0 0.0
    %2632 = vmatprep.subr.mxu0 0.0
    %2633 = vmatpush1.msra.mxu0 0.0
    %2634 = vmatprep.subr.mxu0 0.0
    %2635 = vmatpush1.msra.mxu0 0.0
    %2636 = vmatprep.subr.mxu0 0.0
    %2637 = vmatpush1.msra.mxu0 0.0
    %2638 = vmatprep.subr.mxu0 0.0
    %2639 = vmatpush1.msra.mxu0 0.0
    %2640 = vmatprep.subr.mxu0 0.0
    %2641 = vmatpush1.msra.mxu0 0.0
    %2642 = vmatprep.subr.mxu0 0.0
    %2643 = vmatpush1.msra.mxu0 0.0
    %2644 = vmatprep.subr.mxu0 0.0
    %2645 = vmatpush1.msra.mxu0 0.0
    %2646 = vmatprep.subr.mxu0 0.0
    %2647 = vmatpush1.msra.mxu0 0.0
    %2648 = vmatprep.mubr.f32.mxu0 0.0
    %2649 = vmatmul.mubr.f32.gmra.mrb[0].mxu0 %v2463
    %v2650 = vpop.f32.mrb[0].mxu0
    %v2651 = vadd.f32 0.0, %v2650
    %v2652 = vpop.f32.mrb[0].mxu0
    %v2653 = vadd.f32 0.0, %v2652
    %2654 = vdwg.mxu0
    %2655 = vmatprep.subr.mxu0 %v2435
    %2656 = vmatpush1.msra.mxu0 %v2434
    %2657 = vmatprep.subr.mxu0 %v2481
    %2658 = vmatpush1.msra.mxu0 %v2478
    %2659 = vmatprep.subr.mxu0 0.0
    %2660 = vmatpush1.msra.mxu0 0.0
    %2661 = vmatprep.subr.mxu0 0.0
    %2662 = vmatpush1.msra.mxu0 0.0
    %2663 = vmatprep.subr.mxu0 0.0
    %2664 = vmatpush1.msra.mxu0 0.0
    %2665 = vmatprep.subr.mxu0 0.0
    %2666 = vmatpush1.msra.mxu0 0.0
    %2667 = vmatprep.subr.mxu0 0.0
    %2668 = vmatpush1.msra.mxu0 0.0
    %2669 = vmatprep.subr.mxu0 0.0
    %2670 = vmatpush1.msra.mxu0 0.0
    %2671 = vmatprep.subr.mxu0 0.0
    %2672 = vmatpush1.msra.mxu0 0.0
    %2673 = vmatprep.subr.mxu0 0.0
    %2674 = vmatpush1.msra.mxu0 0.0
    %2675 = vmatprep.subr.mxu0 0.0
    %2676 = vmatpush1.msra.mxu0 0.0
    %2677 = vmatprep.subr.mxu0 0.0
    %2678 = vmatpush1.msra.mxu0 0.0
    %2679 = vmatprep.subr.mxu0 0.0
    %2680 = vmatpush1.msra.mxu0 0.0
    %2681 = vmatprep.subr.mxu0 0.0
    %2682 = vmatpush1.msra.mxu0 0.0
    %2683 = vmatprep.subr.mxu0 0.0
    %2684 = vmatpush1.msra.mxu0 0.0
    %2685 = vmatprep.subr.mxu0 0.0
    %2686 = vmatpush1.msra.mxu0 0.0
    %2687 = vmatprep.subr.mxu0 0.0
    %2688 = vmatpush1.msra.mxu0 0.0
    %2689 = vmatprep.subr.mxu0 0.0
    %2690 = vmatpush1.msra.mxu0 0.0
    %2691 = vmatprep.subr.mxu0 0.0
    %2692 = vmatpush1.msra.mxu0 0.0
    %2693 = vmatprep.subr.mxu0 0.0
    %2694 = vmatpush1.msra.mxu0 0.0
    %2695 = vmatprep.subr.mxu0 0.0
    %2696 = vmatpush1.msra.mxu0 0.0
    %2697 = vmatprep.subr.mxu0 0.0
    %2698 = vmatpush1.msra.mxu0 0.0
    %2699 = vmatprep.subr.mxu0 0.0
    %2700 = vmatpush1.msra.mxu0 0.0
    %2701 = vmatprep.subr.mxu0 0.0
    %2702 = vmatpush1.msra.mxu0 0.0
    %2703 = vmatprep.subr.mxu0 0.0
    %2704 = vmatpush1.msra.mxu0 0.0
    %2705 = vmatprep.subr.mxu0 0.0
    %2706 = vmatpush1.msra.mxu0 0.0
    %2707 = vmatprep.subr.mxu0 0.0
    %2708 = vmatpush1.msra.mxu0 0.0
    %2709 = vmatprep.subr.mxu0 0.0
    %2710 = vmatpush1.msra.mxu0 0.0
    %2711 = vmatprep.subr.mxu0 0.0
    %2712 = vmatpush1.msra.mxu0 0.0
    %2713 = vmatprep.subr.mxu0 0.0
    %2714 = vmatpush1.msra.mxu0 0.0
    %2715 = vmatprep.subr.mxu0 0.0
    %2716 = vmatpush1.msra.mxu0 0.0
    %2717 = vmatprep.subr.mxu0 0.0
    %2718 = vmatpush1.msra.mxu0 0.0
    %2719 = vmatprep.mubr.f32.mxu0 0.0
    %2720 = vmatmul.mubr.f32.gmra.mrb[0].mxu0 %v2463
    %v2721 = vpop.f32.mrb[0].mxu0
    %v2722 = vadd.f32 0.0, %v2721
    %v2723 = vpop.f32.mrb[0].mxu0
    %v2724 = vadd.f32 0.0, %v2723
    %2725 = vdwg.mxu0
    %2726 = vmatprep.subr.mxu0 %v2437
    %2727 = vmatpush1.msra.mxu0 %v2436
    %2728 = vmatprep.subr.mxu0 %v2487
    %2729 = vmatpush1.msra.mxu0 %v2484
    %2730 = vmatprep.subr.mxu0 0.0
    %2731 = vmatpush1.msra.mxu0 0.0
    %2732 = vmatprep.subr.mxu0 0.0
    %2733 = vmatpush1.msra.mxu0 0.0
    %2734 = vmatprep.subr.mxu0 0.0
    %2735 = vmatpush1.msra.mxu0 0.0
    %2736 = vmatprep.subr.mxu0 0.0
    %2737 = vmatpush1.msra.mxu0 0.0
    %2738 = vmatprep.subr.mxu0 0.0
    %2739 = vmatpush1.msra.mxu0 0.0
    %2740 = vmatprep.subr.mxu0 0.0
    %2741 = vmatpush1.msra.mxu0 0.0
    %2742 = vmatprep.subr.mxu0 0.0
    %2743 = vmatpush1.msra.mxu0 0.0
    %2744 = vmatprep.subr.mxu0 0.0
    %2745 = vmatpush1.msra.mxu0 0.0
    %2746 = vmatprep.subr.mxu0 0.0
    %2747 = vmatpush1.msra.mxu0 0.0
    %2748 = vmatprep.subr.mxu0 0.0
    %2749 = vmatpush1.msra.mxu0 0.0
    %2750 = vmatprep.subr.mxu0 0.0
    %2751 = vmatpush1.msra.mxu0 0.0
    %2752 = vmatprep.subr.mxu0 0.0
    %2753 = vmatpush1.msra.mxu0 0.0
    %2754 = vmatprep.subr.mxu0 0.0
    %2755 = vmatpush1.msra.mxu0 0.0
    %2756 = vmatprep.subr.mxu0 0.0
    %2757 = vmatpush1.msra.mxu0 0.0
    %2758 = vmatprep.subr.mxu0 0.0
    %2759 = vmatpush1.msra.mxu0 0.0
    %2760 = vmatprep.subr.mxu0 0.0
    %2761 = vmatpush1.msra.mxu0 0.0
    %2762 = vmatprep.subr.mxu0 0.0
    %2763 = vmatpush1.msra.mxu0 0.0
    %2764 = vmatprep.subr.mxu0 0.0
    %2765 = vmatpush1.msra.mxu0 0.0
    %2766 = vmatprep.subr.mxu0 0.0
    %2767 = vmatpush1.msra.mxu0 0.0
    %2768 = vmatprep.subr.mxu0 0.0
    %2769 = vmatpush1.msra.mxu0 0.0
    %2770 = vmatprep.subr.mxu0 0.0
    %2771 = vmatpush1.msra.mxu0 0.0
    %2772 = vmatprep.subr.mxu0 0.0
    %2773 = vmatpush1.msra.mxu0 0.0
    %2774 = vmatprep.subr.mxu0 0.0
    %2775 = vmatpush1.msra.mxu0 0.0
    %2776 = vmatprep.subr.mxu0 0.0
    %2777 = vmatpush1.msra.mxu0 0.0
    %2778 = vmatprep.subr.mxu0 0.0
    %2779 = vmatpush1.msra.mxu0 0.0
    %2780 = vmatprep.subr.mxu0 0.0
    %2781 = vmatpush1.msra.mxu0 0.0
    %2782 = vmatprep.subr.mxu0 0.0
    %2783 = vmatpush1.msra.mxu0 0.0
    %2784 = vmatprep.subr.mxu0 0.0
    %2785 = vmatpush1.msra.mxu0 0.0
    %2786 = vmatprep.subr.mxu0 0.0
    %2787 = vmatpush1.msra.mxu0 0.0
    %2788 = vmatprep.subr.mxu0 0.0
    %2789 = vmatpush1.msra.mxu0 0.0
    %2790 = vmatprep.mubr.f32.mxu0 0.0
    %2791 = vmatmul.mubr.f32.gmra.mrb[0].mxu0 %v2463
    %v2792 = vpop.f32.mrb[0].mxu0
    %v2793 = vadd.f32 0.0, %v2792
    %v2794 = vpop.f32.mrb[0].mxu0
    %v2795 = vadd.f32 0.0, %v2794
    %2796 = vdwg.mxu0
    %2797 = vmatprep.subr.mxu0 %v2439
    %2798 = vmatpush1.msra.mxu0 %v2438
    %2799 = vmatprep.subr.mxu0 %v2493
    %2800 = vmatpush1.msra.mxu0 %v2490
    %2801 = vmatprep.subr.mxu0 0.0
    %2802 = vmatpush1.msra.mxu0 0.0
    %2803 = vmatprep.subr.mxu0 0.0
    %2804 = vmatpush1.msra.mxu0 0.0
    %2805 = vmatprep.subr.mxu0 0.0
    %2806 = vmatpush1.msra.mxu0 0.0
    %2807 = vmatprep.subr.mxu0 0.0
    %2808 = vmatpush1.msra.mxu0 0.0
    %2809 = vmatprep.subr.mxu0 0.0
    %2810 = vmatpush1.msra.mxu0 0.0
    %2811 = vmatprep.subr.mxu0 0.0
    %2812 = vmatpush1.msra.mxu0 0.0
    %2813 = vmatprep.subr.mxu0 0.0
    %2814 = vmatpush1.msra.mxu0 0.0
    %2815 = vmatprep.subr.mxu0 0.0
    %2816 = vmatpush1.msra.mxu0 0.0
    %2817 = vmatprep.subr.mxu0 0.0
    %2818 = vmatpush1.msra.mxu0 0.0
    %2819 = vmatprep.subr.mxu0 0.0
    %2820 = vmatpush1.msra.mxu0 0.0
    %2821 = vmatprep.subr.mxu0 0.0
    %2822 = vmatpush1.msra.mxu0 0.0
    %2823 = vmatprep.subr.mxu0 0.0
    %2824 = vmatpush1.msra.mxu0 0.0
    %2825 = vmatprep.subr.mxu0 0.0
    %2826 = vmatpush1.msra.mxu0 0.0
    %2827 = vmatprep.subr.mxu0 0.0
    %2828 = vmatpush1.msra.mxu0 0.0
    %2829 = vmatprep.subr.mxu0 0.0
    %2830 = vmatpush1.msra.mxu0 0.0
    %2831 = vmatprep.subr.mxu0 0.0
    %2832 = vmatpush1.msra.mxu0 0.0
    %2833 = vmatprep.subr.mxu0 0.0
    %2834 = vmatpush1.msra.mxu0 0.0
    %2835 = vmatprep.subr.mxu0 0.0
    %2836 = vmatpush1.msra.mxu0 0.0
    %2837 = vmatprep.subr.mxu0 0.0
    %2838 = vmatpush1.msra.mxu0 0.0
    %2839 = vmatprep.subr.mxu0 0.0
    %2840 = vmatpush1.msra.mxu0 0.0
    %2841 = vmatprep.subr.mxu0 0.0
    %2842 = vmatpush1.msra.mxu0 0.0
    %2843 = vmatprep.subr.mxu0 0.0
    %2844 = vmatpush1.msra.mxu0 0.0
    %2845 = vmatprep.subr.mxu0 0.0
    %2846 = vmatpush1.msra.mxu0 0.0
    %2847 = vmatprep.subr.mxu0 0.0
    %2848 = vmatpush1.msra.mxu0 0.0
    %2849 = vmatprep.subr.mxu0 0.0
    %2850 = vmatpush1.msra.mxu0 0.0
    %2851 = vmatprep.subr.mxu0 0.0
    %2852 = vmatpush1.msra.mxu0 0.0
    %2853 = vmatprep.subr.mxu0 0.0
    %2854 = vmatpush1.msra.mxu0 0.0
    %2855 = vmatprep.subr.mxu0 0.0
    %2856 = vmatpush1.msra.mxu0 0.0
    %2857 = vmatprep.subr.mxu0 0.0
    %2858 = vmatpush1.msra.mxu0 0.0
    %2859 = vmatprep.subr.mxu0 0.0
    %2860 = vmatpush1.msra.mxu0 0.0
    %2861 = vmatprep.mubr.f32.mxu0 0.0
    %2862 = vmatmul.mubr.f32.gmra.mrb[0].mxu0 %v2463
    %v2863 = vpop.f32.mrb[0].mxu0
    %v2864 = vadd.f32 0.0, %v2863
    %v2865 = vpop.f32.mrb[0].mxu0
    %v2866 = vadd.f32 0.0, %v2865
    %2867 = vdwg.mxu0
    %2868 = vmatprep.subr.mxu0 %v2441
    %2869 = vmatpush1.msra.mxu0 %v2440
    %2870 = vmatprep.subr.mxu0 %v2499
    %2871 = vmatpush1.msra.mxu0 %v2496
    %2872 = vmatprep.subr.mxu0 0.0
    %2873 = vmatpush1.msra.mxu0 0.0
    %2874 = vmatprep.subr.mxu0 0.0
    %2875 = vmatpush1.msra.mxu0 0.0
    %2876 = vmatprep.subr.mxu0 0.0
    %2877 = vmatpush1.msra.mxu0 0.0
    %2878 = vmatprep.subr.mxu0 0.0
    %2879 = vmatpush1.msra.mxu0 0.0
    %2880 = vmatprep.subr.mxu0 0.0
    %2881 = vmatpush1.msra.mxu0 0.0
    %2882 = vmatprep.subr.mxu0 0.0
    %2883 = vmatpush1.msra.mxu0 0.0
    %2884 = vmatprep.subr.mxu0 0.0
    %2885 = vmatpush1.msra.mxu0 0.0
    %2886 = vmatprep.subr.mxu0 0.0
    %2887 = vmatpush1.msra.mxu0 0.0
    %2888 = vmatprep.subr.mxu0 0.0
    %2889 = vmatpush1.msra.mxu0 0.0
    %2890 = vmatprep.subr.mxu0 0.0
    %2891 = vmatpush1.msra.mxu0 0.0
    %2892 = vmatprep.subr.mxu0 0.0
    %2893 = vmatpush1.msra.mxu0 0.0
    %2894 = vmatprep.subr.mxu0 0.0
    %2895 = vmatpush1.msra.mxu0 0.0
    %2896 = vmatprep.subr.mxu0 0.0
    %2897 = vmatpush1.msra.mxu0 0.0
    %2898 = vmatprep.subr.mxu0 0.0
    %2899 = vmatpush1.msra.mxu0 0.0
    %2900 = vmatprep.subr.mxu0 0.0
    %2901 = vmatpush1.msra.mxu0 0.0
    %2902 = vmatprep.subr.mxu0 0.0
    %2903 = vmatpush1.msra.mxu0 0.0
    %2904 = vmatprep.subr.mxu0 0.0
    %2905 = vmatpush1.msra.mxu0 0.0
    %2906 = vmatprep.subr.mxu0 0.0
    %2907 = vmatpush1.msra.mxu0 0.0
    %2908 = vmatprep.subr.mxu0 0.0
    %2909 = vmatpush1.msra.mxu0 0.0
    %2910 = vmatprep.subr.mxu0 0.0
    %2911 = vmatpush1.msra.mxu0 0.0
    %2912 = vmatprep.subr.mxu0 0.0
    %2913 = vmatpush1.msra.mxu0 0.0
    %2914 = vmatprep.subr.mxu0 0.0
    %2915 = vmatpush1.msra.mxu0 0.0
    %2916 = vmatprep.subr.mxu0 0.0
    %2917 = vmatpush1.msra.mxu0 0.0
    %2918 = vmatprep.subr.mxu0 0.0
    %2919 = vmatpush1.msra.mxu0 0.0
    %2920 = vmatprep.subr.mxu0 0.0
    %2921 = vmatpush1.msra.mxu0 0.0
    %2922 = vmatprep.subr.mxu0 0.0
    %2923 = vmatpush1.msra.mxu0 0.0
    %2924 = vmatprep.subr.mxu0 0.0
    %2925 = vmatpush1.msra.mxu0 0.0
    %2926 = vmatprep.subr.mxu0 0.0
    %2927 = vmatpush1.msra.mxu0 0.0
    %2928 = vmatprep.subr.mxu0 0.0
    %2929 = vmatpush1.msra.mxu0 0.0
    %2930 = vmatprep.subr.mxu0 0.0
    %2931 = vmatpush1.msra.mxu0 0.0
    %2932 = vmatprep.mubr.f32.mxu0 0.0
    %2933 = vmatmul.mubr.f32.gmra.mrb[0].mxu0 %v2463
    %v2934 = vpop.f32.mrb[0].mxu0
    %v2935 = vadd.f32 0.0, %v2934
    %v2936 = vpop.f32.mrb[0].mxu0
    %v2937 = vadd.f32 0.0, %v2936
    %2938 = vdwg.mxu0
    %2939 = vmatprep.subr.mxu0 %v2443
    %2940 = vmatpush1.msra.mxu0 %v2442
    %2941 = vmatprep.subr.mxu0 %v2505
    %2942 = vmatpush1.msra.mxu0 %v2502
    %2943 = vmatprep.subr.mxu0 0.0
    %2944 = vmatpush1.msra.mxu0 0.0
    %2945 = vmatprep.subr.mxu0 0.0
    %2946 = vmatpush1.msra.mxu0 0.0
    %2947 = vmatprep.subr.mxu0 0.0
    %2948 = vmatpush1.msra.mxu0 0.0
    %2949 = vmatprep.subr.mxu0 0.0
    %2950 = vmatpush1.msra.mxu0 0.0
    %2951 = vmatprep.subr.mxu0 0.0
    %2952 = vmatpush1.msra.mxu0 0.0
    %2953 = vmatprep.subr.mxu0 0.0
    %2954 = vmatpush1.msra.mxu0 0.0
    %2955 = vmatprep.subr.mxu0 0.0
    %2956 = vmatpush1.msra.mxu0 0.0
    %2957 = vmatprep.subr.mxu0 0.0
    %2958 = vmatpush1.msra.mxu0 0.0
    %2959 = vmatprep.subr.mxu0 0.0
    %2960 = vmatpush1.msra.mxu0 0.0
    %2961 = vmatprep.subr.mxu0 0.0
    %2962 = vmatpush1.msra.mxu0 0.0
    %2963 = vmatprep.subr.mxu0 0.0
    %2964 = vmatpush1.msra.mxu0 0.0
    %2965 = vmatprep.subr.mxu0 0.0
    %2966 = vmatpush1.msra.mxu0 0.0
    %2967 = vmatprep.subr.mxu0 0.0
    %2968 = vmatpush1.msra.mxu0 0.0
    %2969 = vmatprep.subr.mxu0 0.0
    %2970 = vmatpush1.msra.mxu0 0.0
    %2971 = vmatprep.subr.mxu0 0.0
    %2972 = vmatpush1.msra.mxu0 0.0
    %2973 = vmatprep.subr.mxu0 0.0
    %2974 = vmatpush1.msra.mxu0 0.0
    %2975 = vmatprep.subr.mxu0 0.0
    %2976 = vmatpush1.msra.mxu0 0.0
    %2977 = vmatprep.subr.mxu0 0.0
    %2978 = vmatpush1.msra.mxu0 0.0
    %2979 = vmatprep.subr.mxu0 0.0
    %2980 = vmatpush1.msra.mxu0 0.0
    %2981 = vmatprep.subr.mxu0 0.0
    %2982 = vmatpush1.msra.mxu0 0.0
    %2983 = vmatprep.subr.mxu0 0.0
    %2984 = vmatpush1.msra.mxu0 0.0
    %2985 = vmatprep.subr.mxu0 0.0
    %2986 = vmatpush1.msra.mxu0 0.0
    %2987 = vmatprep.subr.mxu0 0.0
    %2988 = vmatpush1.msra.mxu0 0.0
    %2989 = vmatprep.subr.mxu0 0.0
    %2990 = vmatpush1.msra.mxu0 0.0
    %2991 = vmatprep.subr.mxu0 0.0
    %2992 = vmatpush1.msra.mxu0 0.0
    %2993 = vmatprep.subr.mxu0 0.0
    %2994 = vmatpush1.msra.mxu0 0.0
    %2995 = vmatprep.subr.mxu0 0.0
    %2996 = vmatpush1.msra.mxu0 0.0
    %2997 = vmatprep.subr.mxu0 0.0
    %2998 = vmatpush1.msra.mxu0 0.0
    %2999 = vmatprep.subr.mxu0 0.0
    %3000 = vmatpush1.msra.mxu0 0.0
    %3001 = vmatprep.subr.mxu0 0.0
    %3002 = vmatpush1.msra.mxu0 0.0
    %3003 = vmatprep.mubr.f32.mxu0 0.0
    %3004 = vmatmul.mubr.f32.gmra.mrb[0].mxu0 %v2463
    %v3005 = vpop.f32.mrb[0].mxu0
    %v3006 = vadd.f32 0.0, %v3005
    %v3007 = vpop.f32.mrb[0].mxu0
    %v3008 = vadd.f32 0.0, %v3007
    %3009 = vdwg.mxu0
    %3010 = vmatprep.subr.mxu0 %v2445
    %3011 = vmatpush1.msra.mxu0 %v2444
    %3012 = vmatprep.subr.mxu0 %v2511
    %3013 = vmatpush1.msra.mxu0 %v2508
    %3014 = vmatprep.subr.mxu0 0.0
    %3015 = vmatpush1.msra.mxu0 0.0
    %3016 = vmatprep.subr.mxu0 0.0
    %3017 = vmatpush1.msra.mxu0 0.0
    %3018 = vmatprep.subr.mxu0 0.0
    %3019 = vmatpush1.msra.mxu0 0.0
    %3020 = vmatprep.subr.mxu0 0.0
    %3021 = vmatpush1.msra.mxu0 0.0
    %3022 = vmatprep.subr.mxu0 0.0
    %3023 = vmatpush1.msra.mxu0 0.0
    %3024 = vmatprep.subr.mxu0 0.0
    %3025 = vmatpush1.msra.mxu0 0.0
    %3026 = vmatprep.subr.mxu0 0.0
    %3027 = vmatpush1.msra.mxu0 0.0
    %3028 = vmatprep.subr.mxu0 0.0
    %3029 = vmatpush1.msra.mxu0 0.0
    %3030 = vmatprep.subr.mxu0 0.0
    %3031 = vmatpush1.msra.mxu0 0.0
    %3032 = vmatprep.subr.mxu0 0.0
    %3033 = vmatpush1.msra.mxu0 0.0
    %3034 = vmatprep.subr.mxu0 0.0
    %3035 = vmatpush1.msra.mxu0 0.0
    %3036 = vmatprep.subr.mxu0 0.0
    %3037 = vmatpush1.msra.mxu0 0.0
    %3038 = vmatprep.subr.mxu0 0.0
    %3039 = vmatpush1.msra.mxu0 0.0
    %3040 = vmatprep.subr.mxu0 0.0
    %3041 = vmatpush1.msra.mxu0 0.0
    %3042 = vmatprep.subr.mxu0 0.0
    %3043 = vmatpush1.msra.mxu0 0.0
    %3044 = vmatprep.subr.mxu0 0.0
    %3045 = vmatpush1.msra.mxu0 0.0
    %3046 = vmatprep.subr.mxu0 0.0
    %3047 = vmatpush1.msra.mxu0 0.0
    %3048 = vmatprep.subr.mxu0 0.0
    %3049 = vmatpush1.msra.mxu0 0.0
    %3050 = vmatprep.subr.mxu0 0.0
    %3051 = vmatpush1.msra.mxu0 0.0
    %3052 = vmatprep.subr.mxu0 0.0
    %3053 = vmatpush1.msra.mxu0 0.0
    %3054 = vmatprep.subr.mxu0 0.0
    %3055 = vmatpush1.msra.mxu0 0.0
    %3056 = vmatprep.subr.mxu0 0.0
    %3057 = vmatpush1.msra.mxu0 0.0
    %3058 = vmatprep.subr.mxu0 0.0
    %3059 = vmatpush1.msra.mxu0 0.0
    %3060 = vmatprep.subr.mxu0 0.0
    %3061 = vmatpush1.msra.mxu0 0.0
    %3062 = vmatprep.subr.mxu0 0.0
    %3063 = vmatpush1.msra.mxu0 0.0
    %3064 = vmatprep.subr.mxu0 0.0
    %3065 = vmatpush1.msra.mxu0 0.0
    %3066 = vmatprep.subr.mxu0 0.0
    %3067 = vmatpush1.msra.mxu0 0.0
    %3068 = vmatprep.subr.mxu0 0.0
    %3069 = vmatpush1.msra.mxu0 0.0
    %3070 = vmatprep.subr.mxu0 0.0
    %3071 = vmatpush1.msra.mxu0 0.0
    %3072 = vmatprep.subr.mxu0 0.0
    %3073 = vmatpush1.msra.mxu0 0.0
    %3074 = vmatprep.mubr.f32.mxu0 0.0
    %3075 = vmatmul.mubr.f32.gmra.mrb[0].mxu0 %v2463
    %v3076 = vpop.f32.mrb[0].mxu0
    %v3077 = vadd.f32 0.0, %v3076
    %v3078 = vpop.f32.mrb[0].mxu0
    %v3079 = vadd.f32 0.0, %v3078
    %3080 = vdwg.mxu0
    %v3081 = vadd.f32 %v1538, %v2580
    %v3082 = vadd.f32 %v1540, %v2582
    %v3083 = vadd.f32 %v1609, %v2651
    %v3084 = vadd.f32 %v1611, %v2653
    %v3085 = vadd.f32 %v1680, %v2722
    %v3086 = vadd.f32 %v1682, %v2724
    %v3087 = vadd.f32 %v1751, %v2793
    %v3088 = vadd.f32 %v1753, %v2795
    %v3089 = vadd.f32 %v1822, %v2864
    %v3090 = vadd.f32 %v1824, %v2866
    %v3091 = vadd.f32 %v1893, %v2935
    %v3092 = vadd.f32 %v1895, %v2937
    %v3093 = vadd.f32 %v1964, %v3006
    %v3094 = vadd.f32 %v1966, %v3008
    %v3095 = vadd.f32 %v2035, %v3077
    %v3096 = vadd.f32 %v2037, %v3079
    %v3097 = vld [vmem:[%s2] sm:$0xff]
    %3099 = vset.pattern.permute.xlu0 0
    %3100 = vperm.xlu0 %3099, %v3097
    %v3101 = vpop.permute.xlu0 %3100
    %v3103 = vadd.f32 %v3081, %v3101
    %v3104 = vadd.f32 %v3082, %v3101
    %v3105 = vadd.f32 %v3083, %v3101
    %v3106 = vadd.f32 %v3084, %v3101
    %v3107 = vadd.f32 %v3085, %v3101
    %v3108 = vadd.f32 %v3086, %v3101
    %v3109 = vadd.f32 %v3087, %v3101
    %v3110 = vadd.f32 %v3088, %v3101
    %v3111 = vadd.f32 %v3089, %v3101
    %v3112 = vadd.f32 %v3090, %v3101
    %v3113 = vadd.f32 %v3091, %v3101
    %v3114 = vadd.f32 %v3092, %v3101
    %v3115 = vadd.f32 %v3093, %v3101
    %v3116 = vadd.f32 %v3094, %v3101
    %v3117 = vadd.f32 %v3095, %v3101
    %v3118 = vadd.f32 %v3096, %v3101
    %3119 = vst [vmem:[#allocation8] sm:$0xff] %v3103
    %3120 = vst [vmem:[#allocation8 + $0x8] sm:$0xff] %v3104
    %3121 = vst [vmem:[#allocation8 + $0x10] sm:$0xff] %v3105
    %3122 = vst [vmem:[#allocation8 + $0x18] sm:$0xff] %v3106
    %3123 = vst [vmem:[#allocation8 + $0x20] sm:$0xff] %v3107
    %3124 = vst [vmem:[#allocation8 + $0x28] sm:$0xff] %v3108
    %3125 = vst [vmem:[#allocation8 + $0x30] sm:$0xff] %v3109
    %3126 = vst [vmem:[#allocation8 + $0x38] sm:$0xff] %v3110
    %3127 = vst [vmem:[#allocation8 + $0x40] sm:$0xff] %v3111
    %3128 = vst [vmem:[#allocation8 + $0x48] sm:$0xff] %v3112
    %3129 = vst [vmem:[#allocation8 + $0x50] sm:$0xff] %v3113
    %3130 = vst [vmem:[#allocation8 + $0x58] sm:$0xff] %v3114
    %3131 = vst [vmem:[#allocation8 + $0x60] sm:$0xff] %v3115
    %3132 = vst [vmem:[#allocation8 + $0x68] sm:$0xff] %v3116
    %3133 = vst [vmem:[#allocation8 + $0x70] sm:$0xff] %v3117
    %3134 = vst [vmem:[#allocation8 + $0x78] sm:$0xff] %v3118
    // Predicated region
    $region18: #{tpu_custom_call.1} parent=1 // pred_check
      _
    $region19: #{tpu_custom_call.1} parent=1 // pred_check_branch
      %3136 = sbr.rel (0) target = $region21
    $region20: #{tpu_custom_call.1} parent=1 // pred_region
      %s3138 = ssub.s32 2048, 2048
      %3139 = vsyncadd [#allocation7], %s3138
      %s3140 = sshll.u32 [#allocation8], 4
      %s3141 = int_to_ptr.vmem [resolvable:$true] %s3140
      %3146 = dma.vmem_to_hbm [thread:$0]  %s3141, 2048, %s3, [#allocation7], 1024, 1024, 64
    $region21: #{tpu_custom_call.1} parent=1 // pred_fallthru
      _
    // Predicated region
    $region22: #{tpu_custom_call.1} parent=1 // pred_check
      _
    $region23: #{tpu_custom_call.1} parent=1 // pred_check_branch
      %3148 = sbr.rel (0) target = $region25
    $region24: #{tpu_custom_call.1} parent=1 // pred_region
      %3149 = dma.done [#allocation7], 2048
    $region25: #{tpu_custom_call.1} parent=1 // pred_fallthru
      _
    %3150 = vsyncpa [#allocation6], 1
    %3151 = vsyncpa [#allocation7], 1

</llo_original>
